<compile_context>
chip_gen: v5e
topology: v5e:2x2
jax: 0.10.0
libtpu: 0.0.40
codegen_flags: <defaults>
</compile_context>

<pallas_src>
import math

import numpy as np
import jax
import jax.numpy as jnp
from jax.experimental import pallas as pl
from jax.experimental.pallas import tpu as pltpu

# ---------------- model / problem sizes (consistent with the module) ---------
B = 2            # batch
S = 8            # number of object tokens (obj.shape[-2])
BS = B * S       # total token rows processed at once
GRIP_DIM = 3
OBJ_DIM = 5
GOAL_DIM = 3
ACT_DIM = 4
TOKEN_DIM = GRIP_DIM + OBJ_DIM + GOAL_DIM + ACT_DIM   # 15
E = 32           # embed_dim
FF = 32          # dim_ff
H = 4            # n_head
HEAD_DIM = E // H
L = 2            # n_blocks
MAX_ACTION = 1.0
SCALE = 1.0 / math.sqrt(HEAD_DIM)
LN_EPS = 1e-5

# Compile-time constant helper matrices (built with numpy; become XLA constants).
_ATTN_MASK = np.where(
    (np.arange(BS)[:, None] // S) == (np.arange(BS)[None, :] // S),
    0.0, -1e30).astype(np.float32)                         # [BS, BS] block-diag mask
_EXPAND = ((np.arange(BS)[:, None] // S) ==
           np.arange(B)[None, :]).astype(np.float32)       # [BS, B] batch -> tokens
_REDUCE = np.ascontiguousarray(_EXPAND.T)                  # [B, BS] tokens -> batch sum


# ----------------------------- Pallas kernel --------------------------------
def _layer_norm(v, w, b):
    mu = jnp.mean(v, axis=-1, keepdims=True)
    var = jnp.mean((v - mu) ** 2, axis=-1, keepdims=True)
    return (v - mu) * jax.lax.rsqrt(var + LN_EPS) * w + b


def critic_tfm_kernel(mask_ref, expand_ref, reduce_ref,
                      grip_ref, obj_ref, goal_ref, act_ref,
                      weg_ref, weo_ref, wegl_ref, wea_ref, be_ref,
                      ln1w_ref, ln1b_ref,
                      wqh_ref, bqh_ref, wkh_ref, wvh_ref, bvh_ref,
                      woh_ref, outb_ref,
                      ln2w_ref, ln2b_ref,
                      f1w_ref, f1b_ref, f2w_ref, f2b_ref,
                      wqo_ref, bqo_ref,
                      o_ref):
    mask = mask_ref[...]          # [BS, BS]
    expand = expand_ref[...]      # [BS, B]
    reduce = reduce_ref[...]      # [B, BS]

    # --- embedding as split matmuls (input assembly folded into the kernel) --
    xga = jnp.dot(grip_ref[...], weg_ref[...],
                  preferred_element_type=jnp.float32)
    xga = xga + jnp.dot(act_ref[...] * (1.0 / MAX_ACTION), wea_ref[...],
                        preferred_element_type=jnp.float32)          # [B, E]
    h = jnp.dot(obj_ref[...], weo_ref[...],
                preferred_element_type=jnp.float32)
    h = h + jnp.dot(goal_ref[...], wegl_ref[...],
                    preferred_element_type=jnp.float32)
    h = h + jnp.dot(expand, xga, preferred_element_type=jnp.float32)
    h = h + be_ref[...]                                              # [BS, E]

    # --- pre-LN transformer encoder blocks (dropout = 0, no src_mask) --------
    for l in range(L):
        pre = _layer_norm(h, ln1w_ref[l], ln1b_ref[l])
        attn = jnp.zeros((BS, E), jnp.float32)
        for hh in range(H):
            # 1/sqrt(HD) folded into q_h (bias scaled too, as in sc*SCALE).
            qh = (jnp.dot(pre, wqh_ref[l, hh],
                          preferred_element_type=jnp.float32)
                  + bqh_ref[l, hh]) * SCALE
            # K bias is omitted: it only shifts each score row by a constant
            # (q_i . b_k), to which softmax is exactly invariant.
            kh = jnp.dot(pre, wkh_ref[l, hh],
                         preferred_element_type=jnp.float32)
            vh = jnp.dot(pre, wvh_ref[l, hh],
                         preferred_element_type=jnp.float32) + bvh_ref[l, hh]
            sc = jax.lax.dot_general(qh, kh, (((1,), (1,)), ((), ())),
                                     preferred_element_type=jnp.float32)
            sc = sc + mask                             # block-diagonal batching
            sc = sc - jnp.max(sc, axis=-1, keepdims=True)
            p = jnp.exp(sc)
            p = p * pl.reciprocal(jnp.sum(p, axis=-1, keepdims=True),
                                  approx=True)
            ctx = jnp.dot(p, vh, preferred_element_type=jnp.float32)  # [BS, HD]
            # head concat folded into the out-projection
            attn = attn + jnp.dot(ctx, woh_ref[l, hh],
                                  preferred_element_type=jnp.float32)
        h = h + attn + outb_ref[l]

        pre2 = _layer_norm(h, ln2w_ref[l], ln2b_ref[l])
        ff = jnp.maximum(
            jnp.dot(pre2, f1w_ref[l],
                    preferred_element_type=jnp.float32) + f1b_ref[l], 0.0)
        h = h + jnp.dot(ff, f2w_ref[l],
                        preferred_element_type=jnp.float32) + f2b_ref[l]

    # --- q_out with the token-sum folded in: o = (sum_tokens h) @ Wq + S*bq --
    hsum = jnp.dot(reduce, h, preferred_element_type=jnp.float32)     # [B, E]
    o = jnp.dot(hsum, wqo_ref[...],
                preferred_element_type=jnp.float32) + S * bqo_ref[...]
    o_ref[...] = o                                                    # [B, 1]


# bkh is intentionally absent: the kernel never needs the K-projection bias.
WEIGHT_ORDER = ("we_grip", "we_obj", "we_goal", "we_act", "be",
                "ln1w", "ln1b",
                "wqh", "bqh", "wkh", "wvh", "bvh",
                "woh", "outb",
                "ln2w", "ln2b",
                "f1w", "f1b", "f2w", "f2b",
                "wq", "bq")


def _full_spec(arr):
    nd = arr.ndim
    return pl.BlockSpec(arr.shape, lambda i, _nd=nd: (0,) * _nd)


@jax.jit
def critic_tfm_pallas(grip, obj, g, actions, params):
    # Only free reshapes / dtype casts in the wrapper; no broadcast/concat/div.
    grip = grip.astype(jnp.float32)
    actions = actions.astype(jnp.float32)
    obj_flat = obj.astype(jnp.float32).reshape(BS, OBJ_DIM)
    g_flat = g.astype(jnp.float32).reshape(BS, GOAL_DIM)

    consts = (jnp.asarray(_ATTN_MASK), jnp.asarray(_EXPAND), jnp.asarray(_REDUCE))
    weights = [params[k] for k in WEIGHT_ORDER]
    inputs = (*consts, grip, obj_flat, g_flat, actions, *weights)

    out = pl.pallas_call(
        critic_tfm_kernel,
        out_shape=jax.ShapeDtypeStruct((B, 1), jnp.float32),
        grid_spec=pltpu.PrefetchScalarGridSpec(
            num_scalar_prefetch=0,
            grid=(1,),                               # single step: all 16 rows at once
            in_specs=[_full_spec(a) for a in inputs],
            out_specs=pl.BlockSpec((B, 1), lambda i: (0, 0)),
        ),
        compiler_params=pltpu.CompilerParams(
            dimension_semantics=("arbitrary",)),
    )(*inputs)
    return out


# ---------------------------- parameter init --------------------------------
def init_params(key):
    def nrm(k, shape, scale=0.05):
        return (scale * jax.random.normal(k, shape)).astype(jnp.float32)

    ks = iter(jax.random.split(key, 32))
    p = {
        "we_grip": nrm(next(ks), (GRIP_DIM, E)),
        "we_obj": nrm(next(ks), (OBJ_DIM, E)),
        "we_goal": nrm(next(ks), (GOAL_DIM, E)),
        "we_act": nrm(next(ks), (ACT_DIM, E)),
        "be": nrm(next(ks), (1, E)),
        "ln1w": jnp.ones((L, 1, E), jnp.float32),
        "ln1b": jnp.zeros((L, 1, E), jnp.float32),
        "wqh": nrm(next(ks), (L, H, E, HEAD_DIM)),
        "bqh": nrm(next(ks), (L, H, 1, HEAD_DIM)),
        "wkh": nrm(next(ks), (L, H, E, HEAD_DIM)),
        "bkh": nrm(next(ks), (L, H, 1, HEAD_DIM)),   # only used by the reference
        "wvh": nrm(next(ks), (L, H, E, HEAD_DIM)),
        "bvh": nrm(next(ks), (L, H, 1, HEAD_DIM)),
        "woh": nrm(next(ks), (L, H, HEAD_DIM, E)),
        "outb": nrm(next(ks), (L, 1, E)),
        "ln2w": jnp.ones((L, 1, E), jnp.float32),
        "ln2b": jnp.zeros((L, 1, E), jnp.float32),
        "f1w": nrm(next(ks), (L, E, FF)),
        "f1b": nrm(next(ks), (L, 1, FF)),
        "f2w": nrm(next(ks), (L, FF, E)),
        "f2b": nrm(next(ks), (L, 1, E)),
        "wq": nrm(next(ks), (E, 1)),
        "bq": nrm(next(ks), (1, 1)),
    }
    return p


# --------------------------- pure-JAX reference ------------------------------
def ref_forward(grip, obj, g, actions, p):
    grip_e = jnp.broadcast_to(grip[:, None, :], (B, S, GRIP_DIM))
    act_e = jnp.broadcast_to(actions[:, None, :], (B, S, ACT_DIM)) / MAX_ACTION
    x = jnp.concatenate((grip_e, obj, g, act_e), axis=-1).astype(jnp.float32)

    we = jnp.concatenate(
        [p["we_grip"], p["we_obj"], p["we_goal"], p["we_act"]], axis=0)
    h = x @ we + p["be"][0]
    for l in range(L):
        pre = _layer_norm(h, p["ln1w"][l, 0], p["ln1b"][l, 0])
        wq_f = jnp.transpose(p["wqh"][l], (1, 0, 2)).reshape(E, E)
        wk_f = jnp.transpose(p["wkh"][l], (1, 0, 2)).reshape(E, E)
        wv_f = jnp.transpose(p["wvh"][l], (1, 0, 2)).reshape(E, E)
        q = pre @ wq_f + p["bqh"][l].reshape(E)
        k = pre @ wk_f + p["bkh"][l].reshape(E)   # kernel drops this bias (softmax-invariant)
        v = pre @ wv_f + p["bvh"][l].reshape(E)
        qh = q.reshape(B, S, H, HEAD_DIM)
        kh = k.reshape(B, S, H, HEAD_DIM)
        vh = v.reshape(B, S, H, HEAD_DIM)
        sc = jnp.einsum("bqhd,bkhd->bhqk", qh, kh) * SCALE
        pm = jax.nn.softmax(sc, axis=-1)
        ctx = jnp.einsum("bhqk,bkhd->bqhd", pm, vh).reshape(B, S, E)
        wo_f = p["woh"][l].reshape(E, E)
        h = h + ctx @ wo_f + p["outb"][l, 0]
        pre2 = _layer_norm(h, p["ln2w"][l, 0], p["ln2b"][l, 0])
        ff = jnp.maximum(pre2 @ p["f1w"][l] + p["f1b"][l, 0], 0.0)
        ff = ff @ p["f2w"][l] + p["f2b"][l, 0]
        h = h + ff
    qv = h @ p["wq"] + p["bq"][0]           # [B, S, 1]
    return qv.sum(-2)                        # [B, 1]


# ------------------------------------ main -----------------------------------
if __name__ == "__main__":
    # TODO(synk): PositionalEncoding branch (pos_enc=True) not implemented; the
    # module default pos_enc=False is what this kernel reproduces. Dropout=0.
    key = jax.random.PRNGKey(0)
    k_p, k_grip, k_obj, k_g, k_act = jax.random.split(key, 5)
    params = init_params(k_p)

    grip = jax.random.normal(k_grip, (B, GRIP_DIM), jnp.float32)
    obj = jax.random.normal(k_obj, (B, S, OBJ_DIM), jnp.float32)
    g = jax.random.normal(k_g, (B, S, GOAL_DIM), jnp.float32)
    actions = jax.random.normal(k_act, (B, ACT_DIM), jnp.float32)

    out = critic_tfm_pallas(grip, obj, g, actions, params)
    out = jax.block_until_ready(out)

    ref = ref_forward(grip, obj, g, actions, params)
    assert out.shape == (B, 1), out.shape
    assert jnp.allclose(out, ref, rtol=1e-2, atol=1e-2), (out, ref)
    print("KERNEL_OK")
</pallas_src>

<mosaic_0001>
module attributes {stable_mosaic.version = 11 : i64} {
  func.func @critic_tfm_kernel(%arg0: i32, %arg1: memref<16x16xf32, #tpu.memory_space<vmem>>, %arg2: memref<16x2xf32, #tpu.memory_space<vmem>>, %arg3: memref<2x16xf32, #tpu.memory_space<vmem>>, %arg4: memref<2x3xf32, #tpu.memory_space<vmem>>, %arg5: memref<16x5xf32, #tpu.memory_space<vmem>>, %arg6: memref<16x3xf32, #tpu.memory_space<vmem>>, %arg7: memref<2x4xf32, #tpu.memory_space<vmem>>, %arg8: memref<3x32xf32, #tpu.memory_space<vmem>>, %arg9: memref<5x32xf32, #tpu.memory_space<vmem>>, %arg10: memref<3x32xf32, #tpu.memory_space<vmem>>, %arg11: memref<4x32xf32, #tpu.memory_space<vmem>>, %arg12: memref<1x32xf32, #tpu.memory_space<vmem>>, %arg13: memref<2x1x32xf32, #tpu.memory_space<vmem>>, %arg14: memref<2x1x32xf32, #tpu.memory_space<vmem>>, %arg15: memref<2x4x32x8xf32, #tpu.memory_space<vmem>>, %arg16: memref<2x4x1x8xf32, #tpu.memory_space<vmem>>, %arg17: memref<2x4x32x8xf32, #tpu.memory_space<vmem>>, %arg18: memref<2x4x32x8xf32, #tpu.memory_space<vmem>>, %arg19: memref<2x4x1x8xf32, #tpu.memory_space<vmem>>, %arg20: memref<2x4x8x32xf32, #tpu.memory_space<vmem>>, %arg21: memref<2x1x32xf32, #tpu.memory_space<vmem>>, %arg22: memref<2x1x32xf32, #tpu.memory_space<vmem>>, %arg23: memref<2x1x32xf32, #tpu.memory_space<vmem>>, %arg24: memref<2x32x32xf32, #tpu.memory_space<vmem>>, %arg25: memref<2x1x32xf32, #tpu.memory_space<vmem>>, %arg26: memref<2x32x32xf32, #tpu.memory_space<vmem>>, %arg27: memref<2x1x32xf32, #tpu.memory_space<vmem>>, %arg28: memref<32x1xf32, #tpu.memory_space<vmem>>, %arg29: memref<1x1xf32, #tpu.memory_space<vmem>>, %arg30: memref<2x1xf32, #tpu.memory_space<vmem>>) attributes {dimension_semantics = [#tpu.dimension_semantics<arbitrary>], iteration_bounds = array<i64: 1>, scalar_prefetch = 0 : i64, scratch_operands = 0 : i64, tpu.core_type = #tpu.core_type<tc>, window_params = [{pipeline_mode = #tpu.pipeline_mode<synchronous>, transform_indices = @transform_0, window_bounds = array<i64: 16, 16>}, {pipeline_mode = #tpu.pipeline_mode<synchronous>, transform_indices = @transform_1, window_bounds = array<i64: 16, 2>}, {pipeline_mode = #tpu.pipeline_mode<synchronous>, transform_indices = @transform_2, window_bounds = array<i64: 2, 16>}, {pipeline_mode = #tpu.pipeline_mode<synchronous>, transform_indices = @transform_3, window_bounds = array<i64: 2, 3>}, {pipeline_mode = #tpu.pipeline_mode<synchronous>, transform_indices = @transform_4, window_bounds = array<i64: 16, 5>}, {pipeline_mode = #tpu.pipeline_mode<synchronous>, transform_indices = @transform_5, window_bounds = array<i64: 16, 3>}, {pipeline_mode = #tpu.pipeline_mode<synchronous>, transform_indices = @transform_6, window_bounds = array<i64: 2, 4>}, {pipeline_mode = #tpu.pipeline_mode<synchronous>, transform_indices = @transform_7, window_bounds = array<i64: 3, 32>}, {pipeline_mode = #tpu.pipeline_mode<synchronous>, transform_indices = @transform_8, window_bounds = array<i64: 5, 32>}, {pipeline_mode = #tpu.pipeline_mode<synchronous>, transform_indices = @transform_9, window_bounds = array<i64: 3, 32>}, {pipeline_mode = #tpu.pipeline_mode<synchronous>, transform_indices = @transform_10, window_bounds = array<i64: 4, 32>}, {pipeline_mode = #tpu.pipeline_mode<synchronous>, transform_indices = @transform_11, window_bounds = array<i64: 1, 32>}, {pipeline_mode = #tpu.pipeline_mode<synchronous>, transform_indices = @transform_12, window_bounds = array<i64: 2, 1, 32>}, {pipeline_mode = #tpu.pipeline_mode<synchronous>, transform_indices = @transform_13, window_bounds = array<i64: 2, 1, 32>}, {pipeline_mode = #tpu.pipeline_mode<synchronous>, transform_indices = @transform_14, window_bounds = array<i64: 2, 4, 32, 8>}, {pipeline_mode = #tpu.pipeline_mode<synchronous>, transform_indices = @transform_15, window_bounds = array<i64: 2, 4, 1, 8>}, {pipeline_mode = #tpu.pipeline_mode<synchronous>, transform_indices = @transform_16, window_bounds = array<i64: 2, 4, 32, 8>}, {pipeline_mode = #tpu.pipeline_mode<synchronous>, transform_indices = @transform_17, window_bounds = array<i64: 2, 4, 32, 8>}, {pipeline_mode = #tpu.pipeline_mode<synchronous>, transform_indices = @transform_18, window_bounds = array<i64: 2, 4, 1, 8>}, {pipeline_mode = #tpu.pipeline_mode<synchronous>, transform_indices = @transform_19, window_bounds = array<i64: 2, 4, 8, 32>}, {pipeline_mode = #tpu.pipeline_mode<synchronous>, transform_indices = @transform_20, window_bounds = array<i64: 2, 1, 32>}, {pipeline_mode = #tpu.pipeline_mode<synchronous>, transform_indices = @transform_21, window_bounds = array<i64: 2, 1, 32>}, {pipeline_mode = #tpu.pipeline_mode<synchronous>, transform_indices = @transform_22, window_bounds = array<i64: 2, 1, 32>}, {pipeline_mode = #tpu.pipeline_mode<synchronous>, transform_indices = @transform_23, window_bounds = array<i64: 2, 32, 32>}, {pipeline_mode = #tpu.pipeline_mode<synchronous>, transform_indices = @transform_24, window_bounds = array<i64: 2, 1, 32>}, {pipeline_mode = #tpu.pipeline_mode<synchronous>, transform_indices = @transform_25, window_bounds = array<i64: 2, 32, 32>}, {pipeline_mode = #tpu.pipeline_mode<synchronous>, transform_indices = @transform_26, window_bounds = array<i64: 2, 1, 32>}, {pipeline_mode = #tpu.pipeline_mode<synchronous>, transform_indices = @transform_27, window_bounds = array<i64: 32, 1>}, {pipeline_mode = #tpu.pipeline_mode<synchronous>, transform_indices = @transform_28, window_bounds = array<i64: 1, 1>}, {pipeline_mode = #tpu.pipeline_mode<synchronous>, transform_indices = @transform_29, window_bounds = array<i64: 2, 1>}]} {
    %c0 = arith.constant 0 : index
    %c0_0 = arith.constant 0 : index
    %0 = vector.load %arg1[%c0, %c0_0] : memref<16x16xf32, #tpu.memory_space<vmem>>, vector<16x16xf32>
    %c0_1 = arith.constant 0 : index
    %c0_2 = arith.constant 0 : index
    %1 = vector.load %arg2[%c0_1, %c0_2] : memref<16x2xf32, #tpu.memory_space<vmem>>, vector<16x2xf32>
    %c0_3 = arith.constant 0 : index
    %c0_4 = arith.constant 0 : index
    %2 = vector.load %arg3[%c0_3, %c0_4] : memref<2x16xf32, #tpu.memory_space<vmem>>, vector<2x16xf32>
    %c0_5 = arith.constant 0 : index
    %c0_6 = arith.constant 0 : index
    %3 = vector.load %arg4[%c0_5, %c0_6] : memref<2x3xf32, #tpu.memory_space<vmem>>, vector<2x3xf32>
    %c0_7 = arith.constant 0 : index
    %c0_8 = arith.constant 0 : index
    %4 = vector.load %arg8[%c0_7, %c0_8] : memref<3x32xf32, #tpu.memory_space<vmem>>, vector<3x32xf32>
    %cst = arith.constant dense<0.000000e+00> : vector<2x32xf32>
    %5 = tpu.matmul %3, %4, %cst {dimension_numbers = #tpu.dot_dimension_numbers<[1], [0], [0], [1], [0, 0, 1, 1], [], []>} : vector<2x3xf32>, vector<3x32xf32>, vector<2x32xf32> -> vector<2x32xf32>
    %c0_9 = arith.constant 0 : index
    %c0_10 = arith.constant 0 : index
    %6 = vector.load %arg7[%c0_9, %c0_10] : memref<2x4xf32, #tpu.memory_space<vmem>>, vector<2x4xf32>
    %cst_11 = arith.constant 1.000000e+00 : f32
    %7 = vector.broadcast %cst_11 : f32 to vector<2x4xf32>
    %8 = arith.mulf %6, %7 : vector<2x4xf32>
    %c0_12 = arith.constant 0 : index
    %c0_13 = arith.constant 0 : index
    %9 = vector.load %arg11[%c0_12, %c0_13] : memref<4x32xf32, #tpu.memory_space<vmem>>, vector<4x32xf32>
    %cst_14 = arith.constant dense<0.000000e+00> : vector<2x32xf32>
    %10 = tpu.matmul %8, %9, %cst_14 {dimension_numbers = #tpu.dot_dimension_numbers<[1], [0], [0], [1], [0, 0, 1, 1], [], []>} : vector<2x4xf32>, vector<4x32xf32>, vector<2x32xf32> -> vector<2x32xf32>
    %11 = arith.addf %5, %10 : vector<2x32xf32>
    %c0_15 = arith.constant 0 : index
    %c0_16 = arith.constant 0 : index
    %12 = vector.load %arg5[%c0_15, %c0_16] : memref<16x5xf32, #tpu.memory_space<vmem>>, vector<16x5xf32>
    %c0_17 = arith.constant 0 : index
    %c0_18 = arith.constant 0 : index
    %13 = vector.load %arg9[%c0_17, %c0_18] : memref<5x32xf32, #tpu.memory_space<vmem>>, vector<5x32xf32>
    %cst_19 = arith.constant dense<0.000000e+00> : vector<16x32xf32>
    %14 = tpu.matmul %12, %13, %cst_19 {dimension_numbers = #tpu.dot_dimension_numbers<[1], [0], [0], [1], [0, 0, 1, 1], [], []>} : vector<16x5xf32>, vector<5x32xf32>, vector<16x32xf32> -> vector<16x32xf32>
    %c0_20 = arith.constant 0 : index
    %c0_21 = arith.constant 0 : index
    %15 = vector.load %arg6[%c0_20, %c0_21] : memref<16x3xf32, #tpu.memory_space<vmem>>, vector<16x3xf32>
    %c0_22 = arith.constant 0 : index
    %c0_23 = arith.constant 0 : index
    %16 = vector.load %arg10[%c0_22, %c0_23] : memref<3x32xf32, #tpu.memory_space<vmem>>, vector<3x32xf32>
    %cst_24 = arith.constant dense<0.000000e+00> : vector<16x32xf32>
    %17 = tpu.matmul %15, %16, %cst_24 {dimension_numbers = #tpu.dot_dimension_numbers<[1], [0], [0], [1], [0, 0, 1, 1], [], []>} : vector<16x3xf32>, vector<3x32xf32>, vector<16x32xf32> -> vector<16x32xf32>
    %18 = arith.addf %14, %17 : vector<16x32xf32>
    %cst_25 = arith.constant dense<0.000000e+00> : vector<16x32xf32>
    %19 = tpu.matmul %1, %11, %cst_25 {dimension_numbers = #tpu.dot_dimension_numbers<[1], [0], [0], [1], [0, 0, 1, 1], [], []>} : vector<16x2xf32>, vector<2x32xf32>, vector<16x32xf32> -> vector<16x32xf32>
    %20 = arith.addf %18, %19 : vector<16x32xf32>
    %c0_26 = arith.constant 0 : index
    %c0_27 = arith.constant 0 : index
    %21 = vector.load %arg12[%c0_26, %c0_27] : memref<1x32xf32, #tpu.memory_space<vmem>>, vector<1x32xf32>
    %22 = vector.broadcast %21 : vector<1x32xf32> to vector<16x32xf32>
    %23 = arith.addf %20, %22 : vector<16x32xf32>
    %c0_28 = arith.constant 0 : index
    %c0_29 = arith.constant 0 : index
    %c0_30 = arith.constant 0 : index
    %24 = vector.load %arg13[%c0_28, %c0_29, %c0_30] : memref<2x1x32xf32, #tpu.memory_space<vmem>>, vector<1x1x32xf32>
    %25 = vector.shape_cast %24 : vector<1x1x32xf32> to vector<1x32xf32>
    %c0_31 = arith.constant 0 : index
    %c0_32 = arith.constant 0 : index
    %c0_33 = arith.constant 0 : index
    %26 = vector.load %arg14[%c0_31, %c0_32, %c0_33] : memref<2x1x32xf32, #tpu.memory_space<vmem>>, vector<1x1x32xf32>
    %27 = vector.shape_cast %26 : vector<1x1x32xf32> to vector<1x32xf32>
    %cst_34 = arith.constant dense<0.000000e+00> : vector<16xf32>
    %28 = vector.multi_reduction <add>, %23, %cst_34 [1] : vector<16x32xf32> to vector<16xf32>
    %29 = vector.shape_cast %28 : vector<16xf32> to vector<16x1xf32>
    %cst_35 = arith.constant 3.200000e+01 : f32
    %30 = vector.broadcast %cst_35 : f32 to vector<16x1xf32>
    %31 = arith.divf %29, %30 : vector<16x1xf32>
    %32 = vector.broadcast %31 : vector<16x1xf32> to vector<16x32xf32>
    %33 = arith.subf %23, %32 : vector<16x32xf32>
    %34 = arith.mulf %33, %33 : vector<16x32xf32>
    %cst_36 = arith.constant dense<0.000000e+00> : vector<16xf32>
    %35 = vector.multi_reduction <add>, %34, %cst_36 [1] : vector<16x32xf32> to vector<16xf32>
    %36 = vector.shape_cast %35 : vector<16xf32> to vector<16x1xf32>
    %cst_37 = arith.constant 3.200000e+01 : f32
    %37 = vector.broadcast %cst_37 : f32 to vector<16x1xf32>
    %38 = arith.divf %36, %37 : vector<16x1xf32>
    %39 = vector.broadcast %31 : vector<16x1xf32> to vector<16x32xf32>
    %40 = arith.subf %23, %39 : vector<16x32xf32>
    %cst_38 = arith.constant 9.99999974E-6 : f32
    %41 = vector.broadcast %cst_38 : f32 to vector<16x1xf32>
    %42 = arith.addf %38, %41 : vector<16x1xf32>
    %43 = math.rsqrt %42 : vector<16x1xf32>
    %44 = vector.broadcast %43 : vector<16x1xf32> to vector<16x32xf32>
    %45 = arith.mulf %40, %44 : vector<16x32xf32>
    %46 = vector.broadcast %25 : vector<1x32xf32> to vector<16x32xf32>
    %47 = arith.mulf %45, %46 : vector<16x32xf32>
    %48 = vector.broadcast %27 : vector<1x32xf32> to vector<16x32xf32>
    %49 = arith.addf %47, %48 : vector<16x32xf32>
    %cst_39 = arith.constant 0.000000e+00 : f32
    %50 = vector.broadcast %cst_39 : f32 to vector<16x32xf32>
    %c0_40 = arith.constant 0 : index
    %c0_41 = arith.constant 0 : index
    %c0_42 = arith.constant 0 : index
    %c0_43 = arith.constant 0 : index
    %51 = vector.load %arg15[%c0_40, %c0_41, %c0_42, %c0_43] : memref<2x4x32x8xf32, #tpu.memory_space<vmem>>, vector<1x1x32x8xf32>
    %52 = vector.shape_cast %51 : vector<1x1x32x8xf32> to vector<32x8xf32>
    %cst_44 = arith.constant dense<0.000000e+00> : vector<16x8xf32>
    %53 = tpu.matmul %49, %52, %cst_44 {dimension_numbers = #tpu.dot_dimension_numbers<[1], [0], [0], [1], [0, 0, 1, 1], [], []>} : vector<16x32xf32>, vector<32x8xf32>, vector<16x8xf32> -> vector<16x8xf32>
    %c0_45 = arith.constant 0 : index
    %c0_46 = arith.constant 0 : index
    %c0_47 = arith.constant 0 : index
    %c0_48 = arith.constant 0 : index
    %54 = vector.load %arg16[%c0_45, %c0_46, %c0_47, %c0_48] : memref<2x4x1x8xf32, #tpu.memory_space<vmem>>, vector<1x1x1x8xf32>
    %55 = vector.shape_cast %54 : vector<1x1x1x8xf32> to vector<1x8xf32>
    %56 = vector.broadcast %55 : vector<1x8xf32> to vector<16x8xf32>
    %57 = arith.addf %53, %56 : vector<16x8xf32>
    %cst_49 = arith.constant 0.353553385 : f32
    %58 = vector.broadcast %cst_49 : f32 to vector<16x8xf32>
    %59 = arith.mulf %57, %58 : vector<16x8xf32>
    %c0_50 = arith.constant 0 : index
    %c0_51 = arith.constant 0 : index
    %c0_52 = arith.constant 0 : index
    %c0_53 = arith.constant 0 : index
    %60 = vector.load %arg17[%c0_50, %c0_51, %c0_52, %c0_53] : memref<2x4x32x8xf32, #tpu.memory_space<vmem>>, vector<1x1x32x8xf32>
    %61 = vector.shape_cast %60 : vector<1x1x32x8xf32> to vector<32x8xf32>
    %cst_54 = arith.constant dense<0.000000e+00> : vector<16x8xf32>
    %62 = tpu.matmul %49, %61, %cst_54 {dimension_numbers = #tpu.dot_dimension_numbers<[1], [0], [0], [1], [0, 0, 1, 1], [], []>} : vector<16x32xf32>, vector<32x8xf32>, vector<16x8xf32> -> vector<16x8xf32>
    %c0_55 = arith.constant 0 : index
    %c0_56 = arith.constant 0 : index
    %c0_57 = arith.constant 0 : index
    %c0_58 = arith.constant 0 : index
    %63 = vector.load %arg18[%c0_55, %c0_56, %c0_57, %c0_58] : memref<2x4x32x8xf32, #tpu.memory_space<vmem>>, vector<1x1x32x8xf32>
    %64 = vector.shape_cast %63 : vector<1x1x32x8xf32> to vector<32x8xf32>
    %cst_59 = arith.constant dense<0.000000e+00> : vector<16x8xf32>
    %65 = tpu.matmul %49, %64, %cst_59 {dimension_numbers = #tpu.dot_dimension_numbers<[1], [0], [0], [1], [0, 0, 1, 1], [], []>} : vector<16x32xf32>, vector<32x8xf32>, vector<16x8xf32> -> vector<16x8xf32>
    %c0_60 = arith.constant 0 : index
    %c0_61 = arith.constant 0 : index
    %c0_62 = arith.constant 0 : index
    %c0_63 = arith.constant 0 : index
    %66 = vector.load %arg19[%c0_60, %c0_61, %c0_62, %c0_63] : memref<2x4x1x8xf32, #tpu.memory_space<vmem>>, vector<1x1x1x8xf32>
    %67 = vector.shape_cast %66 : vector<1x1x1x8xf32> to vector<1x8xf32>
    %68 = vector.broadcast %67 : vector<1x8xf32> to vector<16x8xf32>
    %69 = arith.addf %65, %68 : vector<16x8xf32>
    %cst_64 = arith.constant dense<0.000000e+00> : vector<16x16xf32>
    %70 = tpu.matmul %59, %62, %cst_64 {dimension_numbers = #tpu.dot_dimension_numbers<[1], [1], [0], [0], [0, 0, 1, 0], [], []>} : vector<16x8xf32>, vector<16x8xf32>, vector<16x16xf32> -> vector<16x16xf32>
    %71 = arith.addf %70, %0 : vector<16x16xf32>
    %cst_65 = arith.constant dense<0xFF800000> : vector<16xf32>
    %72 = vector.multi_reduction <maximumf>, %71, %cst_65 [1] : vector<16x16xf32> to vector<16xf32>
    %73 = vector.shape_cast %72 : vector<16xf32> to vector<16x1xf32>
    %74 = vector.broadcast %73 : vector<16x1xf32> to vector<16x16xf32>
    %75 = arith.subf %71, %74 : vector<16x16xf32>
    %76 = math.exp %75 : vector<16x16xf32>
    %cst_66 = arith.constant dense<0.000000e+00> : vector<16xf32>
    %77 = vector.multi_reduction <add>, %76, %cst_66 [1] : vector<16x16xf32> to vector<16xf32>
    %78 = vector.shape_cast %77 : vector<16xf32> to vector<16x1xf32>
    %79 = tpu.reciprocal %78 {approx = true} : vector<16x1xf32> -> vector<16x1xf32>
    %80 = vector.broadcast %79 : vector<16x1xf32> to vector<16x16xf32>
    %81 = arith.mulf %76, %80 : vector<16x16xf32>
    %cst_67 = arith.constant dense<0.000000e+00> : vector<16x8xf32>
    %82 = tpu.matmul %81, %69, %cst_67 {dimension_numbers = #tpu.dot_dimension_numbers<[1], [0], [0], [1], [0, 0, 1, 1], [], []>} : vector<16x16xf32>, vector<16x8xf32>, vector<16x8xf32> -> vector<16x8xf32>
    %c0_68 = arith.constant 0 : index
    %c0_69 = arith.constant 0 : index
    %c0_70 = arith.constant 0 : index
    %c0_71 = arith.constant 0 : index
    %83 = vector.load %arg20[%c0_68, %c0_69, %c0_70, %c0_71] : memref<2x4x8x32xf32, #tpu.memory_space<vmem>>, vector<1x1x8x32xf32>
    %84 = vector.shape_cast %83 : vector<1x1x8x32xf32> to vector<8x32xf32>
    %cst_72 = arith.constant dense<0.000000e+00> : vector<16x32xf32>
    %85 = tpu.matmul %82, %84, %cst_72 {dimension_numbers = #tpu.dot_dimension_numbers<[1], [0], [0], [1], [0, 0, 1, 1], [], []>} : vector<16x8xf32>, vector<8x32xf32>, vector<16x32xf32> -> vector<16x32xf32>
    %86 = arith.addf %50, %85 : vector<16x32xf32>
    %c0_73 = arith.constant 0 : index
    %c1 = arith.constant 1 : index
    %c0_74 = arith.constant 0 : index
    %c0_75 = arith.constant 0 : index
    %87 = vector.load %arg15[%c0_73, %c1, %c0_74, %c0_75] : memref<2x4x32x8xf32, #tpu.memory_space<vmem>>, vector<1x1x32x8xf32>
    %88 = vector.shape_cast %87 : vector<1x1x32x8xf32> to vector<32x8xf32>
    %cst_76 = arith.constant dense<0.000000e+00> : vector<16x8xf32>
    %89 = tpu.matmul %49, %88, %cst_76 {dimension_numbers = #tpu.dot_dimension_numbers<[1], [0], [0], [1], [0, 0, 1, 1], [], []>} : vector<16x32xf32>, vector<32x8xf32>, vector<16x8xf32> -> vector<16x8xf32>
    %c0_77 = arith.constant 0 : index
    %c1_78 = arith.constant 1 : index
    %c0_79 = arith.constant 0 : index
    %c0_80 = arith.constant 0 : index
    %90 = vector.load %arg16[%c0_77, %c1_78, %c0_79, %c0_80] : memref<2x4x1x8xf32, #tpu.memory_space<vmem>>, vector<1x1x1x8xf32>
    %91 = vector.shape_cast %90 : vector<1x1x1x8xf32> to vector<1x8xf32>
    %92 = vector.broadcast %91 : vector<1x8xf32> to vector<16x8xf32>
    %93 = arith.addf %89, %92 : vector<16x8xf32>
    %cst_81 = arith.constant 0.353553385 : f32
    %94 = vector.broadcast %cst_81 : f32 to vector<16x8xf32>
    %95 = arith.mulf %93, %94 : vector<16x8xf32>
    %c0_82 = arith.constant 0 : index
    %c1_83 = arith.constant 1 : index
    %c0_84 = arith.constant 0 : index
    %c0_85 = arith.constant 0 : index
    %96 = vector.load %arg17[%c0_82, %c1_83, %c0_84, %c0_85] : memref<2x4x32x8xf32, #tpu.memory_space<vmem>>, vector<1x1x32x8xf32>
    %97 = vector.shape_cast %96 : vector<1x1x32x8xf32> to vector<32x8xf32>
    %cst_86 = arith.constant dense<0.000000e+00> : vector<16x8xf32>
    %98 = tpu.matmul %49, %97, %cst_86 {dimension_numbers = #tpu.dot_dimension_numbers<[1], [0], [0], [1], [0, 0, 1, 1], [], []>} : vector<16x32xf32>, vector<32x8xf32>, vector<16x8xf32> -> vector<16x8xf32>
    %c0_87 = arith.constant 0 : index
    %c1_88 = arith.constant 1 : index
    %c0_89 = arith.constant 0 : index
    %c0_90 = arith.constant 0 : index
    %99 = vector.load %arg18[%c0_87, %c1_88, %c0_89, %c0_90] : memref<2x4x32x8xf32, #tpu.memory_space<vmem>>, vector<1x1x32x8xf32>
    %100 = vector.shape_cast %99 : vector<1x1x32x8xf32> to vector<32x8xf32>
    %cst_91 = arith.constant dense<0.000000e+00> : vector<16x8xf32>
    %101 = tpu.matmul %49, %100, %cst_91 {dimension_numbers = #tpu.dot_dimension_numbers<[1], [0], [0], [1], [0, 0, 1, 1], [], []>} : vector<16x32xf32>, vector<32x8xf32>, vector<16x8xf32> -> vector<16x8xf32>
    %c0_92 = arith.constant 0 : index
    %c1_93 = arith.constant 1 : index
    %c0_94 = arith.constant 0 : index
    %c0_95 = arith.constant 0 : index
    %102 = vector.load %arg19[%c0_92, %c1_93, %c0_94, %c0_95] : memref<2x4x1x8xf32, #tpu.memory_space<vmem>>, vector<1x1x1x8xf32>
    %103 = vector.shape_cast %102 : vector<1x1x1x8xf32> to vector<1x8xf32>
    %104 = vector.broadcast %103 : vector<1x8xf32> to vector<16x8xf32>
    %105 = arith.addf %101, %104 : vector<16x8xf32>
    %cst_96 = arith.constant dense<0.000000e+00> : vector<16x16xf32>
    %106 = tpu.matmul %95, %98, %cst_96 {dimension_numbers = #tpu.dot_dimension_numbers<[1], [1], [0], [0], [0, 0, 1, 0], [], []>} : vector<16x8xf32>, vector<16x8xf32>, vector<16x16xf32> -> vector<16x16xf32>
    %107 = arith.addf %106, %0 : vector<16x16xf32>
    %cst_97 = arith.constant dense<0xFF800000> : vector<16xf32>
    %108 = vector.multi_reduction <maximumf>, %107, %cst_97 [1] : vector<16x16xf32> to vector<16xf32>
    %109 = vector.shape_cast %108 : vector<16xf32> to vector<16x1xf32>
    %110 = vector.broadcast %109 : vector<16x1xf32> to vector<16x16xf32>
    %111 = arith.subf %107, %110 : vector<16x16xf32>
    %112 = math.exp %111 : vector<16x16xf32>
    %cst_98 = arith.constant dense<0.000000e+00> : vector<16xf32>
    %113 = vector.multi_reduction <add>, %112, %cst_98 [1] : vector<16x16xf32> to vector<16xf32>
    %114 = vector.shape_cast %113 : vector<16xf32> to vector<16x1xf32>
    %115 = tpu.reciprocal %114 {approx = true} : vector<16x1xf32> -> vector<16x1xf32>
    %116 = vector.broadcast %115 : vector<16x1xf32> to vector<16x16xf32>
    %117 = arith.mulf %112, %116 : vector<16x16xf32>
    %cst_99 = arith.constant dense<0.000000e+00> : vector<16x8xf32>
    %118 = tpu.matmul %117, %105, %cst_99 {dimension_numbers = #tpu.dot_dimension_numbers<[1], [0], [0], [1], [0, 0, 1, 1], [], []>} : vector<16x16xf32>, vector<16x8xf32>, vector<16x8xf32> -> vector<16x8xf32>
    %c0_100 = arith.constant 0 : index
    %c1_101 = arith.constant 1 : index
    %c0_102 = arith.constant 0 : index
    %c0_103 = arith.constant 0 : index
    %119 = vector.load %arg20[%c0_100, %c1_101, %c0_102, %c0_103] : memref<2x4x8x32xf32, #tpu.memory_space<vmem>>, vector<1x1x8x32xf32>
    %120 = vector.shape_cast %119 : vector<1x1x8x32xf32> to vector<8x32xf32>
    %cst_104 = arith.constant dense<0.000000e+00> : vector<16x32xf32>
    %121 = tpu.matmul %118, %120, %cst_104 {dimension_numbers = #tpu.dot_dimension_numbers<[1], [0], [0], [1], [0, 0, 1, 1], [], []>} : vector<16x8xf32>, vector<8x32xf32>, vector<16x32xf32> -> vector<16x32xf32>
    %122 = arith.addf %86, %121 : vector<16x32xf32>
    %c0_105 = arith.constant 0 : index
    %c2 = arith.constant 2 : index
    %c0_106 = arith.constant 0 : index
    %c0_107 = arith.constant 0 : index
    %123 = vector.load %arg15[%c0_105, %c2, %c0_106, %c0_107] : memref<2x4x32x8xf32, #tpu.memory_space<vmem>>, vector<1x1x32x8xf32>
    %124 = vector.shape_cast %123 : vector<1x1x32x8xf32> to vector<32x8xf32>
    %cst_108 = arith.constant dense<0.000000e+00> : vector<16x8xf32>
    %125 = tpu.matmul %49, %124, %cst_108 {dimension_numbers = #tpu.dot_dimension_numbers<[1], [0], [0], [1], [0, 0, 1, 1], [], []>} : vector<16x32xf32>, vector<32x8xf32>, vector<16x8xf32> -> vector<16x8xf32>
    %c0_109 = arith.constant 0 : index
    %c2_110 = arith.constant 2 : index
    %c0_111 = arith.constant 0 : index
    %c0_112 = arith.constant 0 : index
    %126 = vector.load %arg16[%c0_109, %c2_110, %c0_111, %c0_112] : memref<2x4x1x8xf32, #tpu.memory_space<vmem>>, vector<1x1x1x8xf32>
    %127 = vector.shape_cast %126 : vector<1x1x1x8xf32> to vector<1x8xf32>
    %128 = vector.broadcast %127 : vector<1x8xf32> to vector<16x8xf32>
    %129 = arith.addf %125, %128 : vector<16x8xf32>
    %cst_113 = arith.constant 0.353553385 : f32
    %130 = vector.broadcast %cst_113 : f32 to vector<16x8xf32>
    %131 = arith.mulf %129, %130 : vector<16x8xf32>
    %c0_114 = arith.constant 0 : index
    %c2_115 = arith.constant 2 : index
    %c0_116 = arith.constant 0 : index
    %c0_117 = arith.constant 0 : index
    %132 = vector.load %arg17[%c0_114, %c2_115, %c0_116, %c0_117] : memref<2x4x32x8xf32, #tpu.memory_space<vmem>>, vector<1x1x32x8xf32>
    %133 = vector.shape_cast %132 : vector<1x1x32x8xf32> to vector<32x8xf32>
    %cst_118 = arith.constant dense<0.000000e+00> : vector<16x8xf32>
    %134 = tpu.matmul %49, %133, %cst_118 {dimension_numbers = #tpu.dot_dimension_numbers<[1], [0], [0], [1], [0, 0, 1, 1], [], []>} : vector<16x32xf32>, vector<32x8xf32>, vector<16x8xf32> -> vector<16x8xf32>
    %c0_119 = arith.constant 0 : index
    %c2_120 = arith.constant 2 : index
    %c0_121 = arith.constant 0 : index
    %c0_122 = arith.constant 0 : index
    %135 = vector.load %arg18[%c0_119, %c2_120, %c0_121, %c0_122] : memref<2x4x32x8xf32, #tpu.memory_space<vmem>>, vector<1x1x32x8xf32>
    %136 = vector.shape_cast %135 : vector<1x1x32x8xf32> to vector<32x8xf32>
    %cst_123 = arith.constant dense<0.000000e+00> : vector<16x8xf32>
    %137 = tpu.matmul %49, %136, %cst_123 {dimension_numbers = #tpu.dot_dimension_numbers<[1], [0], [0], [1], [0, 0, 1, 1], [], []>} : vector<16x32xf32>, vector<32x8xf32>, vector<16x8xf32> -> vector<16x8xf32>
    %c0_124 = arith.constant 0 : index
    %c2_125 = arith.constant 2 : index
    %c0_126 = arith.constant 0 : index
    %c0_127 = arith.constant 0 : index
    %138 = vector.load %arg19[%c0_124, %c2_125, %c0_126, %c0_127] : memref<2x4x1x8xf32, #tpu.memory_space<vmem>>, vector<1x1x1x8xf32>
    %139 = vector.shape_cast %138 : vector<1x1x1x8xf32> to vector<1x8xf32>
    %140 = vector.broadcast %139 : vector<1x8xf32> to vector<16x8xf32>
    %141 = arith.addf %137, %140 : vector<16x8xf32>
    %cst_128 = arith.constant dense<0.000000e+00> : vector<16x16xf32>
    %142 = tpu.matmul %131, %134, %cst_128 {dimension_numbers = #tpu.dot_dimension_numbers<[1], [1], [0], [0], [0, 0, 1, 0], [], []>} : vector<16x8xf32>, vector<16x8xf32>, vector<16x16xf32> -> vector<16x16xf32>
    %143 = arith.addf %142, %0 : vector<16x16xf32>
    %cst_129 = arith.constant dense<0xFF800000> : vector<16xf32>
    %144 = vector.multi_reduction <maximumf>, %143, %cst_129 [1] : vector<16x16xf32> to vector<16xf32>
    %145 = vector.shape_cast %144 : vector<16xf32> to vector<16x1xf32>
    %146 = vector.broadcast %145 : vector<16x1xf32> to vector<16x16xf32>
    %147 = arith.subf %143, %146 : vector<16x16xf32>
    %148 = math.exp %147 : vector<16x16xf32>
    %cst_130 = arith.constant dense<0.000000e+00> : vector<16xf32>
    %149 = vector.multi_reduction <add>, %148, %cst_130 [1] : vector<16x16xf32> to vector<16xf32>
    %150 = vector.shape_cast %149 : vector<16xf32> to vector<16x1xf32>
    %151 = tpu.reciprocal %150 {approx = true} : vector<16x1xf32> -> vector<16x1xf32>
    %152 = vector.broadcast %151 : vector<16x1xf32> to vector<16x16xf32>
    %153 = arith.mulf %148, %152 : vector<16x16xf32>
    %cst_131 = arith.constant dense<0.000000e+00> : vector<16x8xf32>
    %154 = tpu.matmul %153, %141, %cst_131 {dimension_numbers = #tpu.dot_dimension_numbers<[1], [0], [0], [1], [0, 0, 1, 1], [], []>} : vector<16x16xf32>, vector<16x8xf32>, vector<16x8xf32> -> vector<16x8xf32>
    %c0_132 = arith.constant 0 : index
    %c2_133 = arith.constant 2 : index
    %c0_134 = arith.constant 0 : index
    %c0_135 = arith.constant 0 : index
    %155 = vector.load %arg20[%c0_132, %c2_133, %c0_134, %c0_135] : memref<2x4x8x32xf32, #tpu.memory_space<vmem>>, vector<1x1x8x32xf32>
    %156 = vector.shape_cast %155 : vector<1x1x8x32xf32> to vector<8x32xf32>
    %cst_136 = arith.constant dense<0.000000e+00> : vector<16x32xf32>
    %157 = tpu.matmul %154, %156, %cst_136 {dimension_numbers = #tpu.dot_dimension_numbers<[1], [0], [0], [1], [0, 0, 1, 1], [], []>} : vector<16x8xf32>, vector<8x32xf32>, vector<16x32xf32> -> vector<16x32xf32>
    %158 = arith.addf %122, %157 : vector<16x32xf32>
    %c0_137 = arith.constant 0 : index
    %c3 = arith.constant 3 : index
    %c0_138 = arith.constant 0 : index
    %c0_139 = arith.constant 0 : index
    %159 = vector.load %arg15[%c0_137, %c3, %c0_138, %c0_139] : memref<2x4x32x8xf32, #tpu.memory_space<vmem>>, vector<1x1x32x8xf32>
    %160 = vector.shape_cast %159 : vector<1x1x32x8xf32> to vector<32x8xf32>
    %cst_140 = arith.constant dense<0.000000e+00> : vector<16x8xf32>
    %161 = tpu.matmul %49, %160, %cst_140 {dimension_numbers = #tpu.dot_dimension_numbers<[1], [0], [0], [1], [0, 0, 1, 1], [], []>} : vector<16x32xf32>, vector<32x8xf32>, vector<16x8xf32> -> vector<16x8xf32>
    %c0_141 = arith.constant 0 : index
    %c3_142 = arith.constant 3 : index
    %c0_143 = arith.constant 0 : index
    %c0_144 = arith.constant 0 : index
    %162 = vector.load %arg16[%c0_141, %c3_142, %c0_143, %c0_144] : memref<2x4x1x8xf32, #tpu.memory_space<vmem>>, vector<1x1x1x8xf32>
    %163 = vector.shape_cast %162 : vector<1x1x1x8xf32> to vector<1x8xf32>
    %164 = vector.broadcast %163 : vector<1x8xf32> to vector<16x8xf32>
    %165 = arith.addf %161, %164 : vector<16x8xf32>
    %cst_145 = arith.constant 0.353553385 : f32
    %166 = vector.broadcast %cst_145 : f32 to vector<16x8xf32>
    %167 = arith.mulf %165, %166 : vector<16x8xf32>
    %c0_146 = arith.constant 0 : index
    %c3_147 = arith.constant 3 : index
    %c0_148 = arith.constant 0 : index
    %c0_149 = arith.constant 0 : index
    %168 = vector.load %arg17[%c0_146, %c3_147, %c0_148, %c0_149] : memref<2x4x32x8xf32, #tpu.memory_space<vmem>>, vector<1x1x32x8xf32>
    %169 = vector.shape_cast %168 : vector<1x1x32x8xf32> to vector<32x8xf32>
    %cst_150 = arith.constant dense<0.000000e+00> : vector<16x8xf32>
    %170 = tpu.matmul %49, %169, %cst_150 {dimension_numbers = #tpu.dot_dimension_numbers<[1], [0], [0], [1], [0, 0, 1, 1], [], []>} : vector<16x32xf32>, vector<32x8xf32>, vector<16x8xf32> -> vector<16x8xf32>
    %c0_151 = arith.constant 0 : index
    %c3_152 = arith.constant 3 : index
    %c0_153 = arith.constant 0 : index
    %c0_154 = arith.constant 0 : index
    %171 = vector.load %arg18[%c0_151, %c3_152, %c0_153, %c0_154] : memref<2x4x32x8xf32, #tpu.memory_space<vmem>>, vector<1x1x32x8xf32>
    %172 = vector.shape_cast %171 : vector<1x1x32x8xf32> to vector<32x8xf32>
    %cst_155 = arith.constant dense<0.000000e+00> : vector<16x8xf32>
    %173 = tpu.matmul %49, %172, %cst_155 {dimension_numbers = #tpu.dot_dimension_numbers<[1], [0], [0], [1], [0, 0, 1, 1], [], []>} : vector<16x32xf32>, vector<32x8xf32>, vector<16x8xf32> -> vector<16x8xf32>
    %c0_156 = arith.constant 0 : index
    %c3_157 = arith.constant 3 : index
    %c0_158 = arith.constant 0 : index
    %c0_159 = arith.constant 0 : index
    %174 = vector.load %arg19[%c0_156, %c3_157, %c0_158, %c0_159] : memref<2x4x1x8xf32, #tpu.memory_space<vmem>>, vector<1x1x1x8xf32>
    %175 = vector.shape_cast %174 : vector<1x1x1x8xf32> to vector<1x8xf32>
    %176 = vector.broadcast %175 : vector<1x8xf32> to vector<16x8xf32>
    %177 = arith.addf %173, %176 : vector<16x8xf32>
    %cst_160 = arith.constant dense<0.000000e+00> : vector<16x16xf32>
    %178 = tpu.matmul %167, %170, %cst_160 {dimension_numbers = #tpu.dot_dimension_numbers<[1], [1], [0], [0], [0, 0, 1, 0], [], []>} : vector<16x8xf32>, vector<16x8xf32>, vector<16x16xf32> -> vector<16x16xf32>
    %179 = arith.addf %178, %0 : vector<16x16xf32>
    %cst_161 = arith.constant dense<0xFF800000> : vector<16xf32>
    %180 = vector.multi_reduction <maximumf>, %179, %cst_161 [1] : vector<16x16xf32> to vector<16xf32>
    %181 = vector.shape_cast %180 : vector<16xf32> to vector<16x1xf32>
    %182 = vector.broadcast %181 : vector<16x1xf32> to vector<16x16xf32>
    %183 = arith.subf %179, %182 : vector<16x16xf32>
    %184 = math.exp %183 : vector<16x16xf32>
    %cst_162 = arith.constant dense<0.000000e+00> : vector<16xf32>
    %185 = vector.multi_reduction <add>, %184, %cst_162 [1] : vector<16x16xf32> to vector<16xf32>
    %186 = vector.shape_cast %185 : vector<16xf32> to vector<16x1xf32>
    %187 = tpu.reciprocal %186 {approx = true} : vector<16x1xf32> -> vector<16x1xf32>
    %188 = vector.broadcast %187 : vector<16x1xf32> to vector<16x16xf32>
    %189 = arith.mulf %184, %188 : vector<16x16xf32>
    %cst_163 = arith.constant dense<0.000000e+00> : vector<16x8xf32>
    %190 = tpu.matmul %189, %177, %cst_163 {dimension_numbers = #tpu.dot_dimension_numbers<[1], [0], [0], [1], [0, 0, 1, 1], [], []>} : vector<16x16xf32>, vector<16x8xf32>, vector<16x8xf32> -> vector<16x8xf32>
    %c0_164 = arith.constant 0 : index
    %c3_165 = arith.constant 3 : index
    %c0_166 = arith.constant 0 : index
    %c0_167 = arith.constant 0 : index
    %191 = vector.load %arg20[%c0_164, %c3_165, %c0_166, %c0_167] : memref<2x4x8x32xf32, #tpu.memory_space<vmem>>, vector<1x1x8x32xf32>
    %192 = vector.shape_cast %191 : vector<1x1x8x32xf32> to vector<8x32xf32>
    %cst_168 = arith.constant dense<0.000000e+00> : vector<16x32xf32>
    %193 = tpu.matmul %190, %192, %cst_168 {dimension_numbers = #tpu.dot_dimension_numbers<[1], [0], [0], [1], [0, 0, 1, 1], [], []>} : vector<16x8xf32>, vector<8x32xf32>, vector<16x32xf32> -> vector<16x32xf32>
    %194 = arith.addf %158, %193 : vector<16x32xf32>
    %195 = arith.addf %23, %194 : vector<16x32xf32>
    %c0_169 = arith.constant 0 : index
    %c0_170 = arith.constant 0 : index
    %c0_171 = arith.constant 0 : index
    %196 = vector.load %arg21[%c0_169, %c0_170, %c0_171] : memref<2x1x32xf32, #tpu.memory_space<vmem>>, vector<1x1x32xf32>
    %197 = vector.shape_cast %196 : vector<1x1x32xf32> to vector<1x32xf32>
    %198 = vector.broadcast %197 : vector<1x32xf32> to vector<16x32xf32>
    %199 = arith.addf %195, %198 : vector<16x32xf32>
    %c0_172 = arith.constant 0 : index
    %c0_173 = arith.constant 0 : index
    %c0_174 = arith.constant 0 : index
    %200 = vector.load %arg22[%c0_172, %c0_173, %c0_174] : memref<2x1x32xf32, #tpu.memory_space<vmem>>, vector<1x1x32xf32>
    %201 = vector.shape_cast %200 : vector<1x1x32xf32> to vector<1x32xf32>
    %c0_175 = arith.constant 0 : index
    %c0_176 = arith.constant 0 : index
    %c0_177 = arith.constant 0 : index
    %202 = vector.load %arg23[%c0_175, %c0_176, %c0_177] : memref<2x1x32xf32, #tpu.memory_space<vmem>>, vector<1x1x32xf32>
    %203 = vector.shape_cast %202 : vector<1x1x32xf32> to vector<1x32xf32>
    %cst_178 = arith.constant dense<0.000000e+00> : vector<16xf32>
    %204 = vector.multi_reduction <add>, %199, %cst_178 [1] : vector<16x32xf32> to vector<16xf32>
    %205 = vector.shape_cast %204 : vector<16xf32> to vector<16x1xf32>
    %cst_179 = arith.constant 3.200000e+01 : f32
    %206 = vector.broadcast %cst_179 : f32 to vector<16x1xf32>
    %207 = arith.divf %205, %206 : vector<16x1xf32>
    %208 = vector.broadcast %207 : vector<16x1xf32> to vector<16x32xf32>
    %209 = arith.subf %199, %208 : vector<16x32xf32>
    %210 = arith.mulf %209, %209 : vector<16x32xf32>
    %cst_180 = arith.constant dense<0.000000e+00> : vector<16xf32>
    %211 = vector.multi_reduction <add>, %210, %cst_180 [1] : vector<16x32xf32> to vector<16xf32>
    %212 = vector.shape_cast %211 : vector<16xf32> to vector<16x1xf32>
    %cst_181 = arith.constant 3.200000e+01 : f32
    %213 = vector.broadcast %cst_181 : f32 to vector<16x1xf32>
    %214 = arith.divf %212, %213 : vector<16x1xf32>
    %215 = vector.broadcast %207 : vector<16x1xf32> to vector<16x32xf32>
    %216 = arith.subf %199, %215 : vector<16x32xf32>
    %cst_182 = arith.constant 9.99999974E-6 : f32
    %217 = vector.broadcast %cst_182 : f32 to vector<16x1xf32>
    %218 = arith.addf %214, %217 : vector<16x1xf32>
    %219 = math.rsqrt %218 : vector<16x1xf32>
    %220 = vector.broadcast %219 : vector<16x1xf32> to vector<16x32xf32>
    %221 = arith.mulf %216, %220 : vector<16x32xf32>
    %222 = vector.broadcast %201 : vector<1x32xf32> to vector<16x32xf32>
    %223 = arith.mulf %221, %222 : vector<16x32xf32>
    %224 = vector.broadcast %203 : vector<1x32xf32> to vector<16x32xf32>
    %225 = arith.addf %223, %224 : vector<16x32xf32>
    %c0_183 = arith.constant 0 : index
    %c0_184 = arith.constant 0 : index
    %c0_185 = arith.constant 0 : index
    %226 = vector.load %arg24[%c0_183, %c0_184, %c0_185] : memref<2x32x32xf32, #tpu.memory_space<vmem>>, vector<1x32x32xf32>
    %227 = vector.shape_cast %226 : vector<1x32x32xf32> to vector<32x32xf32>
    %cst_186 = arith.constant dense<0.000000e+00> : vector<16x32xf32>
    %228 = tpu.matmul %225, %227, %cst_186 {dimension_numbers = #tpu.dot_dimension_numbers<[1], [0], [0], [1], [0, 0, 1, 1], [], []>} : vector<16x32xf32>, vector<32x32xf32>, vector<16x32xf32> -> vector<16x32xf32>
    %c0_187 = arith.constant 0 : index
    %c0_188 = arith.constant 0 : index
    %c0_189 = arith.constant 0 : index
    %229 = vector.load %arg25[%c0_187, %c0_188, %c0_189] : memref<2x1x32xf32, #tpu.memory_space<vmem>>, vector<1x1x32xf32>
    %230 = vector.shape_cast %229 : vector<1x1x32xf32> to vector<1x32xf32>
    %231 = vector.broadcast %230 : vector<1x32xf32> to vector<16x32xf32>
    %232 = arith.addf %228, %231 : vector<16x32xf32>
    %cst_190 = arith.constant 0.000000e+00 : f32
    %233 = vector.broadcast %cst_190 : f32 to vector<16x32xf32>
    %234 = arith.maximumf %232, %233 : vector<16x32xf32>
    %c0_191 = arith.constant 0 : index
    %c0_192 = arith.constant 0 : index
    %c0_193 = arith.constant 0 : index
    %235 = vector.load %arg26[%c0_191, %c0_192, %c0_193] : memref<2x32x32xf32, #tpu.memory_space<vmem>>, vector<1x32x32xf32>
    %236 = vector.shape_cast %235 : vector<1x32x32xf32> to vector<32x32xf32>
    %cst_194 = arith.constant dense<0.000000e+00> : vector<16x32xf32>
    %237 = tpu.matmul %234, %236, %cst_194 {dimension_numbers = #tpu.dot_dimension_numbers<[1], [0], [0], [1], [0, 0, 1, 1], [], []>} : vector<16x32xf32>, vector<32x32xf32>, vector<16x32xf32> -> vector<16x32xf32>
    %238 = arith.addf %199, %237 : vector<16x32xf32>
    %c0_195 = arith.constant 0 : index
    %c0_196 = arith.constant 0 : index
    %c0_197 = arith.constant 0 : index
    %239 = vector.load %arg27[%c0_195, %c0_196, %c0_197] : memref<2x1x32xf32, #tpu.memory_space<vmem>>, vector<1x1x32xf32>
    %240 = vector.shape_cast %239 : vector<1x1x32xf32> to vector<1x32xf32>
    %241 = vector.broadcast %240 : vector<1x32xf32> to vector<16x32xf32>
    %242 = arith.addf %238, %241 : vector<16x32xf32>
    %c1_198 = arith.constant 1 : index
    %c0_199 = arith.constant 0 : index
    %c0_200 = arith.constant 0 : index
    %243 = vector.load %arg13[%c1_198, %c0_199, %c0_200] : memref<2x1x32xf32, #tpu.memory_space<vmem>>, vector<1x1x32xf32>
    %244 = vector.shape_cast %243 : vector<1x1x32xf32> to vector<1x32xf32>
    %c1_201 = arith.constant 1 : index
    %c0_202 = arith.constant 0 : index
    %c0_203 = arith.constant 0 : index
    %245 = vector.load %arg14[%c1_201, %c0_202, %c0_203] : memref<2x1x32xf32, #tpu.memory_space<vmem>>, vector<1x1x32xf32>
    %246 = vector.shape_cast %245 : vector<1x1x32xf32> to vector<1x32xf32>
    %cst_204 = arith.constant dense<0.000000e+00> : vector<16xf32>
    %247 = vector.multi_reduction <add>, %242, %cst_204 [1] : vector<16x32xf32> to vector<16xf32>
    %248 = vector.shape_cast %247 : vector<16xf32> to vector<16x1xf32>
    %cst_205 = arith.constant 3.200000e+01 : f32
    %249 = vector.broadcast %cst_205 : f32 to vector<16x1xf32>
    %250 = arith.divf %248, %249 : vector<16x1xf32>
    %251 = vector.broadcast %250 : vector<16x1xf32> to vector<16x32xf32>
    %252 = arith.subf %242, %251 : vector<16x32xf32>
    %253 = arith.mulf %252, %252 : vector<16x32xf32>
    %cst_206 = arith.constant dense<0.000000e+00> : vector<16xf32>
    %254 = vector.multi_reduction <add>, %253, %cst_206 [1] : vector<16x32xf32> to vector<16xf32>
    %255 = vector.shape_cast %254 : vector<16xf32> to vector<16x1xf32>
    %cst_207 = arith.constant 3.200000e+01 : f32
    %256 = vector.broadcast %cst_207 : f32 to vector<16x1xf32>
    %257 = arith.divf %255, %256 : vector<16x1xf32>
    %258 = vector.broadcast %250 : vector<16x1xf32> to vector<16x32xf32>
    %259 = arith.subf %242, %258 : vector<16x32xf32>
    %cst_208 = arith.constant 9.99999974E-6 : f32
    %260 = vector.broadcast %cst_208 : f32 to vector<16x1xf32>
    %261 = arith.addf %257, %260 : vector<16x1xf32>
    %262 = math.rsqrt %261 : vector<16x1xf32>
    %263 = vector.broadcast %262 : vector<16x1xf32> to vector<16x32xf32>
    %264 = arith.mulf %259, %263 : vector<16x32xf32>
    %265 = vector.broadcast %244 : vector<1x32xf32> to vector<16x32xf32>
    %266 = arith.mulf %264, %265 : vector<16x32xf32>
    %267 = vector.broadcast %246 : vector<1x32xf32> to vector<16x32xf32>
    %268 = arith.addf %266, %267 : vector<16x32xf32>
    %cst_209 = arith.constant 0.000000e+00 : f32
    %269 = vector.broadcast %cst_209 : f32 to vector<16x32xf32>
    %c1_210 = arith.constant 1 : index
    %c0_211 = arith.constant 0 : index
    %c0_212 = arith.constant 0 : index
    %c0_213 = arith.constant 0 : index
    %270 = vector.load %arg15[%c1_210, %c0_211, %c0_212, %c0_213] : memref<2x4x32x8xf32, #tpu.memory_space<vmem>>, vector<1x1x32x8xf32>
    %271 = vector.shape_cast %270 : vector<1x1x32x8xf32> to vector<32x8xf32>
    %cst_214 = arith.constant dense<0.000000e+00> : vector<16x8xf32>
    %272 = tpu.matmul %268, %271, %cst_214 {dimension_numbers = #tpu.dot_dimension_numbers<[1], [0], [0], [1], [0, 0, 1, 1], [], []>} : vector<16x32xf32>, vector<32x8xf32>, vector<16x8xf32> -> vector<16x8xf32>
    %c1_215 = arith.constant 1 : index
    %c0_216 = arith.constant 0 : index
    %c0_217 = arith.constant 0 : index
    %c0_218 = arith.constant 0 : index
    %273 = vector.load %arg16[%c1_215, %c0_216, %c0_217, %c0_218] : memref<2x4x1x8xf32, #tpu.memory_space<vmem>>, vector<1x1x1x8xf32>
    %274 = vector.shape_cast %273 : vector<1x1x1x8xf32> to vector<1x8xf32>
    %275 = vector.broadcast %274 : vector<1x8xf32> to vector<16x8xf32>
    %276 = arith.addf %272, %275 : vector<16x8xf32>
    %cst_219 = arith.constant 0.353553385 : f32
    %277 = vector.broadcast %cst_219 : f32 to vector<16x8xf32>
    %278 = arith.mulf %276, %277 : vector<16x8xf32>
    %c1_220 = arith.constant 1 : index
    %c0_221 = arith.constant 0 : index
    %c0_222 = arith.constant 0 : index
    %c0_223 = arith.constant 0 : index
    %279 = vector.load %arg17[%c1_220, %c0_221, %c0_222, %c0_223] : memref<2x4x32x8xf32, #tpu.memory_space<vmem>>, vector<1x1x32x8xf32>
    %280 = vector.shape_cast %279 : vector<1x1x32x8xf32> to vector<32x8xf32>
    %cst_224 = arith.constant dense<0.000000e+00> : vector<16x8xf32>
    %281 = tpu.matmul %268, %280, %cst_224 {dimension_numbers = #tpu.dot_dimension_numbers<[1], [0], [0], [1], [0, 0, 1, 1], [], []>} : vector<16x32xf32>, vector<32x8xf32>, vector<16x8xf32> -> vector<16x8xf32>
    %c1_225 = arith.constant 1 : index
    %c0_226 = arith.constant 0 : index
    %c0_227 = arith.constant 0 : index
    %c0_228 = arith.constant 0 : index
    %282 = vector.load %arg18[%c1_225, %c0_226, %c0_227, %c0_228] : memref<2x4x32x8xf32, #tpu.memory_space<vmem>>, vector<1x1x32x8xf32>
    %283 = vector.shape_cast %282 : vector<1x1x32x8xf32> to vector<32x8xf32>
    %cst_229 = arith.constant dense<0.000000e+00> : vector<16x8xf32>
    %284 = tpu.matmul %268, %283, %cst_229 {dimension_numbers = #tpu.dot_dimension_numbers<[1], [0], [0], [1], [0, 0, 1, 1], [], []>} : vector<16x32xf32>, vector<32x8xf32>, vector<16x8xf32> -> vector<16x8xf32>
    %c1_230 = arith.constant 1 : index
    %c0_231 = arith.constant 0 : index
    %c0_232 = arith.constant 0 : index
    %c0_233 = arith.constant 0 : index
    %285 = vector.load %arg19[%c1_230, %c0_231, %c0_232, %c0_233] : memref<2x4x1x8xf32, #tpu.memory_space<vmem>>, vector<1x1x1x8xf32>
    %286 = vector.shape_cast %285 : vector<1x1x1x8xf32> to vector<1x8xf32>
    %287 = vector.broadcast %286 : vector<1x8xf32> to vector<16x8xf32>
    %288 = arith.addf %284, %287 : vector<16x8xf32>
    %cst_234 = arith.constant dense<0.000000e+00> : vector<16x16xf32>
    %289 = tpu.matmul %278, %281, %cst_234 {dimension_numbers = #tpu.dot_dimension_numbers<[1], [1], [0], [0], [0, 0, 1, 0], [], []>} : vector<16x8xf32>, vector<16x8xf32>, vector<16x16xf32> -> vector<16x16xf32>
    %290 = arith.addf %289, %0 : vector<16x16xf32>
    %cst_235 = arith.constant dense<0xFF800000> : vector<16xf32>
    %291 = vector.multi_reduction <maximumf>, %290, %cst_235 [1] : vector<16x16xf32> to vector<16xf32>
    %292 = vector.shape_cast %291 : vector<16xf32> to vector<16x1xf32>
    %293 = vector.broadcast %292 : vector<16x1xf32> to vector<16x16xf32>
    %294 = arith.subf %290, %293 : vector<16x16xf32>
    %295 = math.exp %294 : vector<16x16xf32>
    %cst_236 = arith.constant dense<0.000000e+00> : vector<16xf32>
    %296 = vector.multi_reduction <add>, %295, %cst_236 [1] : vector<16x16xf32> to vector<16xf32>
    %297 = vector.shape_cast %296 : vector<16xf32> to vector<16x1xf32>
    %298 = tpu.reciprocal %297 {approx = true} : vector<16x1xf32> -> vector<16x1xf32>
    %299 = vector.broadcast %298 : vector<16x1xf32> to vector<16x16xf32>
    %300 = arith.mulf %295, %299 : vector<16x16xf32>
    %cst_237 = arith.constant dense<0.000000e+00> : vector<16x8xf32>
    %301 = tpu.matmul %300, %288, %cst_237 {dimension_numbers = #tpu.dot_dimension_numbers<[1], [0], [0], [1], [0, 0, 1, 1], [], []>} : vector<16x16xf32>, vector<16x8xf32>, vector<16x8xf32> -> vector<16x8xf32>
    %c1_238 = arith.constant 1 : index
    %c0_239 = arith.constant 0 : index
    %c0_240 = arith.constant 0 : index
    %c0_241 = arith.constant 0 : index
    %302 = vector.load %arg20[%c1_238, %c0_239, %c0_240, %c0_241] : memref<2x4x8x32xf32, #tpu.memory_space<vmem>>, vector<1x1x8x32xf32>
    %303 = vector.shape_cast %302 : vector<1x1x8x32xf32> to vector<8x32xf32>
    %cst_242 = arith.constant dense<0.000000e+00> : vector<16x32xf32>
    %304 = tpu.matmul %301, %303, %cst_242 {dimension_numbers = #tpu.dot_dimension_numbers<[1], [0], [0], [1], [0, 0, 1, 1], [], []>} : vector<16x8xf32>, vector<8x32xf32>, vector<16x32xf32> -> vector<16x32xf32>
    %305 = arith.addf %269, %304 : vector<16x32xf32>
    %c1_243 = arith.constant 1 : index
    %c1_244 = arith.constant 1 : index
    %c0_245 = arith.constant 0 : index
    %c0_246 = arith.constant 0 : index
    %306 = vector.load %arg15[%c1_243, %c1_244, %c0_245, %c0_246] : memref<2x4x32x8xf32, #tpu.memory_space<vmem>>, vector<1x1x32x8xf32>
    %307 = vector.shape_cast %306 : vector<1x1x32x8xf32> to vector<32x8xf32>
    %cst_247 = arith.constant dense<0.000000e+00> : vector<16x8xf32>
    %308 = tpu.matmul %268, %307, %cst_247 {dimension_numbers = #tpu.dot_dimension_numbers<[1], [0], [0], [1], [0, 0, 1, 1], [], []>} : vector<16x32xf32>, vector<32x8xf32>, vector<16x8xf32> -> vector<16x8xf32>
    %c1_248 = arith.constant 1 : index
    %c1_249 = arith.constant 1 : index
    %c0_250 = arith.constant 0 : index
    %c0_251 = arith.constant 0 : index
    %309 = vector.load %arg16[%c1_248, %c1_249, %c0_250, %c0_251] : memref<2x4x1x8xf32, #tpu.memory_space<vmem>>, vector<1x1x1x8xf32>
    %310 = vector.shape_cast %309 : vector<1x1x1x8xf32> to vector<1x8xf32>
    %311 = vector.broadcast %310 : vector<1x8xf32> to vector<16x8xf32>
    %312 = arith.addf %308, %311 : vector<16x8xf32>
    %cst_252 = arith.constant 0.353553385 : f32
    %313 = vector.broadcast %cst_252 : f32 to vector<16x8xf32>
    %314 = arith.mulf %312, %313 : vector<16x8xf32>
    %c1_253 = arith.constant 1 : index
    %c1_254 = arith.constant 1 : index
    %c0_255 = arith.constant 0 : index
    %c0_256 = arith.constant 0 : index
    %315 = vector.load %arg17[%c1_253, %c1_254, %c0_255, %c0_256] : memref<2x4x32x8xf32, #tpu.memory_space<vmem>>, vector<1x1x32x8xf32>
    %316 = vector.shape_cast %315 : vector<1x1x32x8xf32> to vector<32x8xf32>
    %cst_257 = arith.constant dense<0.000000e+00> : vector<16x8xf32>
    %317 = tpu.matmul %268, %316, %cst_257 {dimension_numbers = #tpu.dot_dimension_numbers<[1], [0], [0], [1], [0, 0, 1, 1], [], []>} : vector<16x32xf32>, vector<32x8xf32>, vector<16x8xf32> -> vector<16x8xf32>
    %c1_258 = arith.constant 1 : index
    %c1_259 = arith.constant 1 : index
    %c0_260 = arith.constant 0 : index
    %c0_261 = arith.constant 0 : index
    %318 = vector.load %arg18[%c1_258, %c1_259, %c0_260, %c0_261] : memref<2x4x32x8xf32, #tpu.memory_space<vmem>>, vector<1x1x32x8xf32>
    %319 = vector.shape_cast %318 : vector<1x1x32x8xf32> to vector<32x8xf32>
    %cst_262 = arith.constant dense<0.000000e+00> : vector<16x8xf32>
    %320 = tpu.matmul %268, %319, %cst_262 {dimension_numbers = #tpu.dot_dimension_numbers<[1], [0], [0], [1], [0, 0, 1, 1], [], []>} : vector<16x32xf32>, vector<32x8xf32>, vector<16x8xf32> -> vector<16x8xf32>
    %c1_263 = arith.constant 1 : index
    %c1_264 = arith.constant 1 : index
    %c0_265 = arith.constant 0 : index
    %c0_266 = arith.constant 0 : index
    %321 = vector.load %arg19[%c1_263, %c1_264, %c0_265, %c0_266] : memref<2x4x1x8xf32, #tpu.memory_space<vmem>>, vector<1x1x1x8xf32>
    %322 = vector.shape_cast %321 : vector<1x1x1x8xf32> to vector<1x8xf32>
    %323 = vector.broadcast %322 : vector<1x8xf32> to vector<16x8xf32>
    %324 = arith.addf %320, %323 : vector<16x8xf32>
    %cst_267 = arith.constant dense<0.000000e+00> : vector<16x16xf32>
    %325 = tpu.matmul %314, %317, %cst_267 {dimension_numbers = #tpu.dot_dimension_numbers<[1], [1], [0], [0], [0, 0, 1, 0], [], []>} : vector<16x8xf32>, vector<16x8xf32>, vector<16x16xf32> -> vector<16x16xf32>
    %326 = arith.addf %325, %0 : vector<16x16xf32>
    %cst_268 = arith.constant dense<0xFF800000> : vector<16xf32>
    %327 = vector.multi_reduction <maximumf>, %326, %cst_268 [1] : vector<16x16xf32> to vector<16xf32>
    %328 = vector.shape_cast %327 : vector<16xf32> to vector<16x1xf32>
    %329 = vector.broadcast %328 : vector<16x1xf32> to vector<16x16xf32>
    %330 = arith.subf %326, %329 : vector<16x16xf32>
    %331 = math.exp %330 : vector<16x16xf32>
    %cst_269 = arith.constant dense<0.000000e+00> : vector<16xf32>
    %332 = vector.multi_reduction <add>, %331, %cst_269 [1] : vector<16x16xf32> to vector<16xf32>
    %333 = vector.shape_cast %332 : vector<16xf32> to vector<16x1xf32>
    %334 = tpu.reciprocal %333 {approx = true} : vector<16x1xf32> -> vector<16x1xf32>
    %335 = vector.broadcast %334 : vector<16x1xf32> to vector<16x16xf32>
    %336 = arith.mulf %331, %335 : vector<16x16xf32>
    %cst_270 = arith.constant dense<0.000000e+00> : vector<16x8xf32>
    %337 = tpu.matmul %336, %324, %cst_270 {dimension_numbers = #tpu.dot_dimension_numbers<[1], [0], [0], [1], [0, 0, 1, 1], [], []>} : vector<16x16xf32>, vector<16x8xf32>, vector<16x8xf32> -> vector<16x8xf32>
    %c1_271 = arith.constant 1 : index
    %c1_272 = arith.constant 1 : index
    %c0_273 = arith.constant 0 : index
    %c0_274 = arith.constant 0 : index
    %338 = vector.load %arg20[%c1_271, %c1_272, %c0_273, %c0_274] : memref<2x4x8x32xf32, #tpu.memory_space<vmem>>, vector<1x1x8x32xf32>
    %339 = vector.shape_cast %338 : vector<1x1x8x32xf32> to vector<8x32xf32>
    %cst_275 = arith.constant dense<0.000000e+00> : vector<16x32xf32>
    %340 = tpu.matmul %337, %339, %cst_275 {dimension_numbers = #tpu.dot_dimension_numbers<[1], [0], [0], [1], [0, 0, 1, 1], [], []>} : vector<16x8xf32>, vector<8x32xf32>, vector<16x32xf32> -> vector<16x32xf32>
    %341 = arith.addf %305, %340 : vector<16x32xf32>
    %c1_276 = arith.constant 1 : index
    %c2_277 = arith.constant 2 : index
    %c0_278 = arith.constant 0 : index
    %c0_279 = arith.constant 0 : index
    %342 = vector.load %arg15[%c1_276, %c2_277, %c0_278, %c0_279] : memref<2x4x32x8xf32, #tpu.memory_space<vmem>>, vector<1x1x32x8xf32>
    %343 = vector.shape_cast %342 : vector<1x1x32x8xf32> to vector<32x8xf32>
    %cst_280 = arith.constant dense<0.000000e+00> : vector<16x8xf32>
    %344 = tpu.matmul %268, %343, %cst_280 {dimension_numbers = #tpu.dot_dimension_numbers<[1], [0], [0], [1], [0, 0, 1, 1], [], []>} : vector<16x32xf32>, vector<32x8xf32>, vector<16x8xf32> -> vector<16x8xf32>
    %c1_281 = arith.constant 1 : index
    %c2_282 = arith.constant 2 : index
    %c0_283 = arith.constant 0 : index
    %c0_284 = arith.constant 0 : index
    %345 = vector.load %arg16[%c1_281, %c2_282, %c0_283, %c0_284] : memref<2x4x1x8xf32, #tpu.memory_space<vmem>>, vector<1x1x1x8xf32>
    %346 = vector.shape_cast %345 : vector<1x1x1x8xf32> to vector<1x8xf32>
    %347 = vector.broadcast %346 : vector<1x8xf32> to vector<16x8xf32>
    %348 = arith.addf %344, %347 : vector<16x8xf32>
    %cst_285 = arith.constant 0.353553385 : f32
    %349 = vector.broadcast %cst_285 : f32 to vector<16x8xf32>
    %350 = arith.mulf %348, %349 : vector<16x8xf32>
    %c1_286 = arith.constant 1 : index
    %c2_287 = arith.constant 2 : index
    %c0_288 = arith.constant 0 : index
    %c0_289 = arith.constant 0 : index
    %351 = vector.load %arg17[%c1_286, %c2_287, %c0_288, %c0_289] : memref<2x4x32x8xf32, #tpu.memory_space<vmem>>, vector<1x1x32x8xf32>
    %352 = vector.shape_cast %351 : vector<1x1x32x8xf32> to vector<32x8xf32>
    %cst_290 = arith.constant dense<0.000000e+00> : vector<16x8xf32>
    %353 = tpu.matmul %268, %352, %cst_290 {dimension_numbers = #tpu.dot_dimension_numbers<[1], [0], [0], [1], [0, 0, 1, 1], [], []>} : vector<16x32xf32>, vector<32x8xf32>, vector<16x8xf32> -> vector<16x8xf32>
    %c1_291 = arith.constant 1 : index
    %c2_292 = arith.constant 2 : index
    %c0_293 = arith.constant 0 : index
    %c0_294 = arith.constant 0 : index
    %354 = vector.load %arg18[%c1_291, %c2_292, %c0_293, %c0_294] : memref<2x4x32x8xf32, #tpu.memory_space<vmem>>, vector<1x1x32x8xf32>
    %355 = vector.shape_cast %354 : vector<1x1x32x8xf32> to vector<32x8xf32>
    %cst_295 = arith.constant dense<0.000000e+00> : vector<16x8xf32>
    %356 = tpu.matmul %268, %355, %cst_295 {dimension_numbers = #tpu.dot_dimension_numbers<[1], [0], [0], [1], [0, 0, 1, 1], [], []>} : vector<16x32xf32>, vector<32x8xf32>, vector<16x8xf32> -> vector<16x8xf32>
    %c1_296 = arith.constant 1 : index
    %c2_297 = arith.constant 2 : index
    %c0_298 = arith.constant 0 : index
    %c0_299 = arith.constant 0 : index
    %357 = vector.load %arg19[%c1_296, %c2_297, %c0_298, %c0_299] : memref<2x4x1x8xf32, #tpu.memory_space<vmem>>, vector<1x1x1x8xf32>
    %358 = vector.shape_cast %357 : vector<1x1x1x8xf32> to vector<1x8xf32>
    %359 = vector.broadcast %358 : vector<1x8xf32> to vector<16x8xf32>
    %360 = arith.addf %356, %359 : vector<16x8xf32>
    %cst_300 = arith.constant dense<0.000000e+00> : vector<16x16xf32>
    %361 = tpu.matmul %350, %353, %cst_300 {dimension_numbers = #tpu.dot_dimension_numbers<[1], [1], [0], [0], [0, 0, 1, 0], [], []>} : vector<16x8xf32>, vector<16x8xf32>, vector<16x16xf32> -> vector<16x16xf32>
    %362 = arith.addf %361, %0 : vector<16x16xf32>
    %cst_301 = arith.constant dense<0xFF800000> : vector<16xf32>
    %363 = vector.multi_reduction <maximumf>, %362, %cst_301 [1] : vector<16x16xf32> to vector<16xf32>
    %364 = vector.shape_cast %363 : vector<16xf32> to vector<16x1xf32>
    %365 = vector.broadcast %364 : vector<16x1xf32> to vector<16x16xf32>
    %366 = arith.subf %362, %365 : vector<16x16xf32>
    %367 = math.exp %366 : vector<16x16xf32>
    %cst_302 = arith.constant dense<0.000000e+00> : vector<16xf32>
    %368 = vector.multi_reduction <add>, %367, %cst_302 [1] : vector<16x16xf32> to vector<16xf32>
    %369 = vector.shape_cast %368 : vector<16xf32> to vector<16x1xf32>
    %370 = tpu.reciprocal %369 {approx = true} : vector<16x1xf32> -> vector<16x1xf32>
    %371 = vector.broadcast %370 : vector<16x1xf32> to vector<16x16xf32>
    %372 = arith.mulf %367, %371 : vector<16x16xf32>
    %cst_303 = arith.constant dense<0.000000e+00> : vector<16x8xf32>
    %373 = tpu.matmul %372, %360, %cst_303 {dimension_numbers = #tpu.dot_dimension_numbers<[1], [0], [0], [1], [0, 0, 1, 1], [], []>} : vector<16x16xf32>, vector<16x8xf32>, vector<16x8xf32> -> vector<16x8xf32>
    %c1_304 = arith.constant 1 : index
    %c2_305 = arith.constant 2 : index
    %c0_306 = arith.constant 0 : index
    %c0_307 = arith.constant 0 : index
    %374 = vector.load %arg20[%c1_304, %c2_305, %c0_306, %c0_307] : memref<2x4x8x32xf32, #tpu.memory_space<vmem>>, vector<1x1x8x32xf32>
    %375 = vector.shape_cast %374 : vector<1x1x8x32xf32> to vector<8x32xf32>
    %cst_308 = arith.constant dense<0.000000e+00> : vector<16x32xf32>
    %376 = tpu.matmul %373, %375, %cst_308 {dimension_numbers = #tpu.dot_dimension_numbers<[1], [0], [0], [1], [0, 0, 1, 1], [], []>} : vector<16x8xf32>, vector<8x32xf32>, vector<16x32xf32> -> vector<16x32xf32>
    %377 = arith.addf %341, %376 : vector<16x32xf32>
    %c1_309 = arith.constant 1 : index
    %c3_310 = arith.constant 3 : index
    %c0_311 = arith.constant 0 : index
    %c0_312 = arith.constant 0 : index
    %378 = vector.load %arg15[%c1_309, %c3_310, %c0_311, %c0_312] : memref<2x4x32x8xf32, #tpu.memory_space<vmem>>, vector<1x1x32x8xf32>
    %379 = vector.shape_cast %378 : vector<1x1x32x8xf32> to vector<32x8xf32>
    %cst_313 = arith.constant dense<0.000000e+00> : vector<16x8xf32>
    %380 = tpu.matmul %268, %379, %cst_313 {dimension_numbers = #tpu.dot_dimension_numbers<[1], [0], [0], [1], [0, 0, 1, 1], [], []>} : vector<16x32xf32>, vector<32x8xf32>, vector<16x8xf32> -> vector<16x8xf32>
    %c1_314 = arith.constant 1 : index
    %c3_315 = arith.constant 3 : index
    %c0_316 = arith.constant 0 : index
    %c0_317 = arith.constant 0 : index
    %381 = vector.load %arg16[%c1_314, %c3_315, %c0_316, %c0_317] : memref<2x4x1x8xf32, #tpu.memory_space<vmem>>, vector<1x1x1x8xf32>
    %382 = vector.shape_cast %381 : vector<1x1x1x8xf32> to vector<1x8xf32>
    %383 = vector.broadcast %382 : vector<1x8xf32> to vector<16x8xf32>
    %384 = arith.addf %380, %383 : vector<16x8xf32>
    %cst_318 = arith.constant 0.353553385 : f32
    %385 = vector.broadcast %cst_318 : f32 to vector<16x8xf32>
    %386 = arith.mulf %384, %385 : vector<16x8xf32>
    %c1_319 = arith.constant 1 : index
    %c3_320 = arith.constant 3 : index
    %c0_321 = arith.constant 0 : index
    %c0_322 = arith.constant 0 : index
    %387 = vector.load %arg17[%c1_319, %c3_320, %c0_321, %c0_322] : memref<2x4x32x8xf32, #tpu.memory_space<vmem>>, vector<1x1x32x8xf32>
    %388 = vector.shape_cast %387 : vector<1x1x32x8xf32> to vector<32x8xf32>
    %cst_323 = arith.constant dense<0.000000e+00> : vector<16x8xf32>
    %389 = tpu.matmul %268, %388, %cst_323 {dimension_numbers = #tpu.dot_dimension_numbers<[1], [0], [0], [1], [0, 0, 1, 1], [], []>} : vector<16x32xf32>, vector<32x8xf32>, vector<16x8xf32> -> vector<16x8xf32>
    %c1_324 = arith.constant 1 : index
    %c3_325 = arith.constant 3 : index
    %c0_326 = arith.constant 0 : index
    %c0_327 = arith.constant 0 : index
    %390 = vector.load %arg18[%c1_324, %c3_325, %c0_326, %c0_327] : memref<2x4x32x8xf32, #tpu.memory_space<vmem>>, vector<1x1x32x8xf32>
    %391 = vector.shape_cast %390 : vector<1x1x32x8xf32> to vector<32x8xf32>
    %cst_328 = arith.constant dense<0.000000e+00> : vector<16x8xf32>
    %392 = tpu.matmul %268, %391, %cst_328 {dimension_numbers = #tpu.dot_dimension_numbers<[1], [0], [0], [1], [0, 0, 1, 1], [], []>} : vector<16x32xf32>, vector<32x8xf32>, vector<16x8xf32> -> vector<16x8xf32>
    %c1_329 = arith.constant 1 : index
    %c3_330 = arith.constant 3 : index
    %c0_331 = arith.constant 0 : index
    %c0_332 = arith.constant 0 : index
    %393 = vector.load %arg19[%c1_329, %c3_330, %c0_331, %c0_332] : memref<2x4x1x8xf32, #tpu.memory_space<vmem>>, vector<1x1x1x8xf32>
    %394 = vector.shape_cast %393 : vector<1x1x1x8xf32> to vector<1x8xf32>
    %395 = vector.broadcast %394 : vector<1x8xf32> to vector<16x8xf32>
    %396 = arith.addf %392, %395 : vector<16x8xf32>
    %cst_333 = arith.constant dense<0.000000e+00> : vector<16x16xf32>
    %397 = tpu.matmul %386, %389, %cst_333 {dimension_numbers = #tpu.dot_dimension_numbers<[1], [1], [0], [0], [0, 0, 1, 0], [], []>} : vector<16x8xf32>, vector<16x8xf32>, vector<16x16xf32> -> vector<16x16xf32>
    %398 = arith.addf %397, %0 : vector<16x16xf32>
    %cst_334 = arith.constant dense<0xFF800000> : vector<16xf32>
    %399 = vector.multi_reduction <maximumf>, %398, %cst_334 [1] : vector<16x16xf32> to vector<16xf32>
    %400 = vector.shape_cast %399 : vector<16xf32> to vector<16x1xf32>
    %401 = vector.broadcast %400 : vector<16x1xf32> to vector<16x16xf32>
    %402 = arith.subf %398, %401 : vector<16x16xf32>
    %403 = math.exp %402 : vector<16x16xf32>
    %cst_335 = arith.constant dense<0.000000e+00> : vector<16xf32>
    %404 = vector.multi_reduction <add>, %403, %cst_335 [1] : vector<16x16xf32> to vector<16xf32>
    %405 = vector.shape_cast %404 : vector<16xf32> to vector<16x1xf32>
    %406 = tpu.reciprocal %405 {approx = true} : vector<16x1xf32> -> vector<16x1xf32>
    %407 = vector.broadcast %406 : vector<16x1xf32> to vector<16x16xf32>
    %408 = arith.mulf %403, %407 : vector<16x16xf32>
    %cst_336 = arith.constant dense<0.000000e+00> : vector<16x8xf32>
    %409 = tpu.matmul %408, %396, %cst_336 {dimension_numbers = #tpu.dot_dimension_numbers<[1], [0], [0], [1], [0, 0, 1, 1], [], []>} : vector<16x16xf32>, vector<16x8xf32>, vector<16x8xf32> -> vector<16x8xf32>
    %c1_337 = arith.constant 1 : index
    %c3_338 = arith.constant 3 : index
    %c0_339 = arith.constant 0 : index
    %c0_340 = arith.constant 0 : index
    %410 = vector.load %arg20[%c1_337, %c3_338, %c0_339, %c0_340] : memref<2x4x8x32xf32, #tpu.memory_space<vmem>>, vector<1x1x8x32xf32>
    %411 = vector.shape_cast %410 : vector<1x1x8x32xf32> to vector<8x32xf32>
    %cst_341 = arith.constant dense<0.000000e+00> : vector<16x32xf32>
    %412 = tpu.matmul %409, %411, %cst_341 {dimension_numbers = #tpu.dot_dimension_numbers<[1], [0], [0], [1], [0, 0, 1, 1], [], []>} : vector<16x8xf32>, vector<8x32xf32>, vector<16x32xf32> -> vector<16x32xf32>
    %413 = arith.addf %377, %412 : vector<16x32xf32>
    %414 = arith.addf %242, %413 : vector<16x32xf32>
    %c1_342 = arith.constant 1 : index
    %c0_343 = arith.constant 0 : index
    %c0_344 = arith.constant 0 : index
    %415 = vector.load %arg21[%c1_342, %c0_343, %c0_344] : memref<2x1x32xf32, #tpu.memory_space<vmem>>, vector<1x1x32xf32>
    %416 = vector.shape_cast %415 : vector<1x1x32xf32> to vector<1x32xf32>
    %417 = vector.broadcast %416 : vector<1x32xf32> to vector<16x32xf32>
    %418 = arith.addf %414, %417 : vector<16x32xf32>
    %c1_345 = arith.constant 1 : index
    %c0_346 = arith.constant 0 : index
    %c0_347 = arith.constant 0 : index
    %419 = vector.load %arg22[%c1_345, %c0_346, %c0_347] : memref<2x1x32xf32, #tpu.memory_space<vmem>>, vector<1x1x32xf32>
    %420 = vector.shape_cast %419 : vector<1x1x32xf32> to vector<1x32xf32>
    %c1_348 = arith.constant 1 : index
    %c0_349 = arith.constant 0 : index
    %c0_350 = arith.constant 0 : index
    %421 = vector.load %arg23[%c1_348, %c0_349, %c0_350] : memref<2x1x32xf32, #tpu.memory_space<vmem>>, vector<1x1x32xf32>
    %422 = vector.shape_cast %421 : vector<1x1x32xf32> to vector<1x32xf32>
    %cst_351 = arith.constant dense<0.000000e+00> : vector<16xf32>
    %423 = vector.multi_reduction <add>, %418, %cst_351 [1] : vector<16x32xf32> to vector<16xf32>
    %424 = vector.shape_cast %423 : vector<16xf32> to vector<16x1xf32>
    %cst_352 = arith.constant 3.200000e+01 : f32
    %425 = vector.broadcast %cst_352 : f32 to vector<16x1xf32>
    %426 = arith.divf %424, %425 : vector<16x1xf32>
    %427 = vector.broadcast %426 : vector<16x1xf32> to vector<16x32xf32>
    %428 = arith.subf %418, %427 : vector<16x32xf32>
    %429 = arith.mulf %428, %428 : vector<16x32xf32>
    %cst_353 = arith.constant dense<0.000000e+00> : vector<16xf32>
    %430 = vector.multi_reduction <add>, %429, %cst_353 [1] : vector<16x32xf32> to vector<16xf32>
    %431 = vector.shape_cast %430 : vector<16xf32> to vector<16x1xf32>
    %cst_354 = arith.constant 3.200000e+01 : f32
    %432 = vector.broadcast %cst_354 : f32 to vector<16x1xf32>
    %433 = arith.divf %431, %432 : vector<16x1xf32>
    %434 = vector.broadcast %426 : vector<16x1xf32> to vector<16x32xf32>
    %435 = arith.subf %418, %434 : vector<16x32xf32>
    %cst_355 = arith.constant 9.99999974E-6 : f32
    %436 = vector.broadcast %cst_355 : f32 to vector<16x1xf32>
    %437 = arith.addf %433, %436 : vector<16x1xf32>
    %438 = math.rsqrt %437 : vector<16x1xf32>
    %439 = vector.broadcast %438 : vector<16x1xf32> to vector<16x32xf32>
    %440 = arith.mulf %435, %439 : vector<16x32xf32>
    %441 = vector.broadcast %420 : vector<1x32xf32> to vector<16x32xf32>
    %442 = arith.mulf %440, %441 : vector<16x32xf32>
    %443 = vector.broadcast %422 : vector<1x32xf32> to vector<16x32xf32>
    %444 = arith.addf %442, %443 : vector<16x32xf32>
    %c1_356 = arith.constant 1 : index
    %c0_357 = arith.constant 0 : index
    %c0_358 = arith.constant 0 : index
    %445 = vector.load %arg24[%c1_356, %c0_357, %c0_358] : memref<2x32x32xf32, #tpu.memory_space<vmem>>, vector<1x32x32xf32>
    %446 = vector.shape_cast %445 : vector<1x32x32xf32> to vector<32x32xf32>
    %cst_359 = arith.constant dense<0.000000e+00> : vector<16x32xf32>
    %447 = tpu.matmul %444, %446, %cst_359 {dimension_numbers = #tpu.dot_dimension_numbers<[1], [0], [0], [1], [0, 0, 1, 1], [], []>} : vector<16x32xf32>, vector<32x32xf32>, vector<16x32xf32> -> vector<16x32xf32>
    %c1_360 = arith.constant 1 : index
    %c0_361 = arith.constant 0 : index
    %c0_362 = arith.constant 0 : index
    %448 = vector.load %arg25[%c1_360, %c0_361, %c0_362] : memref<2x1x32xf32, #tpu.memory_space<vmem>>, vector<1x1x32xf32>
    %449 = vector.shape_cast %448 : vector<1x1x32xf32> to vector<1x32xf32>
    %450 = vector.broadcast %449 : vector<1x32xf32> to vector<16x32xf32>
    %451 = arith.addf %447, %450 : vector<16x32xf32>
    %cst_363 = arith.constant 0.000000e+00 : f32
    %452 = vector.broadcast %cst_363 : f32 to vector<16x32xf32>
    %453 = arith.maximumf %451, %452 : vector<16x32xf32>
    %c1_364 = arith.constant 1 : index
    %c0_365 = arith.constant 0 : index
    %c0_366 = arith.constant 0 : index
    %454 = vector.load %arg26[%c1_364, %c0_365, %c0_366] : memref<2x32x32xf32, #tpu.memory_space<vmem>>, vector<1x32x32xf32>
    %455 = vector.shape_cast %454 : vector<1x32x32xf32> to vector<32x32xf32>
    %cst_367 = arith.constant dense<0.000000e+00> : vector<16x32xf32>
    %456 = tpu.matmul %453, %455, %cst_367 {dimension_numbers = #tpu.dot_dimension_numbers<[1], [0], [0], [1], [0, 0, 1, 1], [], []>} : vector<16x32xf32>, vector<32x32xf32>, vector<16x32xf32> -> vector<16x32xf32>
    %457 = arith.addf %418, %456 : vector<16x32xf32>
    %c1_368 = arith.constant 1 : index
    %c0_369 = arith.constant 0 : index
    %c0_370 = arith.constant 0 : index
    %458 = vector.load %arg27[%c1_368, %c0_369, %c0_370] : memref<2x1x32xf32, #tpu.memory_space<vmem>>, vector<1x1x32xf32>
    %459 = vector.shape_cast %458 : vector<1x1x32xf32> to vector<1x32xf32>
    %460 = vector.broadcast %459 : vector<1x32xf32> to vector<16x32xf32>
    %461 = arith.addf %457, %460 : vector<16x32xf32>
    %cst_371 = arith.constant dense<0.000000e+00> : vector<2x32xf32>
    %462 = tpu.matmul %2, %461, %cst_371 {dimension_numbers = #tpu.dot_dimension_numbers<[1], [0], [0], [1], [0, 0, 1, 1], [], []>} : vector<2x16xf32>, vector<16x32xf32>, vector<2x32xf32> -> vector<2x32xf32>
    %c0_372 = arith.constant 0 : index
    %c0_373 = arith.constant 0 : index
    %463 = vector.load %arg28[%c0_372, %c0_373] : memref<32x1xf32, #tpu.memory_space<vmem>>, vector<32x1xf32>
    %cst_374 = arith.constant dense<0.000000e+00> : vector<2x1xf32>
    %464 = tpu.matmul %462, %463, %cst_374 {dimension_numbers = #tpu.dot_dimension_numbers<[1], [0], [0], [1], [0, 0, 1, 1], [], []>} : vector<2x32xf32>, vector<32x1xf32>, vector<2x1xf32> -> vector<2x1xf32>
    %c0_375 = arith.constant 0 : index
    %c0_376 = arith.constant 0 : index
    %465 = vector.load %arg29[%c0_375, %c0_376] : memref<1x1xf32, #tpu.memory_space<vmem>>, vector<1x1xf32>
    %cst_377 = arith.constant 8.000000e+00 : f32
    %466 = vector.broadcast %cst_377 : f32 to vector<1x1xf32>
    %467 = arith.mulf %466, %465 : vector<1x1xf32>
    %468 = vector.broadcast %467 : vector<1x1xf32> to vector<2x1xf32>
    %469 = arith.addf %464, %468 : vector<2x1xf32>
    %c0_378 = arith.constant 0 : index
    %c0_379 = arith.constant 0 : index
    %470 = vector.load %arg30[%c0_378, %c0_379] : memref<2x1xf32, #tpu.memory_space<vmem>>, vector<2x1xf32>
    tpu.vector_store %arg30[%c0_378, %c0_379], %469 {strides = array<i32>} : memref<2x1xf32, #tpu.memory_space<vmem>>, vector<2x1xf32>,
    return
  }
  func.func @transform_0(%arg0: i32) -> (i32, i32) {
    %c0_i32 = arith.constant 0 : i32
    %c0_i32_0 = arith.constant 0 : i32
    %c0_i32_1 = arith.constant 0 : i32
    return %c0_i32, %c0_i32_0 : i32, i32
  }
  func.func @transform_1(%arg0: i32) -> (i32, i32) {
    %c0_i32 = arith.constant 0 : i32
    %c0_i32_0 = arith.constant 0 : i32
    %c0_i32_1 = arith.constant 0 : i32
    return %c0_i32, %c0_i32_0 : i32, i32
  }
  func.func @transform_2(%arg0: i32) -> (i32, i32) {
    %c0_i32 = arith.constant 0 : i32
    %c0_i32_0 = arith.constant 0 : i32
    %c0_i32_1 = arith.constant 0 : i32
    return %c0_i32, %c0_i32_0 : i32, i32
  }
  func.func @transform_3(%arg0: i32) -> (i32, i32) {
    %c0_i32 = arith.constant 0 : i32
    %c0_i32_0 = arith.constant 0 : i32
    %c0_i32_1 = arith.constant 0 : i32
    return %c0_i32, %c0_i32_0 : i32, i32
  }
  func.func @transform_4(%arg0: i32) -> (i32, i32) {
    %c0_i32 = arith.constant 0 : i32
    %c0_i32_0 = arith.constant 0 : i32
    %c0_i32_1 = arith.constant 0 : i32
    return %c0_i32, %c0_i32_0 : i32, i32
  }
  func.func @transform_5(%arg0: i32) -> (i32, i32) {
    %c0_i32 = arith.constant 0 : i32
    %c0_i32_0 = arith.constant 0 : i32
    %c0_i32_1 = arith.constant 0 : i32
    return %c0_i32, %c0_i32_0 : i32, i32
  }
  func.func @transform_6(%arg0: i32) -> (i32, i32) {
    %c0_i32 = arith.constant 0 : i32
    %c0_i32_0 = arith.constant 0 : i32
    %c0_i32_1 = arith.constant 0 : i32
    return %c0_i32, %c0_i32_0 : i32, i32
  }
  func.func @transform_7(%arg0: i32) -> (i32, i32) {
    %c0_i32 = arith.constant 0 : i32
    %c0_i32_0 = arith.constant 0 : i32
    %c0_i32_1 = arith.constant 0 : i32
    return %c0_i32, %c0_i32_0 : i32, i32
  }
  func.func @transform_8(%arg0: i32) -> (i32, i32) {
    %c0_i32 = arith.constant 0 : i32
    %c0_i32_0 = arith.constant 0 : i32
    %c0_i32_1 = arith.constant 0 : i32
    return %c0_i32, %c0_i32_0 : i32, i32
  }
  func.func @transform_9(%arg0: i32) -> (i32, i32) {
    %c0_i32 = arith.constant 0 : i32
    %c0_i32_0 = arith.constant 0 : i32
    %c0_i32_1 = arith.constant 0 : i32
    return %c0_i32, %c0_i32_0 : i32, i32
  }
  func.func @transform_10(%arg0: i32) -> (i32, i32) {
    %c0_i32 = arith.constant 0 : i32
    %c0_i32_0 = arith.constant 0 : i32
    %c0_i32_1 = arith.constant 0 : i32
    return %c0_i32, %c0_i32_0 : i32, i32
  }
  func.func @transform_11(%arg0: i32) -> (i32, i32) {
    %c0_i32 = arith.constant 0 : i32
    %c0_i32_0 = arith.constant 0 : i32
    %c0_i32_1 = arith.constant 0 : i32
    return %c0_i32, %c0_i32_0 : i32, i32
  }
  func.func @transform_12(%arg0: i32) -> (i32, i32, i32) {
    %c0_i32 = arith.constant 0 : i32
    %c0_i32_0 = arith.constant 0 : i32
    %c0_i32_1 = arith.constant 0 : i32
    %c0_i32_2 = arith.constant 0 : i32
    return %c0_i32, %c0_i32_0, %c0_i32_1 : i32, i32, i32
  }
  func.func @transform_13(%arg0: i32) -> (i32, i32, i32) {
    %c0_i32 = arith.constant 0 : i32
    %c0_i32_0 = arith.constant 0 : i32
    %c0_i32_1 = arith.constant 0 : i32
    %c0_i32_2 = arith.constant 0 : i32
    return %c0_i32, %c0_i32_0, %c0_i32_1 : i32, i32, i32
  }
  func.func @transform_14(%arg0: i32) -> (i32, i32, i32, i32) {
    %c0_i32 = arith.constant 0 : i32
    %c0_i32_0 = arith.constant 0 : i32
    %c0_i32_1 = arith.constant 0 : i32
    %c0_i32_2 = arith.constant 0 : i32
    %c0_i32_3 = arith.constant 0 : i32
    return %c0_i32, %c0_i32_0, %c0_i32_1, %c0_i32_2 : i32, i32, i32, i32
  }
  func.func @transform_15(%arg0: i32) -> (i32, i32, i32, i32) {
    %c0_i32 = arith.constant 0 : i32
    %c0_i32_0 = arith.constant 0 : i32
    %c0_i32_1 = arith.constant 0 : i32
    %c0_i32_2 = arith.constant 0 : i32
    %c0_i32_3 = arith.constant 0 : i32
    return %c0_i32, %c0_i32_0, %c0_i32_1, %c0_i32_2 : i32, i32, i32, i32
  }
  func.func @transform_16(%arg0: i32) -> (i32, i32, i32, i32) {
    %c0_i32 = arith.constant 0 : i32
    %c0_i32_0 = arith.constant 0 : i32
    %c0_i32_1 = arith.constant 0 : i32
    %c0_i32_2 = arith.constant 0 : i32
    %c0_i32_3 = arith.constant 0 : i32
    return %c0_i32, %c0_i32_0, %c0_i32_1, %c0_i32_2 : i32, i32, i32, i32
  }
  func.func @transform_17(%arg0: i32) -> (i32, i32, i32, i32) {
    %c0_i32 = arith.constant 0 : i32
    %c0_i32_0 = arith.constant 0 : i32
    %c0_i32_1 = arith.constant 0 : i32
    %c0_i32_2 = arith.constant 0 : i32
    %c0_i32_3 = arith.constant 0 : i32
    return %c0_i32, %c0_i32_0, %c0_i32_1, %c0_i32_2 : i32, i32, i32, i32
  }
  func.func @transform_18(%arg0: i32) -> (i32, i32, i32, i32) {
    %c0_i32 = arith.constant 0 : i32
    %c0_i32_0 = arith.constant 0 : i32
    %c0_i32_1 = arith.constant 0 : i32
    %c0_i32_2 = arith.constant 0 : i32
    %c0_i32_3 = arith.constant 0 : i32
    return %c0_i32, %c0_i32_0, %c0_i32_1, %c0_i32_2 : i32, i32, i32, i32
  }
  func.func @transform_19(%arg0: i32) -> (i32, i32, i32, i32) {
    %c0_i32 = arith.constant 0 : i32
    %c0_i32_0 = arith.constant 0 : i32
    %c0_i32_1 = arith.constant 0 : i32
    %c0_i32_2 = arith.constant 0 : i32
    %c0_i32_3 = arith.constant 0 : i32
    return %c0_i32, %c0_i32_0, %c0_i32_1, %c0_i32_2 : i32, i32, i32, i32
  }
  func.func @transform_20(%arg0: i32) -> (i32, i32, i32) {
    %c0_i32 = arith.constant 0 : i32
    %c0_i32_0 = arith.constant 0 : i32
    %c0_i32_1 = arith.constant 0 : i32
    %c0_i32_2 = arith.constant 0 : i32
    return %c0_i32, %c0_i32_0, %c0_i32_1 : i32, i32, i32
  }
  func.func @transform_21(%arg0: i32) -> (i32, i32, i32) {
    %c0_i32 = arith.constant 0 : i32
    %c0_i32_0 = arith.constant 0 : i32
    %c0_i32_1 = arith.constant 0 : i32
    %c0_i32_2 = arith.constant 0 : i32
    return %c0_i32, %c0_i32_0, %c0_i32_1 : i32, i32, i32
  }
  func.func @transform_22(%arg0: i32) -> (i32, i32, i32) {
    %c0_i32 = arith.constant 0 : i32
    %c0_i32_0 = arith.constant 0 : i32
    %c0_i32_1 = arith.constant 0 : i32
    %c0_i32_2 = arith.constant 0 : i32
    return %c0_i32, %c0_i32_0, %c0_i32_1 : i32, i32, i32
  }
  func.func @transform_23(%arg0: i32) -> (i32, i32, i32) {
    %c0_i32 = arith.constant 0 : i32
    %c0_i32_0 = arith.constant 0 : i32
    %c0_i32_1 = arith.constant 0 : i32
    %c0_i32_2 = arith.constant 0 : i32
    return %c0_i32, %c0_i32_0, %c0_i32_1 : i32, i32, i32
  }
  func.func @transform_24(%arg0: i32) -> (i32, i32, i32) {
    %c0_i32 = arith.constant 0 : i32
    %c0_i32_0 = arith.constant 0 : i32
    %c0_i32_1 = arith.constant 0 : i32
    %c0_i32_2 = arith.constant 0 : i32
    return %c0_i32, %c0_i32_0, %c0_i32_1 : i32, i32, i32
  }
  func.func @transform_25(%arg0: i32) -> (i32, i32, i32) {
    %c0_i32 = arith.constant 0 : i32
    %c0_i32_0 = arith.constant 0 : i32
    %c0_i32_1 = arith.constant 0 : i32
    %c0_i32_2 = arith.constant 0 : i32
    return %c0_i32, %c0_i32_0, %c0_i32_1 : i32, i32, i32
  }
  func.func @transform_26(%arg0: i32) -> (i32, i32, i32) {
    %c0_i32 = arith.constant 0 : i32
    %c0_i32_0 = arith.constant 0 : i32
    %c0_i32_1 = arith.constant 0 : i32
    %c0_i32_2 = arith.constant 0 : i32
    return %c0_i32, %c0_i32_0, %c0_i32_1 : i32, i32, i32
  }
  func.func @transform_27(%arg0: i32) -> (i32, i32) {
    %c0_i32 = arith.constant 0 : i32
    %c0_i32_0 = arith.constant 0 : i32
    %c0_i32_1 = arith.constant 0 : i32
    return %c0_i32, %c0_i32_0 : i32, i32
  }
  func.func @transform_28(%arg0: i32) -> (i32, i32) {
    %c0_i32 = arith.constant 0 : i32
    %c0_i32_0 = arith.constant 0 : i32
    %c0_i32_1 = arith.constant 0 : i32
    return %c0_i32, %c0_i32_0 : i32, i32
  }
  func.func @transform_29(%arg0: i32) -> (i32, i32) {
    %c0_i32 = arith.constant 0 : i32
    %c0_i32_0 = arith.constant 0 : i32
    %c0_i32_1 = arith.constant 0 : i32
    return %c0_i32, %c0_i32_0 : i32, i32
  }
}

</mosaic_0001>

<llo_original>
// kernel: critic_tfm_pallas.1
$region0: #{critic_tfm_pallas.1}
  #allocation0 [shape = 'u32[]', space=smem, size = 0x4, offset = 0x4, fixed_abs, tag = 'smem constant byte address 0x4 - core index']
  #allocation1 [shape = 'u32[72,128]{1,0:T(1,128)}', space=vmem, size = 0x9000, scoped, tag = 'internal scratch']
  #allocation2 [shape = 'f32[1,1]{1,0:T(1,128)S(1)}', space=vmem, size = 0x200, scoped, tag = 'scoped memory for critic_tfm_pallas.1']
  %s0 = inlined_call_operand.smem [shape: u32[30], index: -1, kind: input, shape index: {}]
  %s1 = sld [smem:[%s0]]
  %s2 = scalar_lea.smem %s0, 1
  %s3 = sld [smem:[%s2]]
  %s4 = scalar_lea.smem %s0, 2
  %s5 = sld [smem:[%s4]]
  %s6 = scalar_lea.smem %s0, 3
  %s7 = sld [smem:[%s6]]
  %s8 = scalar_lea.smem %s0, 4
  %s9 = sld [smem:[%s8]]
  %s10 = scalar_lea.smem %s0, 5
  %s11 = sld [smem:[%s10]]
  %s12 = scalar_lea.smem %s0, 6
  %s13 = sld [smem:[%s12]]
  %s14 = scalar_lea.smem %s0, 7
  %s15 = sld [smem:[%s14]]
  %s16 = scalar_lea.smem %s0, 8
  %s17 = sld [smem:[%s16]]
  %s18 = scalar_lea.smem %s0, 9
  %s19 = sld [smem:[%s18]]
  %s20 = scalar_lea.smem %s0, 10
  %s21 = sld [smem:[%s20]]
  %s22 = scalar_lea.smem %s0, 11
  %s23 = sld [smem:[%s22]]
  %s24 = scalar_lea.smem %s0, 12
  %s25 = sld [smem:[%s24]]
  %s26 = scalar_lea.smem %s0, 13
  %s27 = sld [smem:[%s26]]
  %s28 = scalar_lea.smem %s0, 14
  %s29 = sld [smem:[%s28]]
  %s30 = scalar_lea.smem %s0, 15
  %s31 = sld [smem:[%s30]]
  %s32 = scalar_lea.smem %s0, 16
  %s33 = sld [smem:[%s32]]
  %s34 = scalar_lea.smem %s0, 17
  %s35 = sld [smem:[%s34]]
  %s36 = scalar_lea.smem %s0, 18
  %s37 = sld [smem:[%s36]]
  %s38 = scalar_lea.smem %s0, 19
  %s39 = sld [smem:[%s38]]
  %s40 = scalar_lea.smem %s0, 20
  %s41 = sld [smem:[%s40]]
  %s42 = scalar_lea.smem %s0, 21
  %s43 = sld [smem:[%s42]]
  %s44 = scalar_lea.smem %s0, 22
  %s45 = sld [smem:[%s44]]
  %s46 = scalar_lea.smem %s0, 23
  %s47 = sld [smem:[%s46]]
  %s48 = scalar_lea.smem %s0, 24
  %s49 = sld [smem:[%s48]]
  %s50 = scalar_lea.smem %s0, 25
  %s51 = sld [smem:[%s50]]
  %s52 = scalar_lea.smem %s0, 26
  %s53 = sld [smem:[%s52]]
  %s54 = scalar_lea.smem %s0, 27
  %s55 = sld [smem:[%s54]]
  %s56 = scalar_lea.smem %s0, 28
  %s57 = sld [smem:[%s56]]
  %s58 = scalar_lea.smem %s0, 29
  %s59 = sld [smem:[%s58]]
  %s60 = sld [smem:[#allocation0]]
  $region126: #{critic_tfm_pallas.1} parent=0
    _
  %s62 = ssub.s32 1, %s60
  %s63 = scalar_select 0, %s62, %s60
  %v64 = vstv %s57
  %65 = vst [vmem:[#allocation2] sm:$0x1] %v64
  // Predicated region
  $region2: #{critic_tfm_pallas.1} parent=0 // pred_check
    _
  $region3: #{critic_tfm_pallas.1} parent=0 // pred_check_branch
    %67 = sbr.rel (0) target = $region5
  $region4: #{critic_tfm_pallas.1} parent=0 // pred_region
    _
  $region5: #{critic_tfm_pallas.1} parent=0 // pred_fallthru
    _
  // Predicated region
  $region6: #{critic_tfm_pallas.1} parent=0 // pred_check
    _
  $region7: #{critic_tfm_pallas.1} parent=0 // pred_check_branch
    %69 = sbr.rel (0) target = $region9
  $region8: #{critic_tfm_pallas.1} parent=0 // pred_region
    _
  $region9: #{critic_tfm_pallas.1} parent=0 // pred_fallthru
    _
  // Predicated region
  $region10: #{critic_tfm_pallas.1} parent=0 // pred_check
    _
  $region11: #{critic_tfm_pallas.1} parent=0 // pred_check_branch
    %71 = sbr.rel (0) target = $region13
  $region12: #{critic_tfm_pallas.1} parent=0 // pred_region
    _
  $region13: #{critic_tfm_pallas.1} parent=0 // pred_fallthru
    _
  // Predicated region
  $region14: #{critic_tfm_pallas.1} parent=0 // pred_check
    _
  $region15: #{critic_tfm_pallas.1} parent=0 // pred_check_branch
    %73 = sbr.rel (0) target = $region17
  $region16: #{critic_tfm_pallas.1} parent=0 // pred_region
    _
  $region17: #{critic_tfm_pallas.1} parent=0 // pred_fallthru
    _
  // Predicated region
  $region18: #{critic_tfm_pallas.1} parent=0 // pred_check
    _
  $region19: #{critic_tfm_pallas.1} parent=0 // pred_check_branch
    %75 = sbr.rel (0) target = $region21
  $region20: #{critic_tfm_pallas.1} parent=0 // pred_region
    _
  $region21: #{critic_tfm_pallas.1} parent=0 // pred_fallthru
    _
  // Predicated region
  $region22: #{critic_tfm_pallas.1} parent=0 // pred_check
    _
  $region23: #{critic_tfm_pallas.1} parent=0 // pred_check_branch
    %77 = sbr.rel (0) target = $region25
  $region24: #{critic_tfm_pallas.1} parent=0 // pred_region
    _
  $region25: #{critic_tfm_pallas.1} parent=0 // pred_fallthru
    _
  // Predicated region
  $region26: #{critic_tfm_pallas.1} parent=0 // pred_check
    _
  $region27: #{critic_tfm_pallas.1} parent=0 // pred_check_branch
    %79 = sbr.rel (0) target = $region29
  $region28: #{critic_tfm_pallas.1} parent=0 // pred_region
    _
  $region29: #{critic_tfm_pallas.1} parent=0 // pred_fallthru
    _
  // Predicated region
  $region30: #{critic_tfm_pallas.1} parent=0 // pred_check
    _
  $region31: #{critic_tfm_pallas.1} parent=0 // pred_check_branch
    %81 = sbr.rel (0) target = $region33
  $region32: #{critic_tfm_pallas.1} parent=0 // pred_region
    _
  $region33: #{critic_tfm_pallas.1} parent=0 // pred_fallthru
    _
  // Predicated region
  $region34: #{critic_tfm_pallas.1} parent=0 // pred_check
    _
  $region35: #{critic_tfm_pallas.1} parent=0 // pred_check_branch
    %83 = sbr.rel (0) target = $region37
  $region36: #{critic_tfm_pallas.1} parent=0 // pred_region
    _
  $region37: #{critic_tfm_pallas.1} parent=0 // pred_fallthru
    _
  // Predicated region
  $region38: #{critic_tfm_pallas.1} parent=0 // pred_check
    _
  $region39: #{critic_tfm_pallas.1} parent=0 // pred_check_branch
    %85 = sbr.rel (0) target = $region41
  $region40: #{critic_tfm_pallas.1} parent=0 // pred_region
    _
  $region41: #{critic_tfm_pallas.1} parent=0 // pred_fallthru
    _
  // Predicated region
  $region42: #{critic_tfm_pallas.1} parent=0 // pred_check
    _
  $region43: #{critic_tfm_pallas.1} parent=0 // pred_check_branch
    %87 = sbr.rel (0) target = $region45
  $region44: #{critic_tfm_pallas.1} parent=0 // pred_region
    _
  $region45: #{critic_tfm_pallas.1} parent=0 // pred_fallthru
    _
  // Predicated region
  $region46: #{critic_tfm_pallas.1} parent=0 // pred_check
    _
  $region47: #{critic_tfm_pallas.1} parent=0 // pred_check_branch
    %89 = sbr.rel (0) target = $region49
  $region48: #{critic_tfm_pallas.1} parent=0 // pred_region
    _
  $region49: #{critic_tfm_pallas.1} parent=0 // pred_fallthru
    _
  // Predicated region
  $region50: #{critic_tfm_pallas.1} parent=0 // pred_check
    _
  $region51: #{critic_tfm_pallas.1} parent=0 // pred_check_branch
    %91 = sbr.rel (0) target = $region53
  $region52: #{critic_tfm_pallas.1} parent=0 // pred_region
    _
  $region53: #{critic_tfm_pallas.1} parent=0 // pred_fallthru
    _
  // Predicated region
  $region54: #{critic_tfm_pallas.1} parent=0 // pred_check
    _
  $region55: #{critic_tfm_pallas.1} parent=0 // pred_check_branch
    %93 = sbr.rel (0) target = $region57
  $region56: #{critic_tfm_pallas.1} parent=0 // pred_region
    _
  $region57: #{critic_tfm_pallas.1} parent=0 // pred_fallthru
    _
  // Predicated region
  $region58: #{critic_tfm_pallas.1} parent=0 // pred_check
    _
  $region59: #{critic_tfm_pallas.1} parent=0 // pred_check_branch
    %95 = sbr.rel (0) target = $region61
  $region60: #{critic_tfm_pallas.1} parent=0 // pred_region
    _
  $region61: #{critic_tfm_pallas.1} parent=0 // pred_fallthru
    _
  // Predicated region
  $region62: #{critic_tfm_pallas.1} parent=0 // pred_check
    _
  $region63: #{critic_tfm_pallas.1} parent=0 // pred_check_branch
    %97 = sbr.rel (0) target = $region65
  $region64: #{critic_tfm_pallas.1} parent=0 // pred_region
    _
  $region65: #{critic_tfm_pallas.1} parent=0 // pred_fallthru
    _
  // Predicated region
  $region66: #{critic_tfm_pallas.1} parent=0 // pred_check
    _
  $region67: #{critic_tfm_pallas.1} parent=0 // pred_check_branch
    %99 = sbr.rel (0) target = $region69
  $region68: #{critic_tfm_pallas.1} parent=0 // pred_region
    _
  $region69: #{critic_tfm_pallas.1} parent=0 // pred_fallthru
    _
  // Predicated region
  $region70: #{critic_tfm_pallas.1} parent=0 // pred_check
    _
  $region71: #{critic_tfm_pallas.1} parent=0 // pred_check_branch
    %101 = sbr.rel (0) target = $region73
  $region72: #{critic_tfm_pallas.1} parent=0 // pred_region
    _
  $region73: #{critic_tfm_pallas.1} parent=0 // pred_fallthru
    _
  // Predicated region
  $region74: #{critic_tfm_pallas.1} parent=0 // pred_check
    _
  $region75: #{critic_tfm_pallas.1} parent=0 // pred_check_branch
    %103 = sbr.rel (0) target = $region77
  $region76: #{critic_tfm_pallas.1} parent=0 // pred_region
    _
  $region77: #{critic_tfm_pallas.1} parent=0 // pred_fallthru
    _
  // Predicated region
  $region78: #{critic_tfm_pallas.1} parent=0 // pred_check
    _
  $region79: #{critic_tfm_pallas.1} parent=0 // pred_check_branch
    %105 = sbr.rel (0) target = $region81
  $region80: #{critic_tfm_pallas.1} parent=0 // pred_region
    _
  $region81: #{critic_tfm_pallas.1} parent=0 // pred_fallthru
    _
  // Predicated region
  $region82: #{critic_tfm_pallas.1} parent=0 // pred_check
    _
  $region83: #{critic_tfm_pallas.1} parent=0 // pred_check_branch
    %107 = sbr.rel (0) target = $region85
  $region84: #{critic_tfm_pallas.1} parent=0 // pred_region
    _
  $region85: #{critic_tfm_pallas.1} parent=0 // pred_fallthru
    _
  // Predicated region
  $region86: #{critic_tfm_pallas.1} parent=0 // pred_check
    _
  $region87: #{critic_tfm_pallas.1} parent=0 // pred_check_branch
    %109 = sbr.rel (0) target = $region89
  $region88: #{critic_tfm_pallas.1} parent=0 // pred_region
    _
  $region89: #{critic_tfm_pallas.1} parent=0 // pred_fallthru
    _
  // Predicated region
  $region90: #{critic_tfm_pallas.1} parent=0 // pred_check
    _
  $region91: #{critic_tfm_pallas.1} parent=0 // pred_check_branch
    %111 = sbr.rel (0) target = $region93
  $region92: #{critic_tfm_pallas.1} parent=0 // pred_region
    _
  $region93: #{critic_tfm_pallas.1} parent=0 // pred_fallthru
    _
  // Predicated region
  $region94: #{critic_tfm_pallas.1} parent=0 // pred_check
    _
  $region95: #{critic_tfm_pallas.1} parent=0 // pred_check_branch
    %113 = sbr.rel (0) target = $region97
  $region96: #{critic_tfm_pallas.1} parent=0 // pred_region
    _
  $region97: #{critic_tfm_pallas.1} parent=0 // pred_fallthru
    _
  // Predicated region
  $region98: #{critic_tfm_pallas.1} parent=0 // pred_check
    _
  $region99: #{critic_tfm_pallas.1} parent=0 // pred_check_branch
    %115 = sbr.rel (0) target = $region101
  $region100: #{critic_tfm_pallas.1} parent=0 // pred_region
    _
  $region101: #{critic_tfm_pallas.1} parent=0 // pred_fallthru
    _
  // Predicated region
  $region102: #{critic_tfm_pallas.1} parent=0 // pred_check
    _
  $region103: #{critic_tfm_pallas.1} parent=0 // pred_check_branch
    %117 = sbr.rel (0) target = $region105
  $region104: #{critic_tfm_pallas.1} parent=0 // pred_region
    _
  $region105: #{critic_tfm_pallas.1} parent=0 // pred_fallthru
    _
  // Predicated region
  $region106: #{critic_tfm_pallas.1} parent=0 // pred_check
    _
  $region107: #{critic_tfm_pallas.1} parent=0 // pred_check_branch
    %119 = sbr.rel (0) target = $region109
  $region108: #{critic_tfm_pallas.1} parent=0 // pred_region
    _
  $region109: #{critic_tfm_pallas.1} parent=0 // pred_fallthru
    _
  // Predicated region
  $region110: #{critic_tfm_pallas.1} parent=0 // pred_check
    _
  $region111: #{critic_tfm_pallas.1} parent=0 // pred_check_branch
    %121 = sbr.rel (0) target = $region113
  $region112: #{critic_tfm_pallas.1} parent=0 // pred_region
    _
  $region113: #{critic_tfm_pallas.1} parent=0 // pred_fallthru
    _
  // Predicated region
  $region114: #{critic_tfm_pallas.1} parent=0 // pred_check
    _
  $region115: #{critic_tfm_pallas.1} parent=0 // pred_check_branch
    %123 = sbr.rel (0) target = $region117
  $region116: #{critic_tfm_pallas.1} parent=0 // pred_region
    _
  $region117: #{critic_tfm_pallas.1} parent=0 // pred_fallthru
    _
  %v124 = vld [vmem:[%s1] sm:$0xff]
  %v125 = vld [vmem:[%s1 + $0x8] sm:$0xff]
  %v126 = vld [vmem:[%s3] sm:$0xff]
  %v127 = vld [vmem:[%s3 + $0x8] sm:$0xff]
  %v128 = vld [vmem:[%s5] sm:$0x3]
  %v129 = vld [vmem:[%s7] sm:$0x3]
  %v130 = vld [vmem:[%s15] sm:$0x7]
  %v131 = vld [vmem:[%s13] sm:$0x3]
  %v132 = vld [vmem:[%s21] sm:$0xf]
  %vm133 = vcmask 31744
  %v135 = vsel %vm133, %v131, 0
  %vm137 = vcmask 1043456
  %v139 = vsel %vm137, %v132, 0
  %141 = vmatpush.msra.mxu0 0.0
  %142 = vmatpush.msra.mxu0 0.0
  %143 = vmatpush.msra.mxu0 0.0
  %144 = vmatpush.msra.mxu0 0.0
  %145 = vmatpush.msra.mxu0 0.0
  %146 = vmatpush.msra.mxu0 0.0
  %147 = vmatpush.msra.mxu0 0.0
  %148 = vmatpush.msra.mxu0 0.0
  %149 = vmatpush.msra.mxu0 0.0
  %150 = vmatpush.msra.mxu0 0.0
  %151 = vmatpush.msra.mxu0 0.0
  %152 = vmatpush.msra.mxu0 0.0
  %153 = vmatpush.msra.mxu0 0.0
  %154 = vmatpush.msra.mxu0 0.0
  %155 = vmatpush.msra.mxu0 0.0
  %156 = vmatpush.msra.mxu0 %v139
  %157 = vmatmul.f32.gmra.mxu0 %v135
  %v158 = vpop.f32.mrf.mxu0
  %v159 = vadd.f32 0.0, %v158
  %160 = vdwg.mxu0
  %vm161 = vcmask 23552
  %v163 = vsel %vm161, %v129, 0
  %vm165 = vcmask 1042432
  %v167 = vsel %vm165, %v130, 0
  %169 = vmatpush.msra.mxu0 0.0
  %170 = vmatpush.msra.mxu0 0.0
  %171 = vmatpush.msra.mxu0 0.0
  %172 = vmatpush.msra.mxu0 0.0
  %173 = vmatpush.msra.mxu0 0.0
  %174 = vmatpush.msra.mxu0 0.0
  %175 = vmatpush.msra.mxu0 0.0
  %176 = vmatpush.msra.mxu0 0.0
  %177 = vmatpush.msra.mxu0 0.0
  %178 = vmatpush.msra.mxu0 0.0
  %179 = vmatpush.msra.mxu0 0.0
  %180 = vmatpush.msra.mxu0 0.0
  %181 = vmatpush.msra.mxu0 0.0
  %182 = vmatpush.msra.mxu0 0.0
  %183 = vmatpush.msra.mxu0 0.0
  %184 = vmatpush.msra.mxu0 %v167
  %185 = vmatmul.f32.gmra.mxu0 %v163
  %v186 = vpop.f32.mrf.mxu0
  %v187 = vadd.f32 %v159, %v186
  %188 = vdwg.mxu0
  %v189 = vld [vmem:[%s9] sm:$0xff]
  %v190 = vld [vmem:[%s9 + $0x8] sm:$0xff]
  %v191 = vld [vmem:[%s17] sm:$0x1f]
  %v192 = vld [vmem:[%s11] sm:$0xff]
  %v193 = vld [vmem:[%s11 + $0x8] sm:$0xff]
  %v194 = vld [vmem:[%s19] sm:$0x7]
  %v196 = vsel %vm161, %v192, 0
  %v199 = vsel %vm161, %v193, 0
  %v202 = vsel %vm165, %v194, 0
  %204 = vmatpush.msra.mxu0 0.0
  %205 = vmatpush.msra.mxu0 0.0
  %206 = vmatpush.msra.mxu0 0.0
  %207 = vmatpush.msra.mxu0 0.0
  %208 = vmatpush.msra.mxu0 0.0
  %209 = vmatpush.msra.mxu0 0.0
  %210 = vmatpush.msra.mxu0 0.0
  %211 = vmatpush.msra.mxu0 0.0
  %212 = vmatpush.msra.mxu0 0.0
  %213 = vmatpush.msra.mxu0 0.0
  %214 = vmatpush.msra.mxu0 0.0
  %215 = vmatpush.msra.mxu0 0.0
  %216 = vmatpush.msra.mxu0 0.0
  %217 = vmatpush.msra.mxu0 0.0
  %218 = vmatpush.msra.mxu0 0.0
  %219 = vmatpush.msra.mxu0 %v202
  %220 = vmatmul.f32.gmra.mxu0 %v196
  %v221 = vpop.f32.mrf.mxu0
  %v222 = vadd.f32 0.0, %v221
  %223 = vmatmul.f32.gmra.mxu0 %v199
  %v224 = vpop.f32.mrf.mxu0
  %v225 = vadd.f32 0.0, %v224
  %226 = vdwg.mxu0
  %vm227 = vcmask 39936
  %v229 = vsel %vm227, %v189, 0
  %v232 = vsel %vm227, %v190, 0
  %vm234 = vcmask 1044480
  %v236 = vsel %vm234, %v191, 0
  %238 = vmatpush.msra.mxu0 0.0
  %239 = vmatpush.msra.mxu0 0.0
  %240 = vmatpush.msra.mxu0 0.0
  %241 = vmatpush.msra.mxu0 0.0
  %242 = vmatpush.msra.mxu0 0.0
  %243 = vmatpush.msra.mxu0 0.0
  %244 = vmatpush.msra.mxu0 0.0
  %245 = vmatpush.msra.mxu0 0.0
  %246 = vmatpush.msra.mxu0 0.0
  %247 = vmatpush.msra.mxu0 0.0
  %248 = vmatpush.msra.mxu0 0.0
  %249 = vmatpush.msra.mxu0 0.0
  %250 = vmatpush.msra.mxu0 0.0
  %251 = vmatpush.msra.mxu0 0.0
  %252 = vmatpush.msra.mxu0 0.0
  %253 = vmatpush.msra.mxu0 %v236
  %254 = vmatmul.f32.gmra.mxu0 %v229
  %v255 = vpop.f32.mrf.mxu0
  %v256 = vadd.f32 %v222, %v255
  %257 = vmatmul.f32.gmra.mxu0 %v232
  %v258 = vpop.f32.mrf.mxu0
  %v259 = vadd.f32 %v225, %v258
  %260 = vdwg.mxu0
  %vm261 = vcmask 15360
  %v263 = vsel %vm261, %v126, 0
  %v266 = vsel %vm261, %v127, 0
  %vm268 = vcmask 1041408
  %v270 = vsel %vm268, %v187, 0
  %272 = vmatpush.msra.mxu0 0.0
  %273 = vmatpush.msra.mxu0 0.0
  %274 = vmatpush.msra.mxu0 0.0
  %275 = vmatpush.msra.mxu0 0.0
  %276 = vmatpush.msra.mxu0 0.0
  %277 = vmatpush.msra.mxu0 0.0
  %278 = vmatpush.msra.mxu0 0.0
  %279 = vmatpush.msra.mxu0 0.0
  %280 = vmatpush.msra.mxu0 0.0
  %281 = vmatpush.msra.mxu0 0.0
  %282 = vmatpush.msra.mxu0 0.0
  %283 = vmatpush.msra.mxu0 0.0
  %284 = vmatpush.msra.mxu0 0.0
  %285 = vmatpush.msra.mxu0 0.0
  %286 = vmatpush.msra.mxu0 0.0
  %287 = vmatpush.msra.mxu0 %v270
  %288 = vmatmul.f32.gmra.mxu0 %v263
  %v289 = vpop.f32.mrf.mxu0
  %v290 = vadd.f32 0.0, %v289
  %291 = vmatmul.f32.gmra.mxu0 %v266
  %v292 = vpop.f32.mrf.mxu0
  %v293 = vadd.f32 0.0, %v292
  %294 = vdwg.mxu0
  %v295 = vadd.f32 %v256, %v290
  %v296 = vadd.f32 %v259, %v293
  %v297 = vld [vmem:[%s23] sm:$0x1]
  %v299 = vperm.slane %v297, 0
  %v301 = vadd.f32 %v295, %v299
  %v302 = vadd.f32 %v296, %v299
  %v303 = vld [vmem:[%s25] sm:$0x1]
  %v304 = vld [vmem:[%s27] sm:$0x1]
  %vm305 = vcmask 261120
  %v306 = vsel %vm305, %v301, 0.0
  %307 = vadd.xlane.f32.xlu0 %v306
  %v308 = vpop.xlane.xlu0 %307
  %v309 = vsel %vm305, %v302, 0.0
  %310 = vadd.xlane.f32.xlu0 %v309
  %v311 = vpop.xlane.xlu0 %310
  %v312 = vrcp.pop 32.0
  %v313 = vmul.f32 32.0, %v312
  %v314 = vsub.f32 1.0, %v313
  %v315 = vmul.f32 %v312, %v314
  %v316 = vadd.f32 %v312, %v315
  %vm317 = vweird.f32 %v312
  %v318 = vsel %vm317, %v312, %v316
  %v319 = vmul.f32 %v308, %v318
  %v320 = vmul.f32 %v311, %v318
  %v321 = vsub.f32 %v301, %v319
  %v322 = vsub.f32 %v302, %v320
  %v323 = vmul.f32 %v321, %v321
  %v324 = vmul.f32 %v322, %v322
  %v325 = vsel %vm305, %v323, 0.0
  %326 = vadd.xlane.f32.xlu0 %v325
  %v327 = vpop.xlane.xlu0 %326
  %v328 = vsel %vm305, %v324, 0.0
  %329 = vadd.xlane.f32.xlu0 %v328
  %v330 = vpop.xlane.xlu0 %329
  %v331 = vmul.f32 %v327, %v318
  %v332 = vmul.f32 %v330, %v318
  %v333 = vadd.f32 %v331, 1e-05
  %v334 = vadd.f32 %v332, 1e-05
  %v335 = vrsqrt.pop %v333
  %v336 = vmul.f32 %v335, %v333
  %v337 = vmul.f32 %v336, %v335
  %v338 = vmul.f32 0.5, %v337
  %v339 = vsub.f32 1.5, %v338
  %v340 = vmul.f32 %v335, %v339
  %vm341 = vweird.f32 %v333
  %vm342 = vweird.f32 %v335
  %vm343 = vmor %vm341, %vm342
  %v344 = vsel %vm343, %v335, %v340
  %v345 = vrsqrt.pop %v334
  %v346 = vmul.f32 %v345, %v334
  %v347 = vmul.f32 %v346, %v345
  %v348 = vmul.f32 0.5, %v347
  %v349 = vsub.f32 1.5, %v348
  %v350 = vmul.f32 %v345, %v349
  %vm351 = vweird.f32 %v334
  %vm352 = vweird.f32 %v345
  %vm353 = vmor %vm351, %vm352
  %v354 = vsel %vm353, %v345, %v350
  %v355 = vmul.f32 %v321, %v344
  %v356 = vmul.f32 %v322, %v354
  %v358 = vperm.slane %v303, 0
  %v360 = vmul.f32 %v355, %v358
  %v361 = vmul.f32 %v356, %v358
  %v363 = vperm.slane %v304, 0
  %v365 = vadd.f32 %v360, %v363
  %v366 = vadd.f32 %v361, %v363
  %v367 = vld [vmem:[%s29] sm:$0xff]
  %v368 = vld [vmem:[%s29 + $0x8] sm:$0xff]
  %v369 = vld [vmem:[%s29 + $0x10] sm:$0xff]
  %v370 = vld [vmem:[%s29 + $0x18] sm:$0xff]
  %v371 = vld [vmem:[%s31] sm:$0x1]
  %v373 = vperm.slane %v371, 0
  %v376 = vsel %vm305, %v365, 0
  %v379 = vsel %vm305, %v366, 0
  %381 = vmatpush.msra.mxu0 0.0
  %382 = vmatpush.msra.mxu0 0.0
  %383 = vmatpush.msra.mxu0 0.0
  %384 = vmatpush.msra.mxu0 0.0
  %385 = vmatpush.msra.mxu0 0.0
  %386 = vmatpush.msra.mxu0 0.0
  %387 = vmatpush.msra.mxu0 0.0
  %388 = vmatpush.msra.mxu0 0.0
  %389 = vmatpush.msra.mxu0 0.0
  %390 = vmatpush.msra.mxu0 0.0
  %391 = vmatpush.msra.mxu0 0.0
  %392 = vmatpush.msra.mxu0 0.0
  %393 = vmatpush.msra.mxu0 %v370
  %394 = vmatpush.msra.mxu0 %v369
  %395 = vmatpush.msra.mxu0 %v368
  %396 = vmatpush.msra.mxu0 %v367
  %397 = vmatmul.f32.gmra.mxu0 %v376
  %v398 = vpop.f32.mrf.mxu0
  %v399 = vadd.f32 %v373, %v398
  %400 = vmatmul.f32.gmra.mxu0 %v379
  %v401 = vpop.f32.mrf.mxu0
  %v402 = vadd.f32 %v373, %v401
  %403 = vdwg.mxu0
  %v404 = vmul.f32 %v399, 0.35355338
  %v405 = vmul.f32 %v402, 0.35355338
  %v406 = vld [vmem:[%s33] sm:$0xff]
  %v407 = vld [vmem:[%s33 + $0x8] sm:$0xff]
  %v408 = vld [vmem:[%s33 + $0x10] sm:$0xff]
  %v409 = vld [vmem:[%s33 + $0x18] sm:$0xff]
  %410 = vmatpush.msra.mxu0 0.0
  %411 = vmatpush.msra.mxu0 0.0
  %412 = vmatpush.msra.mxu0 0.0
  %413 = vmatpush.msra.mxu0 0.0
  %414 = vmatpush.msra.mxu0 0.0
  %415 = vmatpush.msra.mxu0 0.0
  %416 = vmatpush.msra.mxu0 0.0
  %417 = vmatpush.msra.mxu0 0.0
  %418 = vmatpush.msra.mxu0 0.0
  %419 = vmatpush.msra.mxu0 0.0
  %420 = vmatpush.msra.mxu0 0.0
  %421 = vmatpush.msra.mxu0 0.0
  %422 = vmatpush.msra.mxu0 %v409
  %423 = vmatpush.msra.mxu0 %v408
  %424 = vmatpush.msra.mxu0 %v407
  %425 = vmatpush.msra.mxu0 %v406
  %426 = vmatmul.f32.gmra.mxu0 %v376
  %v427 = vpop.f32.mrf.mxu0
  %v428 = vadd.f32 0.0, %v427
  %429 = vmatmul.f32.gmra.mxu0 %v379
  %v430 = vpop.f32.mrf.mxu0
  %v431 = vadd.f32 0.0, %v430
  %432 = vdwg.mxu0
  %v433 = vld [vmem:[%s35] sm:$0xff]
  %v434 = vld [vmem:[%s35 + $0x8] sm:$0xff]
  %v435 = vld [vmem:[%s35 + $0x10] sm:$0xff]
  %v436 = vld [vmem:[%s35 + $0x18] sm:$0xff]
  %v437 = vld [vmem:[%s37] sm:$0x1]
  %v439 = vperm.slane %v437, 0
  %441 = vmatpush.msra.mxu0 0.0
  %442 = vmatpush.msra.mxu0 0.0
  %443 = vmatpush.msra.mxu0 0.0
  %444 = vmatpush.msra.mxu0 0.0
  %445 = vmatpush.msra.mxu0 0.0
  %446 = vmatpush.msra.mxu0 0.0
  %447 = vmatpush.msra.mxu0 0.0
  %448 = vmatpush.msra.mxu0 0.0
  %449 = vmatpush.msra.mxu0 0.0
  %450 = vmatpush.msra.mxu0 0.0
  %451 = vmatpush.msra.mxu0 0.0
  %452 = vmatpush.msra.mxu0 0.0
  %453 = vmatpush.msra.mxu0 %v436
  %454 = vmatpush.msra.mxu0 %v435
  %455 = vmatpush.msra.mxu0 %v434
  %456 = vmatpush.msra.mxu0 %v433
  %457 = vmatmul.f32.gmra.mxu0 %v376
  %v458 = vpop.f32.mrf.mxu0
  %v459 = vadd.f32 %v439, %v458
  %460 = vmatmul.f32.gmra.mxu0 %v379
  %v461 = vpop.f32.mrf.mxu0
  %v462 = vadd.f32 %v439, %v461
  %463 = vdwg.mxu0
  %vm464 = vcmask 64512
  %v466 = vsel %vm464, %v404, 0
  %v469 = vsel %vm464, %v405, 0
  %v472 = vsel %vm464, %v428, 0
  %v475 = vsel %vm464, %v431, 0
  %477 = vmatpush.xpose.msra.mxu0 0.0
  %478 = vmatpush.xpose.msra.mxu0 0.0
  %479 = vmatpush.xpose.msra.mxu0 0.0
  %480 = vmatpush.xpose.msra.mxu0 0.0
  %481 = vmatpush.xpose.msra.mxu0 0.0
  %482 = vmatpush.xpose.msra.mxu0 0.0
  %483 = vmatpush.xpose.msra.mxu0 0.0
  %484 = vmatpush.xpose.msra.mxu0 0.0
  %485 = vmatpush.xpose.msra.mxu0 0.0
  %486 = vmatpush.xpose.msra.mxu0 0.0
  %487 = vmatpush.xpose.msra.mxu0 0.0
  %488 = vmatpush.xpose.msra.mxu0 0.0
  %489 = vmatpush.xpose.msra.mxu0 0.0
  %490 = vmatpush.xpose.msra.mxu0 0.0
  %491 = vmatpush.xpose.msra.mxu0 %v475
  %492 = vmatpush.xpose.msra.mxu0 %v472
  %493 = vmatmul.f32.gmra.mxu0 %v466
  %v494 = vpop.f32.mrf.mxu0
  %v495 = vadd.f32 %v124, %v494
  %496 = vmatmul.f32.gmra.mxu0 %v469
  %v497 = vpop.f32.mrf.mxu0
  %v498 = vadd.f32 %v125, %v497
  %499 = vdwg.mxu0
  %vm500 = vcmask 130048
  %v501 = vsel %vm500, %v495, -inf
  %502 = vmax.xlane.f32.xlu0 %v501
  %v503 = vpop.xlane.xlu0 %502
  %v504 = vsel %vm500, %v498, -inf
  %505 = vmax.xlane.f32.xlu0 %v504
  %v506 = vpop.xlane.xlu0 %505
  %v507 = vsub.f32 %v495, %v503
  %v508 = vsub.f32 %v498, %v506
  %v509 = vmul.f32 %v507, 1.442695
  %v510 = vpow.pop %v509
  %v511 = vmul.f32 %v508, 1.442695
  %v512 = vpow.pop %v511
  %v513 = vsel %vm500, %v510, 0.0
  %514 = vadd.xlane.f32.xlu0 %v513
  %v515 = vpop.xlane.xlu0 %514
  %v516 = vsel %vm500, %v512, 0.0
  %517 = vadd.xlane.f32.xlu0 %v516
  %v518 = vpop.xlane.xlu0 %517
  %v519 = vrcp.pop %v515
  %v520 = vrcp.pop %v518
  %v521 = vmul.f32 %v510, %v519
  %v522 = vmul.f32 %v512, %v520
  %v524 = vsel %vm500, %v521, 0
  %v527 = vsel %vm500, %v522, 0
  %529 = vmatpush.msra.mxu0 0.0
  %530 = vmatpush.msra.mxu0 0.0
  %531 = vmatpush.msra.mxu0 0.0
  %532 = vmatpush.msra.mxu0 0.0
  %533 = vmatpush.msra.mxu0 0.0
  %534 = vmatpush.msra.mxu0 0.0
  %535 = vmatpush.msra.mxu0 0.0
  %536 = vmatpush.msra.mxu0 0.0
  %537 = vmatpush.msra.mxu0 0.0
  %538 = vmatpush.msra.mxu0 0.0
  %539 = vmatpush.msra.mxu0 0.0
  %540 = vmatpush.msra.mxu0 0.0
  %541 = vmatpush.msra.mxu0 0.0
  %542 = vmatpush.msra.mxu0 0.0
  %543 = vmatpush.msra.mxu0 %v462
  %544 = vmatpush.msra.mxu0 %v459
  %545 = vmatmul.f32.gmra.mxu0 %v524
  %v546 = vpop.f32.mrf.mxu0
  %v547 = vadd.f32 0.0, %v546
  %548 = vmatmul.f32.gmra.mxu0 %v527
  %v549 = vpop.f32.mrf.mxu0
  %v550 = vadd.f32 0.0, %v549
  %551 = vdwg.mxu0
  %v552 = vld [vmem:[%s39] sm:$0xff]
  %s553 = scalar_lea.vmem %s29, 32
  %v554 = vld [vmem:[%s553] sm:$0xff]
  %v555 = vld [vmem:[%s553 + $0x8] sm:$0xff]
  %v556 = vld [vmem:[%s553 + $0x10] sm:$0xff]
  %v557 = vld [vmem:[%s553 + $0x18] sm:$0xff]
  %s558 = scalar_lea.vmem %s31, 1
  %v559 = vld [vmem:[%s558] sm:$0x1]
  %v561 = vperm.slane %v559, 0
  %563 = vmatpush.msra.mxu0 0.0
  %564 = vmatpush.msra.mxu0 0.0
  %565 = vmatpush.msra.mxu0 0.0
  %566 = vmatpush.msra.mxu0 0.0
  %567 = vmatpush.msra.mxu0 0.0
  %568 = vmatpush.msra.mxu0 0.0
  %569 = vmatpush.msra.mxu0 0.0
  %570 = vmatpush.msra.mxu0 0.0
  %571 = vmatpush.msra.mxu0 0.0
  %572 = vmatpush.msra.mxu0 0.0
  %573 = vmatpush.msra.mxu0 0.0
  %574 = vmatpush.msra.mxu0 0.0
  %575 = vmatpush.msra.mxu0 %v557
  %576 = vmatpush.msra.mxu0 %v556
  %577 = vmatpush.msra.mxu0 %v555
  %578 = vmatpush.msra.mxu0 %v554
  %579 = vmatmul.f32.gmra.mxu0 %v376
  %v580 = vpop.f32.mrf.mxu0
  %v581 = vadd.f32 %v561, %v580
  %582 = vmatmul.f32.gmra.mxu0 %v379
  %v583 = vpop.f32.mrf.mxu0
  %v584 = vadd.f32 %v561, %v583
  %585 = vdwg.mxu0
  %v586 = vmul.f32 %v581, 0.35355338
  %v587 = vmul.f32 %v584, 0.35355338
  %s588 = scalar_lea.vmem %s33, 32
  %v589 = vld [vmem:[%s588] sm:$0xff]
  %v590 = vld [vmem:[%s588 + $0x8] sm:$0xff]
  %v591 = vld [vmem:[%s588 + $0x10] sm:$0xff]
  %v592 = vld [vmem:[%s588 + $0x18] sm:$0xff]
  %593 = vmatpush.msra.mxu0 0.0
  %594 = vmatpush.msra.mxu0 0.0
  %595 = vmatpush.msra.mxu0 0.0
  %596 = vmatpush.msra.mxu0 0.0
  %597 = vmatpush.msra.mxu0 0.0
  %598 = vmatpush.msra.mxu0 0.0
  %599 = vmatpush.msra.mxu0 0.0
  %600 = vmatpush.msra.mxu0 0.0
  %601 = vmatpush.msra.mxu0 0.0
  %602 = vmatpush.msra.mxu0 0.0
  %603 = vmatpush.msra.mxu0 0.0
  %604 = vmatpush.msra.mxu0 0.0
  %605 = vmatpush.msra.mxu0 %v592
  %606 = vmatpush.msra.mxu0 %v591
  %607 = vmatpush.msra.mxu0 %v590
  %608 = vmatpush.msra.mxu0 %v589
  %609 = vmatmul.f32.gmra.mxu0 %v376
  %v610 = vpop.f32.mrf.mxu0
  %v611 = vadd.f32 0.0, %v610
  %612 = vmatmul.f32.gmra.mxu0 %v379
  %v613 = vpop.f32.mrf.mxu0
  %v614 = vadd.f32 0.0, %v613
  %615 = vdwg.mxu0
  %s616 = scalar_lea.vmem %s35, 32
  %v617 = vld [vmem:[%s616] sm:$0xff]
  %v618 = vld [vmem:[%s616 + $0x8] sm:$0xff]
  %v619 = vld [vmem:[%s616 + $0x10] sm:$0xff]
  %v620 = vld [vmem:[%s616 + $0x18] sm:$0xff]
  %s621 = scalar_lea.vmem %s37, 1
  %v622 = vld [vmem:[%s621] sm:$0x1]
  %v624 = vperm.slane %v622, 0
  %626 = vmatpush.msra.mxu0 0.0
  %627 = vmatpush.msra.mxu0 0.0
  %628 = vmatpush.msra.mxu0 0.0
  %629 = vmatpush.msra.mxu0 0.0
  %630 = vmatpush.msra.mxu0 0.0
  %631 = vmatpush.msra.mxu0 0.0
  %632 = vmatpush.msra.mxu0 0.0
  %633 = vmatpush.msra.mxu0 0.0
  %634 = vmatpush.msra.mxu0 0.0
  %635 = vmatpush.msra.mxu0 0.0
  %636 = vmatpush.msra.mxu0 0.0
  %637 = vmatpush.msra.mxu0 0.0
  %638 = vmatpush.msra.mxu0 %v620
  %639 = vmatpush.msra.mxu0 %v619
  %640 = vmatpush.msra.mxu0 %v618
  %641 = vmatpush.msra.mxu0 %v617
  %642 = vmatmul.f32.gmra.mxu0 %v376
  %v643 = vpop.f32.mrf.mxu0
  %v644 = vadd.f32 %v624, %v643
  %645 = vmatmul.f32.gmra.mxu0 %v379
  %v646 = vpop.f32.mrf.mxu0
  %v647 = vadd.f32 %v624, %v646
  %648 = vdwg.mxu0
  %v650 = vsel %vm464, %v586, 0
  %v653 = vsel %vm464, %v587, 0
  %v656 = vsel %vm464, %v611, 0
  %v659 = vsel %vm464, %v614, 0
  %661 = vmatpush.xpose.msra.mxu0 0.0
  %662 = vmatpush.xpose.msra.mxu0 0.0
  %663 = vmatpush.xpose.msra.mxu0 0.0
  %664 = vmatpush.xpose.msra.mxu0 0.0
  %665 = vmatpush.xpose.msra.mxu0 0.0
  %666 = vmatpush.xpose.msra.mxu0 0.0
  %667 = vmatpush.xpose.msra.mxu0 0.0
  %668 = vmatpush.xpose.msra.mxu0 0.0
  %669 = vmatpush.xpose.msra.mxu0 0.0
  %670 = vmatpush.xpose.msra.mxu0 0.0
  %671 = vmatpush.xpose.msra.mxu0 0.0
  %672 = vmatpush.xpose.msra.mxu0 0.0
  %673 = vmatpush.xpose.msra.mxu0 0.0
  %674 = vmatpush.xpose.msra.mxu0 0.0
  %675 = vmatpush.xpose.msra.mxu0 %v659
  %676 = vmatpush.xpose.msra.mxu0 %v656
  %677 = vmatmul.f32.gmra.mxu0 %v650
  %v678 = vpop.f32.mrf.mxu0
  %v679 = vadd.f32 %v124, %v678
  %680 = vmatmul.f32.gmra.mxu0 %v653
  %v681 = vpop.f32.mrf.mxu0
  %v682 = vadd.f32 %v125, %v681
  %683 = vdwg.mxu0
  %v684 = vsel %vm500, %v679, -inf
  %685 = vmax.xlane.f32.xlu0 %v684
  %v686 = vpop.xlane.xlu0 %685
  %v687 = vsel %vm500, %v682, -inf
  %688 = vmax.xlane.f32.xlu0 %v687
  %v689 = vpop.xlane.xlu0 %688
  %v690 = vsub.f32 %v679, %v686
  %v691 = vsub.f32 %v682, %v689
  %v692 = vmul.f32 %v690, 1.442695
  %v693 = vpow.pop %v692
  %v694 = vmul.f32 %v691, 1.442695
  %v695 = vpow.pop %v694
  %v696 = vsel %vm500, %v693, 0.0
  %697 = vadd.xlane.f32.xlu0 %v696
  %v698 = vpop.xlane.xlu0 %697
  %v699 = vsel %vm500, %v695, 0.0
  %700 = vadd.xlane.f32.xlu0 %v699
  %v701 = vpop.xlane.xlu0 %700
  %v702 = vrcp.pop %v698
  %v703 = vrcp.pop %v701
  %v704 = vmul.f32 %v693, %v702
  %v705 = vmul.f32 %v695, %v703
  %v707 = vsel %vm500, %v704, 0
  %v710 = vsel %vm500, %v705, 0
  %712 = vmatpush.msra.mxu0 0.0
  %713 = vmatpush.msra.mxu0 0.0
  %714 = vmatpush.msra.mxu0 0.0
  %715 = vmatpush.msra.mxu0 0.0
  %716 = vmatpush.msra.mxu0 0.0
  %717 = vmatpush.msra.mxu0 0.0
  %718 = vmatpush.msra.mxu0 0.0
  %719 = vmatpush.msra.mxu0 0.0
  %720 = vmatpush.msra.mxu0 0.0
  %721 = vmatpush.msra.mxu0 0.0
  %722 = vmatpush.msra.mxu0 0.0
  %723 = vmatpush.msra.mxu0 0.0
  %724 = vmatpush.msra.mxu0 0.0
  %725 = vmatpush.msra.mxu0 0.0
  %726 = vmatpush.msra.mxu0 %v647
  %727 = vmatpush.msra.mxu0 %v644
  %728 = vmatmul.f32.gmra.mxu0 %v707
  %v729 = vpop.f32.mrf.mxu0
  %v730 = vadd.f32 0.0, %v729
  %731 = vmatmul.f32.gmra.mxu0 %v710
  %v732 = vpop.f32.mrf.mxu0
  %v733 = vadd.f32 0.0, %v732
  %734 = vdwg.mxu0
  %s735 = scalar_lea.vmem %s39, 8
  %v736 = vld [vmem:[%s735] sm:$0xff]
  %v738 = vsel %vm464, %v730, 0
  %v741 = vsel %vm464, %v733, 0
  %743 = vmatpush.msra.mxu0 0.0
  %744 = vmatpush.msra.mxu0 0.0
  %745 = vmatpush.msra.mxu0 0.0
  %746 = vmatpush.msra.mxu0 0.0
  %747 = vmatpush.msra.mxu0 0.0
  %748 = vmatpush.msra.mxu0 0.0
  %749 = vmatpush.msra.mxu0 0.0
  %750 = vmatpush.msra.mxu0 0.0
  %751 = vmatpush.msra.mxu0 0.0
  %752 = vmatpush.msra.mxu0 0.0
  %753 = vmatpush.msra.mxu0 0.0
  %754 = vmatpush.msra.mxu0 0.0
  %755 = vmatpush.msra.mxu0 0.0
  %756 = vmatpush.msra.mxu0 0.0
  %757 = vmatpush.msra.mxu0 0.0
  %758 = vmatpush.msra.mxu0 %v736
  %759 = vmatmul.f32.gmra.mxu0 %v738
  %v760 = vpop.f32.mrf.mxu0
  %v761 = vadd.f32 0.0, %v760
  %762 = vmatmul.f32.gmra.mxu0 %v741
  %v763 = vpop.f32.mrf.mxu0
  %v764 = vadd.f32 0.0, %v763
  %765 = vdwg.mxu0
  %v767 = vsel %vm464, %v547, 0
  %v770 = vsel %vm464, %v550, 0
  %772 = vmatpush.msra.mxu0 0.0
  %773 = vmatpush.msra.mxu0 0.0
  %774 = vmatpush.msra.mxu0 0.0
  %775 = vmatpush.msra.mxu0 0.0
  %776 = vmatpush.msra.mxu0 0.0
  %777 = vmatpush.msra.mxu0 0.0
  %778 = vmatpush.msra.mxu0 0.0
  %779 = vmatpush.msra.mxu0 0.0
  %780 = vmatpush.msra.mxu0 0.0
  %781 = vmatpush.msra.mxu0 0.0
  %782 = vmatpush.msra.mxu0 0.0
  %783 = vmatpush.msra.mxu0 0.0
  %784 = vmatpush.msra.mxu0 0.0
  %785 = vmatpush.msra.mxu0 0.0
  %786 = vmatpush.msra.mxu0 0.0
  %787 = vmatpush.msra.mxu0 %v552
  %788 = vmatmul.f32.gmra.mxu0 %v767
  %v789 = vpop.f32.mrf.mxu0
  %v790 = vadd.f32 %v761, %v789
  %791 = vmatmul.f32.gmra.mxu0 %v770
  %v792 = vpop.f32.mrf.mxu0
  %v793 = vadd.f32 %v764, %v792
  %794 = vdwg.mxu0
  %s795 = scalar_lea.vmem %s29, 64
  %v796 = vld [vmem:[%s795] sm:$0xff]
  %v797 = vld [vmem:[%s795 + $0x8] sm:$0xff]
  %v798 = vld [vmem:[%s795 + $0x10] sm:$0xff]
  %v799 = vld [vmem:[%s795 + $0x18] sm:$0xff]
  %s800 = scalar_lea.vmem %s31, 2
  %v801 = vld [vmem:[%s800] sm:$0x1]
  %v803 = vperm.slane %v801, 0
  %805 = vmatpush.msra.mxu0 0.0
  %806 = vmatpush.msra.mxu0 0.0
  %807 = vmatpush.msra.mxu0 0.0
  %808 = vmatpush.msra.mxu0 0.0
  %809 = vmatpush.msra.mxu0 0.0
  %810 = vmatpush.msra.mxu0 0.0
  %811 = vmatpush.msra.mxu0 0.0
  %812 = vmatpush.msra.mxu0 0.0
  %813 = vmatpush.msra.mxu0 0.0
  %814 = vmatpush.msra.mxu0 0.0
  %815 = vmatpush.msra.mxu0 0.0
  %816 = vmatpush.msra.mxu0 0.0
  %817 = vmatpush.msra.mxu0 %v799
  %818 = vmatpush.msra.mxu0 %v798
  %819 = vmatpush.msra.mxu0 %v797
  %820 = vmatpush.msra.mxu0 %v796
  %821 = vmatmul.f32.gmra.mxu0 %v376
  %v822 = vpop.f32.mrf.mxu0
  %v823 = vadd.f32 %v803, %v822
  %824 = vmatmul.f32.gmra.mxu0 %v379
  %v825 = vpop.f32.mrf.mxu0
  %v826 = vadd.f32 %v803, %v825
  %827 = vdwg.mxu0
  %v828 = vmul.f32 %v823, 0.35355338
  %v829 = vmul.f32 %v826, 0.35355338
  %s830 = scalar_lea.vmem %s33, 64
  %v831 = vld [vmem:[%s830] sm:$0xff]
  %v832 = vld [vmem:[%s830 + $0x8] sm:$0xff]
  %v833 = vld [vmem:[%s830 + $0x10] sm:$0xff]
  %v834 = vld [vmem:[%s830 + $0x18] sm:$0xff]
  %835 = vmatpush.msra.mxu0 0.0
  %836 = vmatpush.msra.mxu0 0.0
  %837 = vmatpush.msra.mxu0 0.0
  %838 = vmatpush.msra.mxu0 0.0
  %839 = vmatpush.msra.mxu0 0.0
  %840 = vmatpush.msra.mxu0 0.0
  %841 = vmatpush.msra.mxu0 0.0
  %842 = vmatpush.msra.mxu0 0.0
  %843 = vmatpush.msra.mxu0 0.0
  %844 = vmatpush.msra.mxu0 0.0
  %845 = vmatpush.msra.mxu0 0.0
  %846 = vmatpush.msra.mxu0 0.0
  %847 = vmatpush.msra.mxu0 %v834
  %848 = vmatpush.msra.mxu0 %v833
  %849 = vmatpush.msra.mxu0 %v832
  %850 = vmatpush.msra.mxu0 %v831
  %851 = vmatmul.f32.gmra.mxu0 %v376
  %v852 = vpop.f32.mrf.mxu0
  %v853 = vadd.f32 0.0, %v852
  %854 = vmatmul.f32.gmra.mxu0 %v379
  %v855 = vpop.f32.mrf.mxu0
  %v856 = vadd.f32 0.0, %v855
  %857 = vdwg.mxu0
  %s858 = scalar_lea.vmem %s35, 64
  %v859 = vld [vmem:[%s858] sm:$0xff]
  %v860 = vld [vmem:[%s858 + $0x8] sm:$0xff]
  %v861 = vld [vmem:[%s858 + $0x10] sm:$0xff]
  %v862 = vld [vmem:[%s858 + $0x18] sm:$0xff]
  %s863 = scalar_lea.vmem %s37, 2
  %v864 = vld [vmem:[%s863] sm:$0x1]
  %v866 = vperm.slane %v864, 0
  %868 = vmatpush.msra.mxu0 0.0
  %869 = vmatpush.msra.mxu0 0.0
  %870 = vmatpush.msra.mxu0 0.0
  %871 = vmatpush.msra.mxu0 0.0
  %872 = vmatpush.msra.mxu0 0.0
  %873 = vmatpush.msra.mxu0 0.0
  %874 = vmatpush.msra.mxu0 0.0
  %875 = vmatpush.msra.mxu0 0.0
  %876 = vmatpush.msra.mxu0 0.0
  %877 = vmatpush.msra.mxu0 0.0
  %878 = vmatpush.msra.mxu0 0.0
  %879 = vmatpush.msra.mxu0 0.0
  %880 = vmatpush.msra.mxu0 %v862
  %881 = vmatpush.msra.mxu0 %v861
  %882 = vmatpush.msra.mxu0 %v860
  %883 = vmatpush.msra.mxu0 %v859
  %884 = vmatmul.f32.gmra.mxu0 %v376
  %v885 = vpop.f32.mrf.mxu0
  %v886 = vadd.f32 %v866, %v885
  %887 = vmatmul.f32.gmra.mxu0 %v379
  %v888 = vpop.f32.mrf.mxu0
  %v889 = vadd.f32 %v866, %v888
  %890 = vdwg.mxu0
  %v892 = vsel %vm464, %v828, 0
  %v895 = vsel %vm464, %v829, 0
  %v898 = vsel %vm464, %v853, 0
  %v901 = vsel %vm464, %v856, 0
  %903 = vmatpush.xpose.msra.mxu0 0.0
  %904 = vmatpush.xpose.msra.mxu0 0.0
  %905 = vmatpush.xpose.msra.mxu0 0.0
  %906 = vmatpush.xpose.msra.mxu0 0.0
  %907 = vmatpush.xpose.msra.mxu0 0.0
  %908 = vmatpush.xpose.msra.mxu0 0.0
  %909 = vmatpush.xpose.msra.mxu0 0.0
  %910 = vmatpush.xpose.msra.mxu0 0.0
  %911 = vmatpush.xpose.msra.mxu0 0.0
  %912 = vmatpush.xpose.msra.mxu0 0.0
  %913 = vmatpush.xpose.msra.mxu0 0.0
  %914 = vmatpush.xpose.msra.mxu0 0.0
  %915 = vmatpush.xpose.msra.mxu0 0.0
  %916 = vmatpush.xpose.msra.mxu0 0.0
  %917 = vmatpush.xpose.msra.mxu0 %v901
  %918 = vmatpush.xpose.msra.mxu0 %v898
  %919 = vmatmul.f32.gmra.mxu0 %v892
  %v920 = vpop.f32.mrf.mxu0
  %v921 = vadd.f32 %v124, %v920
  %922 = vmatmul.f32.gmra.mxu0 %v895
  %v923 = vpop.f32.mrf.mxu0
  %v924 = vadd.f32 %v125, %v923
  %925 = vdwg.mxu0
  %v926 = vsel %vm500, %v921, -inf
  %927 = vmax.xlane.f32.xlu0 %v926
  %v928 = vpop.xlane.xlu0 %927
  %v929 = vsel %vm500, %v924, -inf
  %930 = vmax.xlane.f32.xlu0 %v929
  %v931 = vpop.xlane.xlu0 %930
  %v932 = vsub.f32 %v921, %v928
  %v933 = vsub.f32 %v924, %v931
  %v934 = vmul.f32 %v932, 1.442695
  %v935 = vpow.pop %v934
  %v936 = vmul.f32 %v933, 1.442695
  %v937 = vpow.pop %v936
  %v938 = vsel %vm500, %v935, 0.0
  %939 = vadd.xlane.f32.xlu0 %v938
  %v940 = vpop.xlane.xlu0 %939
  %v941 = vsel %vm500, %v937, 0.0
  %942 = vadd.xlane.f32.xlu0 %v941
  %v943 = vpop.xlane.xlu0 %942
  %v944 = vrcp.pop %v940
  %v945 = vrcp.pop %v943
  %v946 = vmul.f32 %v935, %v944
  %v947 = vmul.f32 %v937, %v945
  %v949 = vsel %vm500, %v946, 0
  %v952 = vsel %vm500, %v947, 0
  %954 = vmatpush.msra.mxu0 0.0
  %955 = vmatpush.msra.mxu0 0.0
  %956 = vmatpush.msra.mxu0 0.0
  %957 = vmatpush.msra.mxu0 0.0
  %958 = vmatpush.msra.mxu0 0.0
  %959 = vmatpush.msra.mxu0 0.0
  %960 = vmatpush.msra.mxu0 0.0
  %961 = vmatpush.msra.mxu0 0.0
  %962 = vmatpush.msra.mxu0 0.0
  %963 = vmatpush.msra.mxu0 0.0
  %964 = vmatpush.msra.mxu0 0.0
  %965 = vmatpush.msra.mxu0 0.0
  %966 = vmatpush.msra.mxu0 0.0
  %967 = vmatpush.msra.mxu0 0.0
  %968 = vmatpush.msra.mxu0 %v889
  %969 = vmatpush.msra.mxu0 %v886
  %970 = vmatmul.f32.gmra.mxu0 %v949
  %v971 = vpop.f32.mrf.mxu0
  %v972 = vadd.f32 0.0, %v971
  %973 = vmatmul.f32.gmra.mxu0 %v952
  %v974 = vpop.f32.mrf.mxu0
  %v975 = vadd.f32 0.0, %v974
  %976 = vdwg.mxu0
  %s977 = scalar_lea.vmem %s39, 16
  %v978 = vld [vmem:[%s977] sm:$0xff]
  %v980 = vsel %vm464, %v972, 0
  %v983 = vsel %vm464, %v975, 0
  %985 = vmatpush.msra.mxu0 0.0
  %986 = vmatpush.msra.mxu0 0.0
  %987 = vmatpush.msra.mxu0 0.0
  %988 = vmatpush.msra.mxu0 0.0
  %989 = vmatpush.msra.mxu0 0.0
  %990 = vmatpush.msra.mxu0 0.0
  %991 = vmatpush.msra.mxu0 0.0
  %992 = vmatpush.msra.mxu0 0.0
  %993 = vmatpush.msra.mxu0 0.0
  %994 = vmatpush.msra.mxu0 0.0
  %995 = vmatpush.msra.mxu0 0.0
  %996 = vmatpush.msra.mxu0 0.0
  %997 = vmatpush.msra.mxu0 0.0
  %998 = vmatpush.msra.mxu0 0.0
  %999 = vmatpush.msra.mxu0 0.0
  %1000 = vmatpush.msra.mxu0 %v978
  %1001 = vmatmul.f32.gmra.mxu0 %v980
  %v1002 = vpop.f32.mrf.mxu0
  %v1003 = vadd.f32 0.0, %v1002
  %1004 = vmatmul.f32.gmra.mxu0 %v983
  %v1005 = vpop.f32.mrf.mxu0
  %v1006 = vadd.f32 0.0, %v1005
  %1007 = vdwg.mxu0
  %v1008 = vadd.f32 %v790, %v1003
  %v1009 = vadd.f32 %v793, %v1006
  %s1010 = scalar_lea.vmem %s29, 96
  %v1011 = vld [vmem:[%s1010] sm:$0xff]
  %v1012 = vld [vmem:[%s1010 + $0x8] sm:$0xff]
  %v1013 = vld [vmem:[%s1010 + $0x10] sm:$0xff]
  %v1014 = vld [vmem:[%s1010 + $0x18] sm:$0xff]
  %s1015 = scalar_lea.vmem %s31, 3
  %v1016 = vld [vmem:[%s1015] sm:$0x1]
  %v1018 = vperm.slane %v1016, 0
  %1020 = vmatpush.msra.mxu0 0.0
  %1021 = vmatpush.msra.mxu0 0.0
  %1022 = vmatpush.msra.mxu0 0.0
  %1023 = vmatpush.msra.mxu0 0.0
  %1024 = vmatpush.msra.mxu0 0.0
  %1025 = vmatpush.msra.mxu0 0.0
  %1026 = vmatpush.msra.mxu0 0.0
  %1027 = vmatpush.msra.mxu0 0.0
  %1028 = vmatpush.msra.mxu0 0.0
  %1029 = vmatpush.msra.mxu0 0.0
  %1030 = vmatpush.msra.mxu0 0.0
  %1031 = vmatpush.msra.mxu0 0.0
  %1032 = vmatpush.msra.mxu0 %v1014
  %1033 = vmatpush.msra.mxu0 %v1013
  %1034 = vmatpush.msra.mxu0 %v1012
  %1035 = vmatpush.msra.mxu0 %v1011
  %1036 = vmatmul.f32.gmra.mxu0 %v376
  %v1037 = vpop.f32.mrf.mxu0
  %v1038 = vadd.f32 %v1018, %v1037
  %1039 = vmatmul.f32.gmra.mxu0 %v379
  %v1040 = vpop.f32.mrf.mxu0
  %v1041 = vadd.f32 %v1018, %v1040
  %1042 = vdwg.mxu0
  %v1043 = vmul.f32 %v1038, 0.35355338
  %v1044 = vmul.f32 %v1041, 0.35355338
  %s1045 = scalar_lea.vmem %s33, 96
  %v1046 = vld [vmem:[%s1045] sm:$0xff]
  %v1047 = vld [vmem:[%s1045 + $0x8] sm:$0xff]
  %v1048 = vld [vmem:[%s1045 + $0x10] sm:$0xff]
  %v1049 = vld [vmem:[%s1045 + $0x18] sm:$0xff]
  %1050 = vmatpush.msra.mxu0 0.0
  %1051 = vmatpush.msra.mxu0 0.0
  %1052 = vmatpush.msra.mxu0 0.0
  %1053 = vmatpush.msra.mxu0 0.0
  %1054 = vmatpush.msra.mxu0 0.0
  %1055 = vmatpush.msra.mxu0 0.0
  %1056 = vmatpush.msra.mxu0 0.0
  %1057 = vmatpush.msra.mxu0 0.0
  %1058 = vmatpush.msra.mxu0 0.0
  %1059 = vmatpush.msra.mxu0 0.0
  %1060 = vmatpush.msra.mxu0 0.0
  %1061 = vmatpush.msra.mxu0 0.0
  %1062 = vmatpush.msra.mxu0 %v1049
  %1063 = vmatpush.msra.mxu0 %v1048
  %1064 = vmatpush.msra.mxu0 %v1047
  %1065 = vmatpush.msra.mxu0 %v1046
  %1066 = vmatmul.f32.gmra.mxu0 %v376
  %v1067 = vpop.f32.mrf.mxu0
  %v1068 = vadd.f32 0.0, %v1067
  %1069 = vmatmul.f32.gmra.mxu0 %v379
  %v1070 = vpop.f32.mrf.mxu0
  %v1071 = vadd.f32 0.0, %v1070
  %1072 = vdwg.mxu0
  %s1073 = scalar_lea.vmem %s35, 96
  %v1074 = vld [vmem:[%s1073] sm:$0xff]
  %v1075 = vld [vmem:[%s1073 + $0x8] sm:$0xff]
  %v1076 = vld [vmem:[%s1073 + $0x10] sm:$0xff]
  %v1077 = vld [vmem:[%s1073 + $0x18] sm:$0xff]
  %s1078 = scalar_lea.vmem %s37, 3
  %v1079 = vld [vmem:[%s1078] sm:$0x1]
  %v1081 = vperm.slane %v1079, 0
  %1083 = vmatpush.msra.mxu0 0.0
  %1084 = vmatpush.msra.mxu0 0.0
  %1085 = vmatpush.msra.mxu0 0.0
  %1086 = vmatpush.msra.mxu0 0.0
  %1087 = vmatpush.msra.mxu0 0.0
  %1088 = vmatpush.msra.mxu0 0.0
  %1089 = vmatpush.msra.mxu0 0.0
  %1090 = vmatpush.msra.mxu0 0.0
  %1091 = vmatpush.msra.mxu0 0.0
  %1092 = vmatpush.msra.mxu0 0.0
  %1093 = vmatpush.msra.mxu0 0.0
  %1094 = vmatpush.msra.mxu0 0.0
  %1095 = vmatpush.msra.mxu0 %v1077
  %1096 = vmatpush.msra.mxu0 %v1076
  %1097 = vmatpush.msra.mxu0 %v1075
  %1098 = vmatpush.msra.mxu0 %v1074
  %1099 = vmatmul.f32.gmra.mxu0 %v376
  %v1100 = vpop.f32.mrf.mxu0
  %v1101 = vadd.f32 %v1081, %v1100
  %1102 = vmatmul.f32.gmra.mxu0 %v379
  %v1103 = vpop.f32.mrf.mxu0
  %v1104 = vadd.f32 %v1081, %v1103
  %1105 = vdwg.mxu0
  %v1107 = vsel %vm464, %v1043, 0
  %v1110 = vsel %vm464, %v1044, 0
  %v1113 = vsel %vm464, %v1068, 0
  %v1116 = vsel %vm464, %v1071, 0
  %1118 = vmatpush.xpose.msra.mxu0 0.0
  %1119 = vmatpush.xpose.msra.mxu0 0.0
  %1120 = vmatpush.xpose.msra.mxu0 0.0
  %1121 = vmatpush.xpose.msra.mxu0 0.0
  %1122 = vmatpush.xpose.msra.mxu0 0.0
  %1123 = vmatpush.xpose.msra.mxu0 0.0
  %1124 = vmatpush.xpose.msra.mxu0 0.0
  %1125 = vmatpush.xpose.msra.mxu0 0.0
  %1126 = vmatpush.xpose.msra.mxu0 0.0
  %1127 = vmatpush.xpose.msra.mxu0 0.0
  %1128 = vmatpush.xpose.msra.mxu0 0.0
  %1129 = vmatpush.xpose.msra.mxu0 0.0
  %1130 = vmatpush.xpose.msra.mxu0 0.0
  %1131 = vmatpush.xpose.msra.mxu0 0.0
  %1132 = vmatpush.xpose.msra.mxu0 %v1116
  %1133 = vmatpush.xpose.msra.mxu0 %v1113
  %1134 = vmatmul.f32.gmra.mxu0 %v1107
  %v1135 = vpop.f32.mrf.mxu0
  %v1136 = vadd.f32 %v124, %v1135
  %1137 = vmatmul.f32.gmra.mxu0 %v1110
  %v1138 = vpop.f32.mrf.mxu0
  %v1139 = vadd.f32 %v125, %v1138
  %1140 = vdwg.mxu0
  %v1141 = vsel %vm500, %v1136, -inf
  %1142 = vmax.xlane.f32.xlu0 %v1141
  %v1143 = vpop.xlane.xlu0 %1142
  %v1144 = vsel %vm500, %v1139, -inf
  %1145 = vmax.xlane.f32.xlu0 %v1144
  %v1146 = vpop.xlane.xlu0 %1145
  %v1147 = vsub.f32 %v1136, %v1143
  %v1148 = vsub.f32 %v1139, %v1146
  %v1149 = vmul.f32 %v1147, 1.442695
  %v1150 = vpow.pop %v1149
  %v1151 = vmul.f32 %v1148, 1.442695
  %v1152 = vpow.pop %v1151
  %v1153 = vsel %vm500, %v1150, 0.0
  %1154 = vadd.xlane.f32.xlu0 %v1153
  %v1155 = vpop.xlane.xlu0 %1154
  %v1156 = vsel %vm500, %v1152, 0.0
  %1157 = vadd.xlane.f32.xlu0 %v1156
  %v1158 = vpop.xlane.xlu0 %1157
  %v1159 = vrcp.pop %v1155
  %v1160 = vrcp.pop %v1158
  %v1161 = vmul.f32 %v1150, %v1159
  %v1162 = vmul.f32 %v1152, %v1160
  %v1164 = vsel %vm500, %v1161, 0
  %v1167 = vsel %vm500, %v1162, 0
  %1169 = vmatpush.msra.mxu0 0.0
  %1170 = vmatpush.msra.mxu0 0.0
  %1171 = vmatpush.msra.mxu0 0.0
  %1172 = vmatpush.msra.mxu0 0.0
  %1173 = vmatpush.msra.mxu0 0.0
  %1174 = vmatpush.msra.mxu0 0.0
  %1175 = vmatpush.msra.mxu0 0.0
  %1176 = vmatpush.msra.mxu0 0.0
  %1177 = vmatpush.msra.mxu0 0.0
  %1178 = vmatpush.msra.mxu0 0.0
  %1179 = vmatpush.msra.mxu0 0.0
  %1180 = vmatpush.msra.mxu0 0.0
  %1181 = vmatpush.msra.mxu0 0.0
  %1182 = vmatpush.msra.mxu0 0.0
  %1183 = vmatpush.msra.mxu0 %v1104
  %1184 = vmatpush.msra.mxu0 %v1101
  %1185 = vmatmul.f32.gmra.mxu0 %v1164
  %v1186 = vpop.f32.mrf.mxu0
  %v1187 = vadd.f32 0.0, %v1186
  %1188 = vmatmul.f32.gmra.mxu0 %v1167
  %v1189 = vpop.f32.mrf.mxu0
  %v1190 = vadd.f32 0.0, %v1189
  %1191 = vdwg.mxu0
  %s1192 = scalar_lea.vmem %s39, 24
  %v1193 = vld [vmem:[%s1192] sm:$0xff]
  %v1195 = vsel %vm464, %v1187, 0
  %v1198 = vsel %vm464, %v1190, 0
  %1200 = vmatpush.msra.mxu0 0.0
  %1201 = vmatpush.msra.mxu0 0.0
  %1202 = vmatpush.msra.mxu0 0.0
  %1203 = vmatpush.msra.mxu0 0.0
  %1204 = vmatpush.msra.mxu0 0.0
  %1205 = vmatpush.msra.mxu0 0.0
  %1206 = vmatpush.msra.mxu0 0.0
  %1207 = vmatpush.msra.mxu0 0.0
  %1208 = vmatpush.msra.mxu0 0.0
  %1209 = vmatpush.msra.mxu0 0.0
  %1210 = vmatpush.msra.mxu0 0.0
  %1211 = vmatpush.msra.mxu0 0.0
  %1212 = vmatpush.msra.mxu0 0.0
  %1213 = vmatpush.msra.mxu0 0.0
  %1214 = vmatpush.msra.mxu0 0.0
  %1215 = vmatpush.msra.mxu0 %v1193
  %1216 = vmatmul.f32.gmra.mxu0 %v1195
  %v1217 = vpop.f32.mrf.mxu0
  %v1218 = vadd.f32 0.0, %v1217
  %1219 = vmatmul.f32.gmra.mxu0 %v1198
  %v1220 = vpop.f32.mrf.mxu0
  %v1221 = vadd.f32 0.0, %v1220
  %1222 = vdwg.mxu0
  %v1223 = vadd.f32 %v1008, %v1218
  %v1224 = vadd.f32 %v1009, %v1221
  %v1225 = vadd.f32 %v301, %v1223
  %v1226 = vadd.f32 %v302, %v1224
  %v1227 = vld [vmem:[%s41] sm:$0x1]
  %v1229 = vperm.slane %v1227, 0
  %v1231 = vadd.f32 %v1225, %v1229
  %v1232 = vadd.f32 %v1226, %v1229
  %v1233 = vld [vmem:[%s43] sm:$0x1]
  %v1234 = vld [vmem:[%s45] sm:$0x1]
  %v1235 = vsel %vm305, %v1231, 0.0
  %1236 = vadd.xlane.f32.xlu0 %v1235
  %v1237 = vpop.xlane.xlu0 %1236
  %v1238 = vsel %vm305, %v1232, 0.0
  %1239 = vadd.xlane.f32.xlu0 %v1238
  %v1240 = vpop.xlane.xlu0 %1239
  %v1241 = vmul.f32 %v1237, %v318
  %v1242 = vmul.f32 %v1240, %v318
  %v1243 = vsub.f32 %v1231, %v1241
  %v1244 = vsub.f32 %v1232, %v1242
  %v1245 = vmul.f32 %v1243, %v1243
  %v1246 = vmul.f32 %v1244, %v1244
  %v1247 = vsel %vm305, %v1245, 0.0
  %1248 = vadd.xlane.f32.xlu0 %v1247
  %v1249 = vpop.xlane.xlu0 %1248
  %v1250 = vsel %vm305, %v1246, 0.0
  %1251 = vadd.xlane.f32.xlu0 %v1250
  %v1252 = vpop.xlane.xlu0 %1251
  %v1253 = vmul.f32 %v1249, %v318
  %v1254 = vmul.f32 %v1252, %v318
  %v1255 = vadd.f32 %v1253, 1e-05
  %v1256 = vadd.f32 %v1254, 1e-05
  %v1257 = vrsqrt.pop %v1255
  %v1258 = vmul.f32 %v1257, %v1255
  %v1259 = vmul.f32 %v1258, %v1257
  %v1260 = vmul.f32 0.5, %v1259
  %v1261 = vsub.f32 1.5, %v1260
  %v1262 = vmul.f32 %v1257, %v1261
  %vm1263 = vweird.f32 %v1255
  %vm1264 = vweird.f32 %v1257
  %vm1265 = vmor %vm1263, %vm1264
  %v1266 = vsel %vm1265, %v1257, %v1262
  %v1267 = vrsqrt.pop %v1256
  %v1268 = vmul.f32 %v1267, %v1256
  %v1269 = vmul.f32 %v1268, %v1267
  %v1270 = vmul.f32 0.5, %v1269
  %v1271 = vsub.f32 1.5, %v1270
  %v1272 = vmul.f32 %v1267, %v1271
  %vm1273 = vweird.f32 %v1256
  %vm1274 = vweird.f32 %v1267
  %vm1275 = vmor %vm1273, %vm1274
  %v1276 = vsel %vm1275, %v1267, %v1272
  %v1277 = vmul.f32 %v1243, %v1266
  %v1278 = vmul.f32 %v1244, %v1276
  %v1280 = vperm.slane %v1233, 0
  %v1282 = vmul.f32 %v1277, %v1280
  %v1283 = vmul.f32 %v1278, %v1280
  %v1285 = vperm.slane %v1234, 0
  %v1287 = vadd.f32 %v1282, %v1285
  %v1288 = vadd.f32 %v1283, %v1285
  %v1289 = vld [vmem:[%s47] sm:$0xff]
  %v1290 = vld [vmem:[%s47 + $0x8] sm:$0xff]
  %v1291 = vld [vmem:[%s47 + $0x10] sm:$0xff]
  %v1292 = vld [vmem:[%s47 + $0x18] sm:$0xff]
  %v1293 = vld [vmem:[%s49] sm:$0x1]
  %v1295 = vperm.slane %v1293, 0
  %v1298 = vsel %vm305, %v1287, 0
  %v1301 = vsel %vm305, %v1288, 0
  %1303 = vmatpush.msra.mxu0 0.0
  %1304 = vmatpush.msra.mxu0 0.0
  %1305 = vmatpush.msra.mxu0 0.0
  %1306 = vmatpush.msra.mxu0 0.0
  %1307 = vmatpush.msra.mxu0 0.0
  %1308 = vmatpush.msra.mxu0 0.0
  %1309 = vmatpush.msra.mxu0 0.0
  %1310 = vmatpush.msra.mxu0 0.0
  %1311 = vmatpush.msra.mxu0 0.0
  %1312 = vmatpush.msra.mxu0 0.0
  %1313 = vmatpush.msra.mxu0 0.0
  %1314 = vmatpush.msra.mxu0 0.0
  %1315 = vmatpush.msra.mxu0 %v1292
  %1316 = vmatpush.msra.mxu0 %v1291
  %1317 = vmatpush.msra.mxu0 %v1290
  %1318 = vmatpush.msra.mxu0 %v1289
  %1319 = vmatmul.f32.gmra.mxu0 %v1298
  %v1320 = vpop.f32.mrf.mxu0
  %v1321 = vadd.f32 %v1295, %v1320
  %1322 = vmatmul.f32.gmra.mxu0 %v1301
  %v1323 = vpop.f32.mrf.mxu0
  %v1324 = vadd.f32 %v1295, %v1323
  %1325 = vdwg.mxu0
  %v1326 = vmax.f32 %v1321, 0.0
  %v1327 = vmax.f32 %v1324, 0.0
  %v1328 = vld [vmem:[%s51] sm:$0xff]
  %v1329 = vld [vmem:[%s51 + $0x8] sm:$0xff]
  %v1330 = vld [vmem:[%s51 + $0x10] sm:$0xff]
  %v1331 = vld [vmem:[%s51 + $0x18] sm:$0xff]
  %v1333 = vsel %vm305, %v1326, 0
  %v1336 = vsel %vm305, %v1327, 0
  %1338 = vmatpush.msra.mxu0 0.0
  %1339 = vmatpush.msra.mxu0 0.0
  %1340 = vmatpush.msra.mxu0 0.0
  %1341 = vmatpush.msra.mxu0 0.0
  %1342 = vmatpush.msra.mxu0 0.0
  %1343 = vmatpush.msra.mxu0 0.0
  %1344 = vmatpush.msra.mxu0 0.0
  %1345 = vmatpush.msra.mxu0 0.0
  %1346 = vmatpush.msra.mxu0 0.0
  %1347 = vmatpush.msra.mxu0 0.0
  %1348 = vmatpush.msra.mxu0 0.0
  %1349 = vmatpush.msra.mxu0 0.0
  %1350 = vmatpush.msra.mxu0 %v1331
  %1351 = vmatpush.msra.mxu0 %v1330
  %1352 = vmatpush.msra.mxu0 %v1329
  %1353 = vmatpush.msra.mxu0 %v1328
  %1354 = vmatmul.f32.gmra.mxu0 %v1333
  %v1355 = vpop.f32.mrf.mxu0
  %v1356 = vadd.f32 0.0, %v1355
  %1357 = vmatmul.f32.gmra.mxu0 %v1336
  %v1358 = vpop.f32.mrf.mxu0
  %v1359 = vadd.f32 0.0, %v1358
  %1360 = vdwg.mxu0
  %v1361 = vadd.f32 %v1231, %v1356
  %v1362 = vadd.f32 %v1232, %v1359
  %v1363 = vld [vmem:[%s53] sm:$0x1]
  %v1365 = vperm.slane %v1363, 0
  %v1367 = vadd.f32 %v1361, %v1365
  %v1368 = vadd.f32 %v1362, %v1365
  %s1369 = scalar_lea.vmem %s25, 1
  %v1370 = vld [vmem:[%s1369] sm:$0x1]
  %s1371 = scalar_lea.vmem %s27, 1
  %v1372 = vld [vmem:[%s1371] sm:$0x1]
  %v1373 = vsel %vm305, %v1367, 0.0
  %1374 = vadd.xlane.f32.xlu0 %v1373
  %v1375 = vpop.xlane.xlu0 %1374
  %v1376 = vsel %vm305, %v1368, 0.0
  %1377 = vadd.xlane.f32.xlu0 %v1376
  %v1378 = vpop.xlane.xlu0 %1377
  %v1379 = vmul.f32 %v1375, %v318
  %v1380 = vmul.f32 %v1378, %v318
  %v1381 = vsub.f32 %v1367, %v1379
  %v1382 = vsub.f32 %v1368, %v1380
  %v1383 = vmul.f32 %v1381, %v1381
  %v1384 = vmul.f32 %v1382, %v1382
  %v1385 = vsel %vm305, %v1383, 0.0
  %1386 = vadd.xlane.f32.xlu0 %v1385
  %v1387 = vpop.xlane.xlu0 %1386
  %v1388 = vsel %vm305, %v1384, 0.0
  %1389 = vadd.xlane.f32.xlu0 %v1388
  %v1390 = vpop.xlane.xlu0 %1389
  %v1391 = vmul.f32 %v1387, %v318
  %v1392 = vmul.f32 %v1390, %v318
  %v1393 = vadd.f32 %v1391, 1e-05
  %v1394 = vadd.f32 %v1392, 1e-05
  %v1395 = vrsqrt.pop %v1393
  %v1396 = vmul.f32 %v1395, %v1393
  %v1397 = vmul.f32 %v1396, %v1395
  %v1398 = vmul.f32 0.5, %v1397
  %v1399 = vsub.f32 1.5, %v1398
  %v1400 = vmul.f32 %v1395, %v1399
  %vm1401 = vweird.f32 %v1393
  %vm1402 = vweird.f32 %v1395
  %vm1403 = vmor %vm1401, %vm1402
  %v1404 = vsel %vm1403, %v1395, %v1400
  %v1405 = vrsqrt.pop %v1394
  %v1406 = vmul.f32 %v1405, %v1394
  %v1407 = vmul.f32 %v1406, %v1405
  %v1408 = vmul.f32 0.5, %v1407
  %v1409 = vsub.f32 1.5, %v1408
  %v1410 = vmul.f32 %v1405, %v1409
  %vm1411 = vweird.f32 %v1394
  %vm1412 = vweird.f32 %v1405
  %vm1413 = vmor %vm1411, %vm1412
  %v1414 = vsel %vm1413, %v1405, %v1410
  %v1415 = vmul.f32 %v1381, %v1404
  %v1416 = vmul.f32 %v1382, %v1414
  %v1418 = vperm.slane %v1370, 0
  %v1420 = vmul.f32 %v1415, %v1418
  %v1421 = vmul.f32 %v1416, %v1418
  %v1423 = vperm.slane %v1372, 0
  %v1425 = vadd.f32 %v1420, %v1423
  %v1426 = vadd.f32 %v1421, %v1423
  %s1427 = scalar_lea.vmem %s29, 128
  %v1428 = vld [vmem:[%s1427] sm:$0xff]
  %v1429 = vld [vmem:[%s1427 + $0x8] sm:$0xff]
  %v1430 = vld [vmem:[%s1427 + $0x10] sm:$0xff]
  %v1431 = vld [vmem:[%s1427 + $0x18] sm:$0xff]
  %s1432 = scalar_lea.vmem %s31, 4
  %v1433 = vld [vmem:[%s1432] sm:$0x1]
  %v1435 = vperm.slane %v1433, 0
  %v1438 = vsel %vm305, %v1425, 0
  %v1441 = vsel %vm305, %v1426, 0
  %1443 = vmatpush.msra.mxu0 0.0
  %1444 = vmatpush.msra.mxu0 0.0
  %1445 = vmatpush.msra.mxu0 0.0
  %1446 = vmatpush.msra.mxu0 0.0
  %1447 = vmatpush.msra.mxu0 0.0
  %1448 = vmatpush.msra.mxu0 0.0
  %1449 = vmatpush.msra.mxu0 0.0
  %1450 = vmatpush.msra.mxu0 0.0
  %1451 = vmatpush.msra.mxu0 0.0
  %1452 = vmatpush.msra.mxu0 0.0
  %1453 = vmatpush.msra.mxu0 0.0
  %1454 = vmatpush.msra.mxu0 0.0
  %1455 = vmatpush.msra.mxu0 %v1431
  %1456 = vmatpush.msra.mxu0 %v1430
  %1457 = vmatpush.msra.mxu0 %v1429
  %1458 = vmatpush.msra.mxu0 %v1428
  %1459 = vmatmul.f32.gmra.mxu0 %v1438
  %v1460 = vpop.f32.mrf.mxu0
  %v1461 = vadd.f32 %v1435, %v1460
  %1462 = vmatmul.f32.gmra.mxu0 %v1441
  %v1463 = vpop.f32.mrf.mxu0
  %v1464 = vadd.f32 %v1435, %v1463
  %1465 = vdwg.mxu0
  %v1466 = vmul.f32 %v1461, 0.35355338
  %v1467 = vmul.f32 %v1464, 0.35355338
  %s1468 = scalar_lea.vmem %s33, 128
  %v1469 = vld [vmem:[%s1468] sm:$0xff]
  %v1470 = vld [vmem:[%s1468 + $0x8] sm:$0xff]
  %v1471 = vld [vmem:[%s1468 + $0x10] sm:$0xff]
  %v1472 = vld [vmem:[%s1468 + $0x18] sm:$0xff]
  %1473 = vmatpush.msra.mxu0 0.0
  %1474 = vmatpush.msra.mxu0 0.0
  %1475 = vmatpush.msra.mxu0 0.0
  %1476 = vmatpush.msra.mxu0 0.0
  %1477 = vmatpush.msra.mxu0 0.0
  %1478 = vmatpush.msra.mxu0 0.0
  %1479 = vmatpush.msra.mxu0 0.0
  %1480 = vmatpush.msra.mxu0 0.0
  %1481 = vmatpush.msra.mxu0 0.0
  %1482 = vmatpush.msra.mxu0 0.0
  %1483 = vmatpush.msra.mxu0 0.0
  %1484 = vmatpush.msra.mxu0 0.0
  %1485 = vmatpush.msra.mxu0 %v1472
  %1486 = vmatpush.msra.mxu0 %v1471
  %1487 = vmatpush.msra.mxu0 %v1470
  %1488 = vmatpush.msra.mxu0 %v1469
  %1489 = vmatmul.f32.gmra.mxu0 %v1438
  %v1490 = vpop.f32.mrf.mxu0
  %v1491 = vadd.f32 0.0, %v1490
  %1492 = vmatmul.f32.gmra.mxu0 %v1441
  %v1493 = vpop.f32.mrf.mxu0
  %v1494 = vadd.f32 0.0, %v1493
  %1495 = vdwg.mxu0
  %s1496 = scalar_lea.vmem %s35, 128
  %v1497 = vld [vmem:[%s1496] sm:$0xff]
  %v1498 = vld [vmem:[%s1496 + $0x8] sm:$0xff]
  %v1499 = vld [vmem:[%s1496 + $0x10] sm:$0xff]
  %v1500 = vld [vmem:[%s1496 + $0x18] sm:$0xff]
  %s1501 = scalar_lea.vmem %s37, 4
  %v1502 = vld [vmem:[%s1501] sm:$0x1]
  %v1504 = vperm.slane %v1502, 0
  %1506 = vmatpush.msra.mxu0 0.0
  %1507 = vmatpush.msra.mxu0 0.0
  %1508 = vmatpush.msra.mxu0 0.0
  %1509 = vmatpush.msra.mxu0 0.0
  %1510 = vmatpush.msra.mxu0 0.0
  %1511 = vmatpush.msra.mxu0 0.0
  %1512 = vmatpush.msra.mxu0 0.0
  %1513 = vmatpush.msra.mxu0 0.0
  %1514 = vmatpush.msra.mxu0 0.0
  %1515 = vmatpush.msra.mxu0 0.0
  %1516 = vmatpush.msra.mxu0 0.0
  %1517 = vmatpush.msra.mxu0 0.0
  %1518 = vmatpush.msra.mxu0 %v1500
  %1519 = vmatpush.msra.mxu0 %v1499
  %1520 = vmatpush.msra.mxu0 %v1498
  %1521 = vmatpush.msra.mxu0 %v1497
  %1522 = vmatmul.f32.gmra.mxu0 %v1438
  %v1523 = vpop.f32.mrf.mxu0
  %v1524 = vadd.f32 %v1504, %v1523
  %1525 = vmatmul.f32.gmra.mxu0 %v1441
  %v1526 = vpop.f32.mrf.mxu0
  %v1527 = vadd.f32 %v1504, %v1526
  %1528 = vdwg.mxu0
  %v1530 = vsel %vm464, %v1466, 0
  %v1533 = vsel %vm464, %v1467, 0
  %v1536 = vsel %vm464, %v1491, 0
  %v1539 = vsel %vm464, %v1494, 0
  %1541 = vmatpush.xpose.msra.mxu0 0.0
  %1542 = vmatpush.xpose.msra.mxu0 0.0
  %1543 = vmatpush.xpose.msra.mxu0 0.0
  %1544 = vmatpush.xpose.msra.mxu0 0.0
  %1545 = vmatpush.xpose.msra.mxu0 0.0
  %1546 = vmatpush.xpose.msra.mxu0 0.0
  %1547 = vmatpush.xpose.msra.mxu0 0.0
  %1548 = vmatpush.xpose.msra.mxu0 0.0
  %1549 = vmatpush.xpose.msra.mxu0 0.0
  %1550 = vmatpush.xpose.msra.mxu0 0.0
  %1551 = vmatpush.xpose.msra.mxu0 0.0
  %1552 = vmatpush.xpose.msra.mxu0 0.0
  %1553 = vmatpush.xpose.msra.mxu0 0.0
  %1554 = vmatpush.xpose.msra.mxu0 0.0
  %1555 = vmatpush.xpose.msra.mxu0 %v1539
  %1556 = vmatpush.xpose.msra.mxu0 %v1536
  %1557 = vmatmul.f32.gmra.mxu0 %v1530
  %v1558 = vpop.f32.mrf.mxu0
  %v1559 = vadd.f32 %v124, %v1558
  %1560 = vmatmul.f32.gmra.mxu0 %v1533
  %v1561 = vpop.f32.mrf.mxu0
  %v1562 = vadd.f32 %v125, %v1561
  %1563 = vdwg.mxu0
  %v1564 = vsel %vm500, %v1559, -inf
  %1565 = vmax.xlane.f32.xlu0 %v1564
  %v1566 = vpop.xlane.xlu0 %1565
  %v1567 = vsel %vm500, %v1562, -inf
  %1568 = vmax.xlane.f32.xlu0 %v1567
  %v1569 = vpop.xlane.xlu0 %1568
  %v1570 = vsub.f32 %v1559, %v1566
  %v1571 = vsub.f32 %v1562, %v1569
  %v1572 = vmul.f32 %v1570, 1.442695
  %v1573 = vpow.pop %v1572
  %v1574 = vmul.f32 %v1571, 1.442695
  %v1575 = vpow.pop %v1574
  %v1576 = vsel %vm500, %v1573, 0.0
  %1577 = vadd.xlane.f32.xlu0 %v1576
  %v1578 = vpop.xlane.xlu0 %1577
  %v1579 = vsel %vm500, %v1575, 0.0
  %1580 = vadd.xlane.f32.xlu0 %v1579
  %v1581 = vpop.xlane.xlu0 %1580
  %v1582 = vrcp.pop %v1578
  %v1583 = vrcp.pop %v1581
  %v1584 = vmul.f32 %v1573, %v1582
  %v1585 = vmul.f32 %v1575, %v1583
  %v1587 = vsel %vm500, %v1584, 0
  %v1590 = vsel %vm500, %v1585, 0
  %1592 = vmatpush.msra.mxu0 0.0
  %1593 = vmatpush.msra.mxu0 0.0
  %1594 = vmatpush.msra.mxu0 0.0
  %1595 = vmatpush.msra.mxu0 0.0
  %1596 = vmatpush.msra.mxu0 0.0
  %1597 = vmatpush.msra.mxu0 0.0
  %1598 = vmatpush.msra.mxu0 0.0
  %1599 = vmatpush.msra.mxu0 0.0
  %1600 = vmatpush.msra.mxu0 0.0
  %1601 = vmatpush.msra.mxu0 0.0
  %1602 = vmatpush.msra.mxu0 0.0
  %1603 = vmatpush.msra.mxu0 0.0
  %1604 = vmatpush.msra.mxu0 0.0
  %1605 = vmatpush.msra.mxu0 0.0
  %1606 = vmatpush.msra.mxu0 %v1527
  %1607 = vmatpush.msra.mxu0 %v1524
  %1608 = vmatmul.f32.gmra.mxu0 %v1587
  %v1609 = vpop.f32.mrf.mxu0
  %v1610 = vadd.f32 0.0, %v1609
  %1611 = vmatmul.f32.gmra.mxu0 %v1590
  %v1612 = vpop.f32.mrf.mxu0
  %v1613 = vadd.f32 0.0, %v1612
  %1614 = vdwg.mxu0
  %s1615 = scalar_lea.vmem %s39, 32
  %v1616 = vld [vmem:[%s1615] sm:$0xff]
  %s1617 = scalar_lea.vmem %s29, 160
  %v1618 = vld [vmem:[%s1617] sm:$0xff]
  %v1619 = vld [vmem:[%s1617 + $0x8] sm:$0xff]
  %v1620 = vld [vmem:[%s1617 + $0x10] sm:$0xff]
  %v1621 = vld [vmem:[%s1617 + $0x18] sm:$0xff]
  %s1622 = scalar_lea.vmem %s31, 5
  %v1623 = vld [vmem:[%s1622] sm:$0x1]
  %v1625 = vperm.slane %v1623, 0
  %1627 = vmatpush.msra.mxu0 0.0
  %1628 = vmatpush.msra.mxu0 0.0
  %1629 = vmatpush.msra.mxu0 0.0
  %1630 = vmatpush.msra.mxu0 0.0
  %1631 = vmatpush.msra.mxu0 0.0
  %1632 = vmatpush.msra.mxu0 0.0
  %1633 = vmatpush.msra.mxu0 0.0
  %1634 = vmatpush.msra.mxu0 0.0
  %1635 = vmatpush.msra.mxu0 0.0
  %1636 = vmatpush.msra.mxu0 0.0
  %1637 = vmatpush.msra.mxu0 0.0
  %1638 = vmatpush.msra.mxu0 0.0
  %1639 = vmatpush.msra.mxu0 %v1621
  %1640 = vmatpush.msra.mxu0 %v1620
  %1641 = vmatpush.msra.mxu0 %v1619
  %1642 = vmatpush.msra.mxu0 %v1618
  %1643 = vmatmul.f32.gmra.mxu0 %v1438
  %v1644 = vpop.f32.mrf.mxu0
  %v1645 = vadd.f32 %v1625, %v1644
  %1646 = vmatmul.f32.gmra.mxu0 %v1441
  %v1647 = vpop.f32.mrf.mxu0
  %v1648 = vadd.f32 %v1625, %v1647
  %1649 = vdwg.mxu0
  %v1650 = vmul.f32 %v1645, 0.35355338
  %v1651 = vmul.f32 %v1648, 0.35355338
  %s1652 = scalar_lea.vmem %s33, 160
  %v1653 = vld [vmem:[%s1652] sm:$0xff]
  %v1654 = vld [vmem:[%s1652 + $0x8] sm:$0xff]
  %v1655 = vld [vmem:[%s1652 + $0x10] sm:$0xff]
  %v1656 = vld [vmem:[%s1652 + $0x18] sm:$0xff]
  %1657 = vmatpush.msra.mxu0 0.0
  %1658 = vmatpush.msra.mxu0 0.0
  %1659 = vmatpush.msra.mxu0 0.0
  %1660 = vmatpush.msra.mxu0 0.0
  %1661 = vmatpush.msra.mxu0 0.0
  %1662 = vmatpush.msra.mxu0 0.0
  %1663 = vmatpush.msra.mxu0 0.0
  %1664 = vmatpush.msra.mxu0 0.0
  %1665 = vmatpush.msra.mxu0 0.0
  %1666 = vmatpush.msra.mxu0 0.0
  %1667 = vmatpush.msra.mxu0 0.0
  %1668 = vmatpush.msra.mxu0 0.0
  %1669 = vmatpush.msra.mxu0 %v1656
  %1670 = vmatpush.msra.mxu0 %v1655
  %1671 = vmatpush.msra.mxu0 %v1654
  %1672 = vmatpush.msra.mxu0 %v1653
  %1673 = vmatmul.f32.gmra.mxu0 %v1438
  %v1674 = vpop.f32.mrf.mxu0
  %v1675 = vadd.f32 0.0, %v1674
  %1676 = vmatmul.f32.gmra.mxu0 %v1441
  %v1677 = vpop.f32.mrf.mxu0
  %v1678 = vadd.f32 0.0, %v1677
  %1679 = vdwg.mxu0
  %s1680 = scalar_lea.vmem %s35, 160
  %v1681 = vld [vmem:[%s1680] sm:$0xff]
  %v1682 = vld [vmem:[%s1680 + $0x8] sm:$0xff]
  %v1683 = vld [vmem:[%s1680 + $0x10] sm:$0xff]
  %v1684 = vld [vmem:[%s1680 + $0x18] sm:$0xff]
  %s1685 = scalar_lea.vmem %s37, 5
  %v1686 = vld [vmem:[%s1685] sm:$0x1]
  %v1688 = vperm.slane %v1686, 0
  %1690 = vmatpush.msra.mxu0 0.0
  %1691 = vmatpush.msra.mxu0 0.0
  %1692 = vmatpush.msra.mxu0 0.0
  %1693 = vmatpush.msra.mxu0 0.0
  %1694 = vmatpush.msra.mxu0 0.0
  %1695 = vmatpush.msra.mxu0 0.0
  %1696 = vmatpush.msra.mxu0 0.0
  %1697 = vmatpush.msra.mxu0 0.0
  %1698 = vmatpush.msra.mxu0 0.0
  %1699 = vmatpush.msra.mxu0 0.0
  %1700 = vmatpush.msra.mxu0 0.0
  %1701 = vmatpush.msra.mxu0 0.0
  %1702 = vmatpush.msra.mxu0 %v1684
  %1703 = vmatpush.msra.mxu0 %v1683
  %1704 = vmatpush.msra.mxu0 %v1682
  %1705 = vmatpush.msra.mxu0 %v1681
  %1706 = vmatmul.f32.gmra.mxu0 %v1438
  %v1707 = vpop.f32.mrf.mxu0
  %v1708 = vadd.f32 %v1688, %v1707
  %1709 = vmatmul.f32.gmra.mxu0 %v1441
  %v1710 = vpop.f32.mrf.mxu0
  %v1711 = vadd.f32 %v1688, %v1710
  %1712 = vdwg.mxu0
  %v1714 = vsel %vm464, %v1650, 0
  %v1717 = vsel %vm464, %v1651, 0
  %v1720 = vsel %vm464, %v1675, 0
  %v1723 = vsel %vm464, %v1678, 0
  %1725 = vmatpush.xpose.msra.mxu0 0.0
  %1726 = vmatpush.xpose.msra.mxu0 0.0
  %1727 = vmatpush.xpose.msra.mxu0 0.0
  %1728 = vmatpush.xpose.msra.mxu0 0.0
  %1729 = vmatpush.xpose.msra.mxu0 0.0
  %1730 = vmatpush.xpose.msra.mxu0 0.0
  %1731 = vmatpush.xpose.msra.mxu0 0.0
  %1732 = vmatpush.xpose.msra.mxu0 0.0
  %1733 = vmatpush.xpose.msra.mxu0 0.0
  %1734 = vmatpush.xpose.msra.mxu0 0.0
  %1735 = vmatpush.xpose.msra.mxu0 0.0
  %1736 = vmatpush.xpose.msra.mxu0 0.0
  %1737 = vmatpush.xpose.msra.mxu0 0.0
  %1738 = vmatpush.xpose.msra.mxu0 0.0
  %1739 = vmatpush.xpose.msra.mxu0 %v1723
  %1740 = vmatpush.xpose.msra.mxu0 %v1720
  %1741 = vmatmul.f32.gmra.mxu0 %v1714
  %v1742 = vpop.f32.mrf.mxu0
  %v1743 = vadd.f32 %v124, %v1742
  %1744 = vmatmul.f32.gmra.mxu0 %v1717
  %v1745 = vpop.f32.mrf.mxu0
  %v1746 = vadd.f32 %v125, %v1745
  %1747 = vdwg.mxu0
  %v1748 = vsel %vm500, %v1743, -inf
  %1749 = vmax.xlane.f32.xlu0 %v1748
  %v1750 = vpop.xlane.xlu0 %1749
  %v1751 = vsel %vm500, %v1746, -inf
  %1752 = vmax.xlane.f32.xlu0 %v1751
  %v1753 = vpop.xlane.xlu0 %1752
  %v1754 = vsub.f32 %v1743, %v1750
  %v1755 = vsub.f32 %v1746, %v1753
  %v1756 = vmul.f32 %v1754, 1.442695
  %v1757 = vpow.pop %v1756
  %v1758 = vmul.f32 %v1755, 1.442695
  %v1759 = vpow.pop %v1758
  %v1760 = vsel %vm500, %v1757, 0.0
  %1761 = vadd.xlane.f32.xlu0 %v1760
  %v1762 = vpop.xlane.xlu0 %1761
  %v1763 = vsel %vm500, %v1759, 0.0
  %1764 = vadd.xlane.f32.xlu0 %v1763
  %v1765 = vpop.xlane.xlu0 %1764
  %v1766 = vrcp.pop %v1762
  %v1767 = vrcp.pop %v1765
  %v1768 = vmul.f32 %v1757, %v1766
  %v1769 = vmul.f32 %v1759, %v1767
  %v1771 = vsel %vm500, %v1768, 0
  %v1774 = vsel %vm500, %v1769, 0
  %1776 = vmatpush.msra.mxu0 0.0
  %1777 = vmatpush.msra.mxu0 0.0
  %1778 = vmatpush.msra.mxu0 0.0
  %1779 = vmatpush.msra.mxu0 0.0
  %1780 = vmatpush.msra.mxu0 0.0
  %1781 = vmatpush.msra.mxu0 0.0
  %1782 = vmatpush.msra.mxu0 0.0
  %1783 = vmatpush.msra.mxu0 0.0
  %1784 = vmatpush.msra.mxu0 0.0
  %1785 = vmatpush.msra.mxu0 0.0
  %1786 = vmatpush.msra.mxu0 0.0
  %1787 = vmatpush.msra.mxu0 0.0
  %1788 = vmatpush.msra.mxu0 0.0
  %1789 = vmatpush.msra.mxu0 0.0
  %1790 = vmatpush.msra.mxu0 %v1711
  %1791 = vmatpush.msra.mxu0 %v1708
  %1792 = vmatmul.f32.gmra.mxu0 %v1771
  %v1793 = vpop.f32.mrf.mxu0
  %v1794 = vadd.f32 0.0, %v1793
  %1795 = vmatmul.f32.gmra.mxu0 %v1774
  %v1796 = vpop.f32.mrf.mxu0
  %v1797 = vadd.f32 0.0, %v1796
  %1798 = vdwg.mxu0
  %s1799 = scalar_lea.vmem %s39, 40
  %v1800 = vld [vmem:[%s1799] sm:$0xff]
  %v1802 = vsel %vm464, %v1794, 0
  %v1805 = vsel %vm464, %v1797, 0
  %1807 = vmatpush.msra.mxu0 0.0
  %1808 = vmatpush.msra.mxu0 0.0
  %1809 = vmatpush.msra.mxu0 0.0
  %1810 = vmatpush.msra.mxu0 0.0
  %1811 = vmatpush.msra.mxu0 0.0
  %1812 = vmatpush.msra.mxu0 0.0
  %1813 = vmatpush.msra.mxu0 0.0
  %1814 = vmatpush.msra.mxu0 0.0
  %1815 = vmatpush.msra.mxu0 0.0
  %1816 = vmatpush.msra.mxu0 0.0
  %1817 = vmatpush.msra.mxu0 0.0
  %1818 = vmatpush.msra.mxu0 0.0
  %1819 = vmatpush.msra.mxu0 0.0
  %1820 = vmatpush.msra.mxu0 0.0
  %1821 = vmatpush.msra.mxu0 0.0
  %1822 = vmatpush.msra.mxu0 %v1800
  %1823 = vmatmul.f32.gmra.mxu0 %v1802
  %v1824 = vpop.f32.mrf.mxu0
  %v1825 = vadd.f32 0.0, %v1824
  %1826 = vmatmul.f32.gmra.mxu0 %v1805
  %v1827 = vpop.f32.mrf.mxu0
  %v1828 = vadd.f32 0.0, %v1827
  %1829 = vdwg.mxu0
  %v1831 = vsel %vm464, %v1610, 0
  %v1834 = vsel %vm464, %v1613, 0
  %1836 = vmatpush.msra.mxu0 0.0
  %1837 = vmatpush.msra.mxu0 0.0
  %1838 = vmatpush.msra.mxu0 0.0
  %1839 = vmatpush.msra.mxu0 0.0
  %1840 = vmatpush.msra.mxu0 0.0
  %1841 = vmatpush.msra.mxu0 0.0
  %1842 = vmatpush.msra.mxu0 0.0
  %1843 = vmatpush.msra.mxu0 0.0
  %1844 = vmatpush.msra.mxu0 0.0
  %1845 = vmatpush.msra.mxu0 0.0
  %1846 = vmatpush.msra.mxu0 0.0
  %1847 = vmatpush.msra.mxu0 0.0
  %1848 = vmatpush.msra.mxu0 0.0
  %1849 = vmatpush.msra.mxu0 0.0
  %1850 = vmatpush.msra.mxu0 0.0
  %1851 = vmatpush.msra.mxu0 %v1616
  %1852 = vmatmul.f32.gmra.mxu0 %v1831
  %v1853 = vpop.f32.mrf.mxu0
  %v1854 = vadd.f32 %v1825, %v1853
  %1855 = vmatmul.f32.gmra.mxu0 %v1834
  %v1856 = vpop.f32.mrf.mxu0
  %v1857 = vadd.f32 %v1828, %v1856
  %1858 = vdwg.mxu0
  %s1859 = scalar_lea.vmem %s29, 192
  %v1860 = vld [vmem:[%s1859] sm:$0xff]
  %v1861 = vld [vmem:[%s1859 + $0x8] sm:$0xff]
  %v1862 = vld [vmem:[%s1859 + $0x10] sm:$0xff]
  %v1863 = vld [vmem:[%s1859 + $0x18] sm:$0xff]
  %s1864 = scalar_lea.vmem %s31, 6
  %v1865 = vld [vmem:[%s1864] sm:$0x1]
  %v1867 = vperm.slane %v1865, 0
  %1869 = vmatpush.msra.mxu0 0.0
  %1870 = vmatpush.msra.mxu0 0.0
  %1871 = vmatpush.msra.mxu0 0.0
  %1872 = vmatpush.msra.mxu0 0.0
  %1873 = vmatpush.msra.mxu0 0.0
  %1874 = vmatpush.msra.mxu0 0.0
  %1875 = vmatpush.msra.mxu0 0.0
  %1876 = vmatpush.msra.mxu0 0.0
  %1877 = vmatpush.msra.mxu0 0.0
  %1878 = vmatpush.msra.mxu0 0.0
  %1879 = vmatpush.msra.mxu0 0.0
  %1880 = vmatpush.msra.mxu0 0.0
  %1881 = vmatpush.msra.mxu0 %v1863
  %1882 = vmatpush.msra.mxu0 %v1862
  %1883 = vmatpush.msra.mxu0 %v1861
  %1884 = vmatpush.msra.mxu0 %v1860
  %1885 = vmatmul.f32.gmra.mxu0 %v1438
  %v1886 = vpop.f32.mrf.mxu0
  %v1887 = vadd.f32 %v1867, %v1886
  %1888 = vmatmul.f32.gmra.mxu0 %v1441
  %v1889 = vpop.f32.mrf.mxu0
  %v1890 = vadd.f32 %v1867, %v1889
  %1891 = vdwg.mxu0
  %v1892 = vmul.f32 %v1887, 0.35355338
  %v1893 = vmul.f32 %v1890, 0.35355338
  %s1894 = scalar_lea.vmem %s33, 192
  %v1895 = vld [vmem:[%s1894] sm:$0xff]
  %v1896 = vld [vmem:[%s1894 + $0x8] sm:$0xff]
  %v1897 = vld [vmem:[%s1894 + $0x10] sm:$0xff]
  %v1898 = vld [vmem:[%s1894 + $0x18] sm:$0xff]
  %1899 = vmatpush.msra.mxu0 0.0
  %1900 = vmatpush.msra.mxu0 0.0
  %1901 = vmatpush.msra.mxu0 0.0
  %1902 = vmatpush.msra.mxu0 0.0
  %1903 = vmatpush.msra.mxu0 0.0
  %1904 = vmatpush.msra.mxu0 0.0
  %1905 = vmatpush.msra.mxu0 0.0
  %1906 = vmatpush.msra.mxu0 0.0
  %1907 = vmatpush.msra.mxu0 0.0
  %1908 = vmatpush.msra.mxu0 0.0
  %1909 = vmatpush.msra.mxu0 0.0
  %1910 = vmatpush.msra.mxu0 0.0
  %1911 = vmatpush.msra.mxu0 %v1898
  %1912 = vmatpush.msra.mxu0 %v1897
  %1913 = vmatpush.msra.mxu0 %v1896
  %1914 = vmatpush.msra.mxu0 %v1895
  %1915 = vmatmul.f32.gmra.mxu0 %v1438
  %v1916 = vpop.f32.mrf.mxu0
  %v1917 = vadd.f32 0.0, %v1916
  %1918 = vmatmul.f32.gmra.mxu0 %v1441
  %v1919 = vpop.f32.mrf.mxu0
  %v1920 = vadd.f32 0.0, %v1919
  %1921 = vdwg.mxu0
  %s1922 = scalar_lea.vmem %s35, 192
  %v1923 = vld [vmem:[%s1922] sm:$0xff]
  %v1924 = vld [vmem:[%s1922 + $0x8] sm:$0xff]
  %v1925 = vld [vmem:[%s1922 + $0x10] sm:$0xff]
  %v1926 = vld [vmem:[%s1922 + $0x18] sm:$0xff]
  %s1927 = scalar_lea.vmem %s37, 6
  %v1928 = vld [vmem:[%s1927] sm:$0x1]
  %v1930 = vperm.slane %v1928, 0
  %1932 = vmatpush.msra.mxu0 0.0
  %1933 = vmatpush.msra.mxu0 0.0
  %1934 = vmatpush.msra.mxu0 0.0
  %1935 = vmatpush.msra.mxu0 0.0
  %1936 = vmatpush.msra.mxu0 0.0
  %1937 = vmatpush.msra.mxu0 0.0
  %1938 = vmatpush.msra.mxu0 0.0
  %1939 = vmatpush.msra.mxu0 0.0
  %1940 = vmatpush.msra.mxu0 0.0
  %1941 = vmatpush.msra.mxu0 0.0
  %1942 = vmatpush.msra.mxu0 0.0
  %1943 = vmatpush.msra.mxu0 0.0
  %1944 = vmatpush.msra.mxu0 %v1926
  %1945 = vmatpush.msra.mxu0 %v1925
  %1946 = vmatpush.msra.mxu0 %v1924
  %1947 = vmatpush.msra.mxu0 %v1923
  %1948 = vmatmul.f32.gmra.mxu0 %v1438
  %v1949 = vpop.f32.mrf.mxu0
  %v1950 = vadd.f32 %v1930, %v1949
  %1951 = vmatmul.f32.gmra.mxu0 %v1441
  %v1952 = vpop.f32.mrf.mxu0
  %v1953 = vadd.f32 %v1930, %v1952
  %1954 = vdwg.mxu0
  %v1956 = vsel %vm464, %v1892, 0
  %v1959 = vsel %vm464, %v1893, 0
  %v1962 = vsel %vm464, %v1917, 0
  %v1965 = vsel %vm464, %v1920, 0
  %1967 = vmatpush.xpose.msra.mxu0 0.0
  %1968 = vmatpush.xpose.msra.mxu0 0.0
  %1969 = vmatpush.xpose.msra.mxu0 0.0
  %1970 = vmatpush.xpose.msra.mxu0 0.0
  %1971 = vmatpush.xpose.msra.mxu0 0.0
  %1972 = vmatpush.xpose.msra.mxu0 0.0
  %1973 = vmatpush.xpose.msra.mxu0 0.0
  %1974 = vmatpush.xpose.msra.mxu0 0.0
  %1975 = vmatpush.xpose.msra.mxu0 0.0
  %1976 = vmatpush.xpose.msra.mxu0 0.0
  %1977 = vmatpush.xpose.msra.mxu0 0.0
  %1978 = vmatpush.xpose.msra.mxu0 0.0
  %1979 = vmatpush.xpose.msra.mxu0 0.0
  %1980 = vmatpush.xpose.msra.mxu0 0.0
  %1981 = vmatpush.xpose.msra.mxu0 %v1965
  %1982 = vmatpush.xpose.msra.mxu0 %v1962
  %1983 = vmatmul.f32.gmra.mxu0 %v1956
  %v1984 = vpop.f32.mrf.mxu0
  %v1985 = vadd.f32 %v124, %v1984
  %1986 = vmatmul.f32.gmra.mxu0 %v1959
  %v1987 = vpop.f32.mrf.mxu0
  %v1988 = vadd.f32 %v125, %v1987
  %1989 = vdwg.mxu0
  %v1990 = vsel %vm500, %v1985, -inf
  %1991 = vmax.xlane.f32.xlu0 %v1990
  %v1992 = vpop.xlane.xlu0 %1991
  %v1993 = vsel %vm500, %v1988, -inf
  %1994 = vmax.xlane.f32.xlu0 %v1993
  %v1995 = vpop.xlane.xlu0 %1994
  %v1996 = vsub.f32 %v1985, %v1992
  %v1997 = vsub.f32 %v1988, %v1995
  %v1998 = vmul.f32 %v1996, 1.442695
  %v1999 = vpow.pop %v1998
  %v2000 = vmul.f32 %v1997, 1.442695
  %v2001 = vpow.pop %v2000
  %v2002 = vsel %vm500, %v1999, 0.0
  %2003 = vadd.xlane.f32.xlu0 %v2002
  %v2004 = vpop.xlane.xlu0 %2003
  %v2005 = vsel %vm500, %v2001, 0.0
  %2006 = vadd.xlane.f32.xlu0 %v2005
  %v2007 = vpop.xlane.xlu0 %2006
  %v2008 = vrcp.pop %v2004
  %v2009 = vrcp.pop %v2007
  %v2010 = vmul.f32 %v1999, %v2008
  %v2011 = vmul.f32 %v2001, %v2009
  %v2013 = vsel %vm500, %v2010, 0
  %v2016 = vsel %vm500, %v2011, 0
  %2018 = vmatpush.msra.mxu0 0.0
  %2019 = vmatpush.msra.mxu0 0.0
  %2020 = vmatpush.msra.mxu0 0.0
  %2021 = vmatpush.msra.mxu0 0.0
  %2022 = vmatpush.msra.mxu0 0.0
  %2023 = vmatpush.msra.mxu0 0.0
  %2024 = vmatpush.msra.mxu0 0.0
  %2025 = vmatpush.msra.mxu0 0.0
  %2026 = vmatpush.msra.mxu0 0.0
  %2027 = vmatpush.msra.mxu0 0.0
  %2028 = vmatpush.msra.mxu0 0.0
  %2029 = vmatpush.msra.mxu0 0.0
  %2030 = vmatpush.msra.mxu0 0.0
  %2031 = vmatpush.msra.mxu0 0.0
  %2032 = vmatpush.msra.mxu0 %v1953
  %2033 = vmatpush.msra.mxu0 %v1950
  %2034 = vmatmul.f32.gmra.mxu0 %v2013
  %v2035 = vpop.f32.mrf.mxu0
  %v2036 = vadd.f32 0.0, %v2035
  %2037 = vmatmul.f32.gmra.mxu0 %v2016
  %v2038 = vpop.f32.mrf.mxu0
  %v2039 = vadd.f32 0.0, %v2038
  %2040 = vdwg.mxu0
  %s2041 = scalar_lea.vmem %s39, 48
  %v2042 = vld [vmem:[%s2041] sm:$0xff]
  %v2044 = vsel %vm464, %v2036, 0
  %v2047 = vsel %vm464, %v2039, 0
  %2049 = vmatpush.msra.mxu0 0.0
  %2050 = vmatpush.msra.mxu0 0.0
  %2051 = vmatpush.msra.mxu0 0.0
  %2052 = vmatpush.msra.mxu0 0.0
  %2053 = vmatpush.msra.mxu0 0.0
  %2054 = vmatpush.msra.mxu0 0.0
  %2055 = vmatpush.msra.mxu0 0.0
  %2056 = vmatpush.msra.mxu0 0.0
  %2057 = vmatpush.msra.mxu0 0.0
  %2058 = vmatpush.msra.mxu0 0.0
  %2059 = vmatpush.msra.mxu0 0.0
  %2060 = vmatpush.msra.mxu0 0.0
  %2061 = vmatpush.msra.mxu0 0.0
  %2062 = vmatpush.msra.mxu0 0.0
  %2063 = vmatpush.msra.mxu0 0.0
  %2064 = vmatpush.msra.mxu0 %v2042
  %2065 = vmatmul.f32.gmra.mxu0 %v2044
  %v2066 = vpop.f32.mrf.mxu0
  %v2067 = vadd.f32 0.0, %v2066
  %2068 = vmatmul.f32.gmra.mxu0 %v2047
  %v2069 = vpop.f32.mrf.mxu0
  %v2070 = vadd.f32 0.0, %v2069
  %2071 = vdwg.mxu0
  %v2072 = vadd.f32 %v1854, %v2067
  %v2073 = vadd.f32 %v1857, %v2070
  %s2074 = scalar_lea.vmem %s29, 224
  %v2075 = vld [vmem:[%s2074] sm:$0xff]
  %v2076 = vld [vmem:[%s2074 + $0x8] sm:$0xff]
  %v2077 = vld [vmem:[%s2074 + $0x10] sm:$0xff]
  %v2078 = vld [vmem:[%s2074 + $0x18] sm:$0xff]
  %s2079 = scalar_lea.vmem %s31, 7
  %v2080 = vld [vmem:[%s2079] sm:$0x1]
  %v2082 = vperm.slane %v2080, 0
  %2084 = vmatpush.msra.mxu0 0.0
  %2085 = vmatpush.msra.mxu0 0.0
  %2086 = vmatpush.msra.mxu0 0.0
  %2087 = vmatpush.msra.mxu0 0.0
  %2088 = vmatpush.msra.mxu0 0.0
  %2089 = vmatpush.msra.mxu0 0.0
  %2090 = vmatpush.msra.mxu0 0.0
  %2091 = vmatpush.msra.mxu0 0.0
  %2092 = vmatpush.msra.mxu0 0.0
  %2093 = vmatpush.msra.mxu0 0.0
  %2094 = vmatpush.msra.mxu0 0.0
  %2095 = vmatpush.msra.mxu0 0.0
  %2096 = vmatpush.msra.mxu0 %v2078
  %2097 = vmatpush.msra.mxu0 %v2077
  %2098 = vmatpush.msra.mxu0 %v2076
  %2099 = vmatpush.msra.mxu0 %v2075
  %2100 = vmatmul.f32.gmra.mxu0 %v1438
  %v2101 = vpop.f32.mrf.mxu0
  %v2102 = vadd.f32 %v2082, %v2101
  %2103 = vmatmul.f32.gmra.mxu0 %v1441
  %v2104 = vpop.f32.mrf.mxu0
  %v2105 = vadd.f32 %v2082, %v2104
  %2106 = vdwg.mxu0
  %v2107 = vmul.f32 %v2102, 0.35355338
  %v2108 = vmul.f32 %v2105, 0.35355338
  %s2109 = scalar_lea.vmem %s33, 224
  %v2110 = vld [vmem:[%s2109] sm:$0xff]
  %v2111 = vld [vmem:[%s2109 + $0x8] sm:$0xff]
  %v2112 = vld [vmem:[%s2109 + $0x10] sm:$0xff]
  %v2113 = vld [vmem:[%s2109 + $0x18] sm:$0xff]
  %2114 = vmatpush.msra.mxu0 0.0
  %2115 = vmatpush.msra.mxu0 0.0
  %2116 = vmatpush.msra.mxu0 0.0
  %2117 = vmatpush.msra.mxu0 0.0
  %2118 = vmatpush.msra.mxu0 0.0
  %2119 = vmatpush.msra.mxu0 0.0
  %2120 = vmatpush.msra.mxu0 0.0
  %2121 = vmatpush.msra.mxu0 0.0
  %2122 = vmatpush.msra.mxu0 0.0
  %2123 = vmatpush.msra.mxu0 0.0
  %2124 = vmatpush.msra.mxu0 0.0
  %2125 = vmatpush.msra.mxu0 0.0
  %2126 = vmatpush.msra.mxu0 %v2113
  %2127 = vmatpush.msra.mxu0 %v2112
  %2128 = vmatpush.msra.mxu0 %v2111
  %2129 = vmatpush.msra.mxu0 %v2110
  %2130 = vmatmul.f32.gmra.mxu0 %v1438
  %v2131 = vpop.f32.mrf.mxu0
  %v2132 = vadd.f32 0.0, %v2131
  %2133 = vmatmul.f32.gmra.mxu0 %v1441
  %v2134 = vpop.f32.mrf.mxu0
  %v2135 = vadd.f32 0.0, %v2134
  %2136 = vdwg.mxu0
  %s2137 = scalar_lea.vmem %s35, 224
  %v2138 = vld [vmem:[%s2137] sm:$0xff]
  %v2139 = vld [vmem:[%s2137 + $0x8] sm:$0xff]
  %v2140 = vld [vmem:[%s2137 + $0x10] sm:$0xff]
  %v2141 = vld [vmem:[%s2137 + $0x18] sm:$0xff]
  %s2142 = scalar_lea.vmem %s37, 7
  %v2143 = vld [vmem:[%s2142] sm:$0x1]
  %v2145 = vperm.slane %v2143, 0
  %2147 = vmatpush.msra.mxu0 0.0
  %2148 = vmatpush.msra.mxu0 0.0
  %2149 = vmatpush.msra.mxu0 0.0
  %2150 = vmatpush.msra.mxu0 0.0
  %2151 = vmatpush.msra.mxu0 0.0
  %2152 = vmatpush.msra.mxu0 0.0
  %2153 = vmatpush.msra.mxu0 0.0
  %2154 = vmatpush.msra.mxu0 0.0
  %2155 = vmatpush.msra.mxu0 0.0
  %2156 = vmatpush.msra.mxu0 0.0
  %2157 = vmatpush.msra.mxu0 0.0
  %2158 = vmatpush.msra.mxu0 0.0
  %2159 = vmatpush.msra.mxu0 %v2141
  %2160 = vmatpush.msra.mxu0 %v2140
  %2161 = vmatpush.msra.mxu0 %v2139
  %2162 = vmatpush.msra.mxu0 %v2138
  %2163 = vmatmul.f32.gmra.mxu0 %v1438
  %v2164 = vpop.f32.mrf.mxu0
  %v2165 = vadd.f32 %v2145, %v2164
  %2166 = vmatmul.f32.gmra.mxu0 %v1441
  %v2167 = vpop.f32.mrf.mxu0
  %v2168 = vadd.f32 %v2145, %v2167
  %2169 = vdwg.mxu0
  %v2171 = vsel %vm464, %v2107, 0
  %v2174 = vsel %vm464, %v2108, 0
  %v2177 = vsel %vm464, %v2132, 0
  %v2180 = vsel %vm464, %v2135, 0
  %2182 = vmatpush.xpose.msra.mxu0 0.0
  %2183 = vmatpush.xpose.msra.mxu0 0.0
  %2184 = vmatpush.xpose.msra.mxu0 0.0
  %2185 = vmatpush.xpose.msra.mxu0 0.0
  %2186 = vmatpush.xpose.msra.mxu0 0.0
  %2187 = vmatpush.xpose.msra.mxu0 0.0
  %2188 = vmatpush.xpose.msra.mxu0 0.0
  %2189 = vmatpush.xpose.msra.mxu0 0.0
  %2190 = vmatpush.xpose.msra.mxu0 0.0
  %2191 = vmatpush.xpose.msra.mxu0 0.0
  %2192 = vmatpush.xpose.msra.mxu0 0.0
  %2193 = vmatpush.xpose.msra.mxu0 0.0
  %2194 = vmatpush.xpose.msra.mxu0 0.0
  %2195 = vmatpush.xpose.msra.mxu0 0.0
  %2196 = vmatpush.xpose.msra.mxu0 %v2180
  %2197 = vmatpush.xpose.msra.mxu0 %v2177
  %2198 = vmatmul.f32.gmra.mxu0 %v2171
  %v2199 = vpop.f32.mrf.mxu0
  %v2200 = vadd.f32 %v124, %v2199
  %2201 = vmatmul.f32.gmra.mxu0 %v2174
  %v2202 = vpop.f32.mrf.mxu0
  %v2203 = vadd.f32 %v125, %v2202
  %2204 = vdwg.mxu0
  %v2205 = vsel %vm500, %v2200, -inf
  %2206 = vmax.xlane.f32.xlu0 %v2205
  %v2207 = vpop.xlane.xlu0 %2206
  %v2208 = vsel %vm500, %v2203, -inf
  %2209 = vmax.xlane.f32.xlu0 %v2208
  %v2210 = vpop.xlane.xlu0 %2209
  %v2211 = vsub.f32 %v2200, %v2207
  %v2212 = vsub.f32 %v2203, %v2210
  %v2213 = vmul.f32 %v2211, 1.442695
  %v2214 = vpow.pop %v2213
  %v2215 = vmul.f32 %v2212, 1.442695
  %v2216 = vpow.pop %v2215
  %v2217 = vsel %vm500, %v2214, 0.0
  %2218 = vadd.xlane.f32.xlu0 %v2217
  %v2219 = vpop.xlane.xlu0 %2218
  %v2220 = vsel %vm500, %v2216, 0.0
  %2221 = vadd.xlane.f32.xlu0 %v2220
  %v2222 = vpop.xlane.xlu0 %2221
  %v2223 = vrcp.pop %v2219
  %v2224 = vrcp.pop %v2222
  %v2225 = vmul.f32 %v2214, %v2223
  %v2226 = vmul.f32 %v2216, %v2224
  %v2228 = vsel %vm500, %v2225, 0
  %v2231 = vsel %vm500, %v2226, 0
  %2233 = vmatpush.msra.mxu0 0.0
  %2234 = vmatpush.msra.mxu0 0.0
  %2235 = vmatpush.msra.mxu0 0.0
  %2236 = vmatpush.msra.mxu0 0.0
  %2237 = vmatpush.msra.mxu0 0.0
  %2238 = vmatpush.msra.mxu0 0.0
  %2239 = vmatpush.msra.mxu0 0.0
  %2240 = vmatpush.msra.mxu0 0.0
  %2241 = vmatpush.msra.mxu0 0.0
  %2242 = vmatpush.msra.mxu0 0.0
  %2243 = vmatpush.msra.mxu0 0.0
  %2244 = vmatpush.msra.mxu0 0.0
  %2245 = vmatpush.msra.mxu0 0.0
  %2246 = vmatpush.msra.mxu0 0.0
  %2247 = vmatpush.msra.mxu0 %v2168
  %2248 = vmatpush.msra.mxu0 %v2165
  %2249 = vmatmul.f32.gmra.mxu0 %v2228
  %v2250 = vpop.f32.mrf.mxu0
  %v2251 = vadd.f32 0.0, %v2250
  %2252 = vmatmul.f32.gmra.mxu0 %v2231
  %v2253 = vpop.f32.mrf.mxu0
  %v2254 = vadd.f32 0.0, %v2253
  %2255 = vdwg.mxu0
  %s2256 = scalar_lea.vmem %s39, 56
  %v2257 = vld [vmem:[%s2256] sm:$0xff]
  %v2259 = vsel %vm464, %v2251, 0
  %v2262 = vsel %vm464, %v2254, 0
  %2264 = vmatpush.msra.mxu0 0.0
  %2265 = vmatpush.msra.mxu0 0.0
  %2266 = vmatpush.msra.mxu0 0.0
  %2267 = vmatpush.msra.mxu0 0.0
  %2268 = vmatpush.msra.mxu0 0.0
  %2269 = vmatpush.msra.mxu0 0.0
  %2270 = vmatpush.msra.mxu0 0.0
  %2271 = vmatpush.msra.mxu0 0.0
  %2272 = vmatpush.msra.mxu0 0.0
  %2273 = vmatpush.msra.mxu0 0.0
  %2274 = vmatpush.msra.mxu0 0.0
  %2275 = vmatpush.msra.mxu0 0.0
  %2276 = vmatpush.msra.mxu0 0.0
  %2277 = vmatpush.msra.mxu0 0.0
  %2278 = vmatpush.msra.mxu0 0.0
  %2279 = vmatpush.msra.mxu0 %v2257
  %2280 = vmatmul.f32.gmra.mxu0 %v2259
  %v2281 = vpop.f32.mrf.mxu0
  %v2282 = vadd.f32 0.0, %v2281
  %2283 = vmatmul.f32.gmra.mxu0 %v2262
  %v2284 = vpop.f32.mrf.mxu0
  %v2285 = vadd.f32 0.0, %v2284
  %2286 = vdwg.mxu0
  %v2287 = vadd.f32 %v2072, %v2282
  %v2288 = vadd.f32 %v2073, %v2285
  %v2289 = vadd.f32 %v1367, %v2287
  %v2290 = vadd.f32 %v1368, %v2288
  %s2291 = scalar_lea.vmem %s41, 1
  %v2292 = vld [vmem:[%s2291] sm:$0x1]
  %v2294 = vperm.slane %v2292, 0
  %v2296 = vadd.f32 %v2289, %v2294
  %v2297 = vadd.f32 %v2290, %v2294
  %s2298 = scalar_lea.vmem %s43, 1
  %v2299 = vld [vmem:[%s2298] sm:$0x1]
  %s2300 = scalar_lea.vmem %s45, 1
  %v2301 = vld [vmem:[%s2300] sm:$0x1]
  %v2302 = vsel %vm305, %v2296, 0.0
  %2303 = vadd.xlane.f32.xlu0 %v2302
  %v2304 = vpop.xlane.xlu0 %2303
  %v2305 = vsel %vm305, %v2297, 0.0
  %2306 = vadd.xlane.f32.xlu0 %v2305
  %v2307 = vpop.xlane.xlu0 %2306
  %v2308 = vmul.f32 %v2304, %v318
  %v2309 = vmul.f32 %v2307, %v318
  %v2310 = vsub.f32 %v2296, %v2308
  %v2311 = vsub.f32 %v2297, %v2309
  %v2312 = vmul.f32 %v2310, %v2310
  %v2313 = vmul.f32 %v2311, %v2311
  %v2314 = vsel %vm305, %v2312, 0.0
  %2315 = vadd.xlane.f32.xlu0 %v2314
  %v2316 = vpop.xlane.xlu0 %2315
  %v2317 = vsel %vm305, %v2313, 0.0
  %2318 = vadd.xlane.f32.xlu0 %v2317
  %v2319 = vpop.xlane.xlu0 %2318
  %v2320 = vmul.f32 %v2316, %v318
  %v2321 = vmul.f32 %v2319, %v318
  %v2322 = vadd.f32 %v2320, 1e-05
  %v2323 = vadd.f32 %v2321, 1e-05
  %v2324 = vrsqrt.pop %v2322
  %v2325 = vmul.f32 %v2324, %v2322
  %v2326 = vmul.f32 %v2325, %v2324
  %v2327 = vmul.f32 0.5, %v2326
  %v2328 = vsub.f32 1.5, %v2327
  %v2329 = vmul.f32 %v2324, %v2328
  %vm2330 = vweird.f32 %v2322
  %vm2331 = vweird.f32 %v2324
  %vm2332 = vmor %vm2330, %vm2331
  %v2333 = vsel %vm2332, %v2324, %v2329
  %v2334 = vrsqrt.pop %v2323
  %v2335 = vmul.f32 %v2334, %v2323
  %v2336 = vmul.f32 %v2335, %v2334
  %v2337 = vmul.f32 0.5, %v2336
  %v2338 = vsub.f32 1.5, %v2337
  %v2339 = vmul.f32 %v2334, %v2338
  %vm2340 = vweird.f32 %v2323
  %vm2341 = vweird.f32 %v2334
  %vm2342 = vmor %vm2340, %vm2341
  %v2343 = vsel %vm2342, %v2334, %v2339
  %v2344 = vmul.f32 %v2310, %v2333
  %v2345 = vmul.f32 %v2311, %v2343
  %v2347 = vperm.slane %v2299, 0
  %v2349 = vmul.f32 %v2344, %v2347
  %v2350 = vmul.f32 %v2345, %v2347
  %v2352 = vperm.slane %v2301, 0
  %v2354 = vadd.f32 %v2349, %v2352
  %v2355 = vadd.f32 %v2350, %v2352
  %s2356 = scalar_lea.vmem %s47, 32
  %v2357 = vld [vmem:[%s2356] sm:$0xff]
  %v2358 = vld [vmem:[%s2356 + $0x8] sm:$0xff]
  %v2359 = vld [vmem:[%s2356 + $0x10] sm:$0xff]
  %v2360 = vld [vmem:[%s2356 + $0x18] sm:$0xff]
  %s2361 = scalar_lea.vmem %s49, 1
  %v2362 = vld [vmem:[%s2361] sm:$0x1]
  %v2364 = vperm.slane %v2362, 0
  %v2367 = vsel %vm305, %v2354, 0
  %v2370 = vsel %vm305, %v2355, 0
  %2372 = vmatpush.msra.mxu0 0.0
  %2373 = vmatpush.msra.mxu0 0.0
  %2374 = vmatpush.msra.mxu0 0.0
  %2375 = vmatpush.msra.mxu0 0.0
  %2376 = vmatpush.msra.mxu0 0.0
  %2377 = vmatpush.msra.mxu0 0.0
  %2378 = vmatpush.msra.mxu0 0.0
  %2379 = vmatpush.msra.mxu0 0.0
  %2380 = vmatpush.msra.mxu0 0.0
  %2381 = vmatpush.msra.mxu0 0.0
  %2382 = vmatpush.msra.mxu0 0.0
  %2383 = vmatpush.msra.mxu0 0.0
  %2384 = vmatpush.msra.mxu0 %v2360
  %2385 = vmatpush.msra.mxu0 %v2359
  %2386 = vmatpush.msra.mxu0 %v2358
  %2387 = vmatpush.msra.mxu0 %v2357
  %2388 = vmatmul.f32.gmra.mxu0 %v2367
  %v2389 = vpop.f32.mrf.mxu0
  %v2390 = vadd.f32 %v2364, %v2389
  %2391 = vmatmul.f32.gmra.mxu0 %v2370
  %v2392 = vpop.f32.mrf.mxu0
  %v2393 = vadd.f32 %v2364, %v2392
  %2394 = vdwg.mxu0
  %v2395 = vmax.f32 %v2390, 0.0
  %v2396 = vmax.f32 %v2393, 0.0
  %s2397 = scalar_lea.vmem %s51, 32
  %v2398 = vld [vmem:[%s2397] sm:$0xff]
  %v2399 = vld [vmem:[%s2397 + $0x8] sm:$0xff]
  %v2400 = vld [vmem:[%s2397 + $0x10] sm:$0xff]
  %v2401 = vld [vmem:[%s2397 + $0x18] sm:$0xff]
  %v2403 = vsel %vm305, %v2395, 0
  %v2406 = vsel %vm305, %v2396, 0
  %2408 = vmatpush.msra.mxu0 0.0
  %2409 = vmatpush.msra.mxu0 0.0
  %2410 = vmatpush.msra.mxu0 0.0
  %2411 = vmatpush.msra.mxu0 0.0
  %2412 = vmatpush.msra.mxu0 0.0
  %2413 = vmatpush.msra.mxu0 0.0
  %2414 = vmatpush.msra.mxu0 0.0
  %2415 = vmatpush.msra.mxu0 0.0
  %2416 = vmatpush.msra.mxu0 0.0
  %2417 = vmatpush.msra.mxu0 0.0
  %2418 = vmatpush.msra.mxu0 0.0
  %2419 = vmatpush.msra.mxu0 0.0
  %2420 = vmatpush.msra.mxu0 %v2401
  %2421 = vmatpush.msra.mxu0 %v2400
  %2422 = vmatpush.msra.mxu0 %v2399
  %2423 = vmatpush.msra.mxu0 %v2398
  %2424 = vmatmul.f32.gmra.mxu0 %v2403
  %v2425 = vpop.f32.mrf.mxu0
  %v2426 = vadd.f32 0.0, %v2425
  %2427 = vmatmul.f32.gmra.mxu0 %v2406
  %v2428 = vpop.f32.mrf.mxu0
  %v2429 = vadd.f32 0.0, %v2428
  %2430 = vdwg.mxu0
  %v2431 = vadd.f32 %v2296, %v2426
  %v2432 = vadd.f32 %v2297, %v2429
  %s2433 = scalar_lea.vmem %s53, 1
  %v2434 = vld [vmem:[%s2433] sm:$0x1]
  %v2436 = vperm.slane %v2434, 0
  %v2438 = vadd.f32 %v2431, %v2436
  %v2439 = vadd.f32 %v2432, %v2436
  %v2441 = vsel %vm500, %v128, 0
  %2443 = vmatpush.msra.mxu0 0.0
  %2444 = vmatpush.msra.mxu0 0.0
  %2445 = vmatpush.msra.mxu0 0.0
  %2446 = vmatpush.msra.mxu0 0.0
  %2447 = vmatpush.msra.mxu0 0.0
  %2448 = vmatpush.msra.mxu0 0.0
  %2449 = vmatpush.msra.mxu0 0.0
  %2450 = vmatpush.msra.mxu0 0.0
  %2451 = vmatpush.msra.mxu0 0.0
  %2452 = vmatpush.msra.mxu0 0.0
  %2453 = vmatpush.msra.mxu0 0.0
  %2454 = vmatpush.msra.mxu0 0.0
  %2455 = vmatpush.msra.mxu0 0.0
  %2456 = vmatpush.msra.mxu0 0.0
  %2457 = vmatpush.msra.mxu0 %v2439
  %2458 = vmatpush.msra.mxu0 %v2438
  %2459 = vmatmul.f32.gmra.mxu0 %v2441
  %v2460 = vpop.f32.mrf.mxu0
  %v2461 = vadd.f32 0.0, %v2460
  %2462 = vdwg.mxu0
  %v2463 = vld [vmem:[%s55] sm:$0xff]
  %v2464 = vld [vmem:[%s55 + $0x8] sm:$0xff]
  %v2465 = vld [vmem:[%s55 + $0x10] sm:$0xff]
  %v2466 = vld [vmem:[%s55 + $0x18] sm:$0xff]
  %v2467 = vld [vmem:[#allocation2] sm:$0x1]
  %v2468 = vmul.f32 %v2467, 8.0
  %v2470 = vperm.slane %v2468, 0
  %v2473 = vsel %vm305, %v2461, 0
  %2475 = vmatpush.msra.mxu0 0.0
  %2476 = vmatpush.msra.mxu0 0.0
  %2477 = vmatpush.msra.mxu0 0.0
  %2478 = vmatpush.msra.mxu0 0.0
  %2479 = vmatpush.msra.mxu0 0.0
  %2480 = vmatpush.msra.mxu0 0.0
  %2481 = vmatpush.msra.mxu0 0.0
  %2482 = vmatpush.msra.mxu0 0.0
  %2483 = vmatpush.msra.mxu0 0.0
  %2484 = vmatpush.msra.mxu0 0.0
  %2485 = vmatpush.msra.mxu0 0.0
  %2486 = vmatpush.msra.mxu0 0.0
  %2487 = vmatpush.msra.mxu0 %v2466
  %2488 = vmatpush.msra.mxu0 %v2465
  %2489 = vmatpush.msra.mxu0 %v2464
  %2490 = vmatpush.msra.mxu0 %v2463
  %2491 = vmatmul.f32.gmra.mxu0 %v2473
  %v2492 = vpop.f32.mrf.mxu0
  %v2493 = vadd.f32 %v2470, %v2492
  %2494 = vdwg.mxu0
  %vm2495 = vcmask 1024
  %2496 = vst.msk [vmem:[%s59] sm:$0x3] %vm2495, %v2493
  // Predicated region
  $region118: #{critic_tfm_pallas.1} parent=0 // pred_check
    _
  $region119: #{critic_tfm_pallas.1} parent=0 // pred_check_branch
    %2498 = sbr.rel (0) target = $region121
  $region120: #{critic_tfm_pallas.1} parent=0 // pred_region
    _
  $region121: #{critic_tfm_pallas.1} parent=0 // pred_fallthru
    _
  // Predicated region
  $region122: #{critic_tfm_pallas.1} parent=0 // pred_check
    _
  $region123: #{critic_tfm_pallas.1} parent=0 // pred_check_branch
    %2500 = sbr.rel (0) target = $region125
  $region124: #{critic_tfm_pallas.1} parent=0 // pred_region
    _
  $region125: #{critic_tfm_pallas.1} parent=0 // pred_fallthru
    _

</llo_original>
